<compile_context>
chip_gen: v7x
topology: tpu7x:2x2x1
jax: 0.10.0
libtpu: 0.0.40
codegen_flags: <defaults>
</compile_context>

<pallas_src>
import math

import numpy as np
import jax
import jax.numpy as jnp
from jax import lax
from jax.experimental import pallas as pl
from jax.experimental.pallas import tpu as pltpu

# ------------- module configuration (mirrors CNN.__init__ for img_shape=28) -----------
IMG_SHAPE = 28
NUM_CLASSES = 10
KER_SIZE = 5                      # img_shape == 28 branch
C1, C2 = 16, 32                   # out_channels, out_channels*2
H1 = IMG_SHAPE - KER_SIZE + 1     # 24  conv1 spatial
P1 = H1 // 2                      # 12  after MaxPool2d(2)
H2 = P1 - KER_SIZE + 1            # 8   conv2 spatial
P2 = H2 // 2                      # 4   after MaxPool2d(2)
FLAT_DIM = C2 * P2 * P2           # 512
N1 = P1 * C1                      # 192 = layer-1 packed lane width (w*16 + c)
N2 = P2 * C2                      # 128 = layer-2 packed lane width (w*32 + c)
NPAR = 4                          # input H split into 4 row-parity planes
U0 = IMG_SHAPE // NPAR            # 7   rows per input parity plane
U1 = P1 // 2                      # 6   pooled rows per parity group after layer 1
NSLAB = 8                         # H-shift index t = 2g + dh + ki  in [0, 7]

LAYERS = [dict(cin=1, cout=C1, k=KER_SIZE), dict(cin=C1, cout=C2, k=KER_SIZE)]


# ------------------------------- fused Pallas kernel ----------------------------------

def _fused_cnn_kernel(x_ref, w1_ref, b1_ref, w2_ref, b2_ref, wo_ref, bo_ref,
                      logits_ref, feat_ref):
    """Whole CNN forward for one batch tile, entirely in VMEM.

    x_ref:  (4, 7, TB, 28)  f32   input, H-parity planes: x_ref[p,u,b,w] = x[b, 4u+p, w]
    w1_ref: (5, 2, 28, 192) bf16  layer-1 weights, block-banded, even/odd output-W variants
    b1_ref: (1, 192)        f32   layer-1 bias tiled over output W
    w2_ref: (5, 2, 192, 128) bf16
    b2_ref: (1, 128)        f32
    wo_ref: (4, 128, 10)    bf16  classifier weights, one slab per pooled output row
    bo_ref: (1, 10)         f32
    logits_ref: (TB, 10)    f32
    feat_ref:   (4, TB, 128) f32  feat[m, b, n*32+c] = pooled2[b, c, m, n]
    """
    TB = x_ref.shape[2]
    xb = x_ref[...]                                            # (4, 7, TB, 28) f32

    # ---------------- layer 1: conv 5x5 (1->16) + ReLU + maxpool 2 -------------------
    # slabs[t][u*TB + b, :] = x[b, 4u + t, :]   (t = 2g + dh + ki)
    slabs = [
        jnp.concatenate([xb[t % NPAR, t // NPAR + u] for u in range(U1)], axis=0)
        for t in range(NSLAB)
    ]
    # One big-M LHS per kernel row ki, stacking the 4 (g, dh) row blocks -> fewer, larger dots.
    lhs1 = [
        jnp.concatenate([slabs[q + ki] for q in range(4)], axis=0).astype(jnp.bfloat16)
        for ki in range(KER_SIZE)
    ]

    def _mm_sum(lhs_list, w_ref, eo):
        acc = None
        for ki in range(KER_SIZE):
            d = jnp.dot(lhs_list[ki], w_ref[ki, eo],
                        preferred_element_type=jnp.float32)
            acc = d if acc is None else acc + d
        return acc

    acc1_e = _mm_sum(lhs1, w1_ref, 0)          # conv output at even W positions
    acc1_o = _mm_sum(lhs1, w1_ref, 1)          # conv output at odd  W positions
    m1 = jnp.maximum(acc1_e, acc1_o)           # W half of the 2x2 pool   (4*6*TB, 192)

    S1 = U1 * TB
    b1 = b1_ref[...]
    p1 = []                                    # layer-1 pooled output, split by row parity g
    for g in range(2):
        blk = jnp.maximum(m1[(2 * g) * S1:(2 * g + 1) * S1],        # dh = 0
                          m1[(2 * g + 1) * S1:(2 * g + 2) * S1])    # dh = 1
        p1.append(jnp.maximum(blk + b1, 0.0))                       # bias hoisted, ReLU last

    # ---------------- layer 2: conv 5x5 (16->32) + ReLU + maxpool 2 -------------------
    lhs2 = []
    for ki in range(KER_SIZE):
        pieces = []
        for mrow in range(P2):                 # pooled output row
            for dh in range(2):                # pool row offset
                t = dh + ki
                g, u = t % 2, mrow + t // 2
                pieces.append(p1[g][u * TB:(u + 1) * TB])
        lhs2.append(jnp.concatenate(pieces, axis=0).astype(jnp.bfloat16))   # (8*TB, 192)

    acc2_e = _mm_sum(lhs2, w2_ref, 0)
    acc2_o = _mm_sum(lhs2, w2_ref, 1)
    m2 = jnp.maximum(acc2_e, acc2_o)                                        # (8*TB, 128)
    b2 = b2_ref[...]

    # ---------------- pooled features + fused classifier head -------------------------
    logit = None
    for mrow in range(P2):
        f = jnp.maximum(
            jnp.maximum(m2[(2 * mrow) * TB:(2 * mrow + 1) * TB],
                        m2[(2 * mrow + 1) * TB:(2 * mrow + 2) * TB]) + b2,
            0.0)                                                            # (TB, 128)
        feat_ref[mrow] = f
        d = jnp.dot(f.astype(jnp.bfloat16), wo_ref[mrow],
                    preferred_element_type=jnp.float32)
        logit = d if logit is None else logit + d
    logits_ref[...] = logit + bo_ref[...]


# ------------------------------- wrapper / XLA glue ------------------------------------

def _tile_b(batch):
    # tile must be a multiple of 8 (sublane alignment of the in-kernel row blocks)
    return 8 if batch <= 8 else 32


@jax.jit
def cnn_forward(packed, x_nchw):
    """Matches CNN.forward: returns (logits, flattened_features) with torch (C,H,W) flatten."""
    B = x_nchw.shape[0]
    TB = _tile_b(B)
    Bp = ((B + TB - 1) // TB) * TB

    x = x_nchw.reshape(B, IMG_SHAPE, IMG_SHAPE).astype(jnp.float32)
    if Bp != B:
        x = jnp.pad(x, ((0, Bp - B), (0, 0), (0, 0)))
    # (B,H,W) -> (H,B,W) -> 4 H-parity planes (4, 7, B, W): cheap, zero data expansion.
    xt = jnp.transpose(x, (1, 0, 2))
    x4 = xt.reshape(U0, NPAR, Bp, IMG_SHAPE).transpose(1, 0, 2, 3)

    logits, feat = pl.pallas_call(
        _fused_cnn_kernel,
        out_shape=(jax.ShapeDtypeStruct((Bp, NUM_CLASSES), jnp.float32),
                   jax.ShapeDtypeStruct((P2, Bp, N2), jnp.float32)),
        grid=(Bp // TB,),
        in_specs=[
            pl.BlockSpec((NPAR, U0, TB, IMG_SHAPE), lambda i: (0, 0, i, 0)),
            pl.BlockSpec((KER_SIZE, 2, IMG_SHAPE, N1), lambda i: (0, 0, 0, 0)),
            pl.BlockSpec((1, N1), lambda i: (0, 0)),
            pl.BlockSpec((KER_SIZE, 2, N1, N2), lambda i: (0, 0, 0, 0)),
            pl.BlockSpec((1, N2), lambda i: (0, 0)),
            pl.BlockSpec((P2, N2, NUM_CLASSES), lambda i: (0, 0, 0)),
            pl.BlockSpec((1, NUM_CLASSES), lambda i: (0, 0)),
        ],
        out_specs=(
            pl.BlockSpec((TB, NUM_CLASSES), lambda i: (i, 0)),
            pl.BlockSpec((P2, TB, N2), lambda i: (0, i, 0)),
        ),
        compiler_params=pltpu.CompilerParams(
            dimension_semantics=("parallel",),   # shard batch tiles across TCs (v7x megacore)
        ),
    )(x4, packed["w1"], packed["b1"], packed["w2"], packed["b2"],
      packed["wo"], packed["bo"])

    logits = logits[:B]
    feat = feat[:, :B]                                    # (4, B, 128) = [m, b, n*32+c]
    # torch x.view(B,-1) flattens NCHW -> (C,H,W) order; tiny reorder of a (B,512) tensor.
    flat = feat.reshape(P2, B, P2, C2).transpose(1, 3, 0, 2).reshape(B, FLAT_DIM)
    return logits, flat


# ------------------------------- params: init + packing --------------------------------

def init_params(key):
    """Deterministic PyTorch-style U(-1/sqrt(fan_in), 1/sqrt(fan_in)) init (HWIO conv w)."""
    keys = jax.random.split(key, 2 * len(LAYERS) + 2)
    conv = []
    for i, cfg in enumerate(LAYERS):
        fan_in = cfg["cin"] * cfg["k"] * cfg["k"]
        bound = 1.0 / math.sqrt(fan_in)
        w = jax.random.uniform(keys[2 * i], (cfg["k"], cfg["k"], cfg["cin"], cfg["cout"]),
                               jnp.float32, -bound, bound)
        b = jax.random.uniform(keys[2 * i + 1], (1, cfg["cout"]), jnp.float32, -bound, bound)
        conv.append({"w": w, "b": b})
    bound = 1.0 / math.sqrt(FLAT_DIM)
    out_w = jax.random.uniform(keys[-2], (FLAT_DIM, NUM_CLASSES), jnp.float32, -bound, bound)
    out_b = jax.random.uniform(keys[-1], (1, NUM_CLASSES), jnp.float32, -bound, bound)
    return {"conv": conv, "out_w": out_w, "out_b": out_b}


def pack_params(params):
    """One-time repack of the weights into the kernel's block-banded bf16 layout."""
    w1 = np.asarray(params["conv"][0]["w"], np.float32)      # (5,5,1,16)  HWIO
    b1 = np.asarray(params["conv"][0]["b"], np.float32).reshape(-1)
    w2 = np.asarray(params["conv"][1]["w"], np.float32)      # (5,5,16,32) HWIO
    b2 = np.asarray(params["conv"][1]["b"], np.float32).reshape(-1)
    ow = np.asarray(params["out_w"], np.float32)             # (512, 10) rows in torch (C,H,W) order
    ob = np.asarray(params["out_b"], np.float32).reshape(1, -1)

    # layer 1: (28 input W) -> (12 output W x 16 C), even/odd output-W variants per kernel row.
    w1p = np.zeros((KER_SIZE, 2, IMG_SHAPE, N1), np.float32)
    for ki in range(KER_SIZE):
        for eo in range(2):
            for j in range(P1):
                for kj in range(KER_SIZE):
                    w_in = 2 * j + eo + kj
                    w1p[ki, eo, w_in, j * C1:(j + 1) * C1] = w1[ki, kj, 0, :]

    # layer 2: (12 W x 16 C) -> (4 output W x 32 C).
    w2p = np.zeros((KER_SIZE, 2, N1, N2), np.float32)
    for ki in range(KER_SIZE):
        for eo in range(2):
            for n in range(P2):
                for kj in range(KER_SIZE):
                    j_in = 2 * n + eo + kj
                    w2p[ki, eo, j_in * C1:(j_in + 1) * C1, n * C2:(n + 1) * C2] = w2[ki, kj, :, :]

    # classifier: rows re-ordered from torch (c*16 + m*4 + n) to kernel (m, n*32 + c) layout.
    wop = ow.reshape(C2, P2, P2, NUM_CLASSES).transpose(1, 2, 0, 3).reshape(P2, N2, NUM_CLASSES)

    return {
        "w1": jnp.asarray(w1p, jnp.bfloat16),
        "b1": jnp.asarray(np.tile(b1, P1).reshape(1, N1), jnp.float32),
        "w2": jnp.asarray(w2p, jnp.bfloat16),
        "b2": jnp.asarray(np.tile(b2, P2).reshape(1, N2), jnp.float32),
        "wo": jnp.asarray(wop, jnp.bfloat16),
        "bo": jnp.asarray(ob, jnp.float32),
    }


# ------------------------------- pure-JAX reference -------------------------------------

def ref_forward(params, x_nchw):
    """Pure-JAX reference (no Pallas) for a numerical sanity check."""
    x = jnp.transpose(x_nchw, (0, 2, 3, 1)).astype(jnp.float32)
    for layer in params["conv"]:
        y = lax.conv_general_dilated(
            x, layer["w"], window_strides=(1, 1), padding=[(0, 0), (0, 0)],
            dimension_numbers=("NHWC", "HWIO", "NHWC"))
        y = jnp.maximum(y + layer["b"].reshape(1, 1, 1, -1), 0.0)
        x = lax.reduce_window(y, -jnp.inf, lax.max, (1, 2, 2, 1), (1, 2, 2, 1), "VALID")
    flat = jnp.transpose(x, (0, 3, 1, 2)).reshape(x.shape[0], -1)
    logits = flat @ params["out_w"] + params["out_b"]
    return logits, flat


if __name__ == "__main__":
    key = jax.random.PRNGKey(0)
    k_x, k_p = jax.random.split(key)
    x = jax.random.normal(k_x, (2, 1, IMG_SHAPE, IMG_SHAPE), jnp.float32)
    params = init_params(k_p)
    packed = pack_params(params)

    logits, flat = cnn_forward(packed, x)
    jax.block_until_ready((logits, flat))

    assert logits.shape == (2, NUM_CLASSES), logits.shape
    assert flat.shape == (2, FLAT_DIM), flat.shape

    ref_logits, ref_flat = ref_forward(params, x)
    err_l = float(jnp.max(jnp.abs(logits - ref_logits)))
    err_f = float(jnp.max(jnp.abs(flat - ref_flat)))
    assert err_l < 5e-2 and err_f < 5e-2, (err_l, err_f)

    print("KERNEL_OK")
</pallas_src>

<mosaic_0001>
module attributes {stable_mosaic.version = 11 : i64} {
  func.func @_fused_cnn_kernel(%arg0: i32, %arg1: memref<4x7x8x28xf32, #tpu.memory_space<vmem>>, %arg2: memref<5x2x28x192xbf16, #tpu.memory_space<vmem>>, %arg3: memref<1x192xf32, #tpu.memory_space<vmem>>, %arg4: memref<5x2x192x128xbf16, #tpu.memory_space<vmem>>, %arg5: memref<1x128xf32, #tpu.memory_space<vmem>>, %arg6: memref<4x128x10xbf16, #tpu.memory_space<vmem>>, %arg7: memref<1x10xf32, #tpu.memory_space<vmem>>, %arg8: memref<8x10xf32, #tpu.memory_space<vmem>>, %arg9: memref<4x8x128xf32, #tpu.memory_space<vmem>>) attributes {dimension_semantics = [#tpu.dimension_semantics<parallel>], iteration_bounds = array<i64: 1>, scalar_prefetch = 0 : i64, scratch_operands = 0 : i64, tpu.core_type = #tpu.core_type<tc>, window_params = [{transform_indices = @transform_0, window_bounds = array<i64: 4, 7, 8, 28>}, {pipeline_mode = #tpu.pipeline_mode<synchronous>, transform_indices = @transform_1, window_bounds = array<i64: 5, 2, 28, 192>}, {pipeline_mode = #tpu.pipeline_mode<synchronous>, transform_indices = @transform_2, window_bounds = array<i64: 1, 192>}, {pipeline_mode = #tpu.pipeline_mode<synchronous>, transform_indices = @transform_3, window_bounds = array<i64: 5, 2, 192, 128>}, {pipeline_mode = #tpu.pipeline_mode<synchronous>, transform_indices = @transform_4, window_bounds = array<i64: 1, 128>}, {pipeline_mode = #tpu.pipeline_mode<synchronous>, transform_indices = @transform_5, window_bounds = array<i64: 4, 128, 10>}, {pipeline_mode = #tpu.pipeline_mode<synchronous>, transform_indices = @transform_6, window_bounds = array<i64: 1, 10>}, {transform_indices = @transform_7, window_bounds = array<i64: 8, 10>}, {transform_indices = @transform_8, window_bounds = array<i64: 4, 8, 128>}]} {
    %c0 = arith.constant 0 : index
    %c0_0 = arith.constant 0 : index
    %c0_1 = arith.constant 0 : index
    %c0_2 = arith.constant 0 : index
    %0 = vector.load %arg1[%c0, %c0_0, %c0_1, %c0_2] : memref<4x7x8x28xf32, #tpu.memory_space<vmem>>, vector<4x7x8x28xf32>
    %1 = vector.extract_strided_slice %0 {offsets = [0, 0, 0, 0], sizes = [1, 1, 8, 28], strides = [1, 1, 1, 1]} : vector<4x7x8x28xf32> to vector<1x1x8x28xf32>
    %2 = vector.shape_cast %1 : vector<1x1x8x28xf32> to vector<8x28xf32>
    %3 = vector.extract_strided_slice %0 {offsets = [0, 1, 0, 0], sizes = [1, 1, 8, 28], strides = [1, 1, 1, 1]} : vector<4x7x8x28xf32> to vector<1x1x8x28xf32>
    %4 = vector.shape_cast %3 : vector<1x1x8x28xf32> to vector<8x28xf32>
    %5 = vector.extract_strided_slice %0 {offsets = [0, 2, 0, 0], sizes = [1, 1, 8, 28], strides = [1, 1, 1, 1]} : vector<4x7x8x28xf32> to vector<1x1x8x28xf32>
    %6 = vector.shape_cast %5 : vector<1x1x8x28xf32> to vector<8x28xf32>
    %7 = vector.extract_strided_slice %0 {offsets = [0, 3, 0, 0], sizes = [1, 1, 8, 28], strides = [1, 1, 1, 1]} : vector<4x7x8x28xf32> to vector<1x1x8x28xf32>
    %8 = vector.shape_cast %7 : vector<1x1x8x28xf32> to vector<8x28xf32>
    %9 = vector.extract_strided_slice %0 {offsets = [0, 4, 0, 0], sizes = [1, 1, 8, 28], strides = [1, 1, 1, 1]} : vector<4x7x8x28xf32> to vector<1x1x8x28xf32>
    %10 = vector.shape_cast %9 : vector<1x1x8x28xf32> to vector<8x28xf32>
    %11 = vector.extract_strided_slice %0 {offsets = [0, 5, 0, 0], sizes = [1, 1, 8, 28], strides = [1, 1, 1, 1]} : vector<4x7x8x28xf32> to vector<1x1x8x28xf32>
    %12 = vector.shape_cast %11 : vector<1x1x8x28xf32> to vector<8x28xf32>
    %13 = tpu.concatenate %2, %4, %6, %8, %10, %12 in 0 : vector<8x28xf32>, vector<8x28xf32>, vector<8x28xf32>, vector<8x28xf32>, vector<8x28xf32>, vector<8x28xf32> -> vector<48x28xf32>
    %14 = vector.extract_strided_slice %0 {offsets = [1, 0, 0, 0], sizes = [1, 1, 8, 28], strides = [1, 1, 1, 1]} : vector<4x7x8x28xf32> to vector<1x1x8x28xf32>
    %15 = vector.shape_cast %14 : vector<1x1x8x28xf32> to vector<8x28xf32>
    %16 = vector.extract_strided_slice %0 {offsets = [1, 1, 0, 0], sizes = [1, 1, 8, 28], strides = [1, 1, 1, 1]} : vector<4x7x8x28xf32> to vector<1x1x8x28xf32>
    %17 = vector.shape_cast %16 : vector<1x1x8x28xf32> to vector<8x28xf32>
    %18 = vector.extract_strided_slice %0 {offsets = [1, 2, 0, 0], sizes = [1, 1, 8, 28], strides = [1, 1, 1, 1]} : vector<4x7x8x28xf32> to vector<1x1x8x28xf32>
    %19 = vector.shape_cast %18 : vector<1x1x8x28xf32> to vector<8x28xf32>
    %20 = vector.extract_strided_slice %0 {offsets = [1, 3, 0, 0], sizes = [1, 1, 8, 28], strides = [1, 1, 1, 1]} : vector<4x7x8x28xf32> to vector<1x1x8x28xf32>
    %21 = vector.shape_cast %20 : vector<1x1x8x28xf32> to vector<8x28xf32>
    %22 = vector.extract_strided_slice %0 {offsets = [1, 4, 0, 0], sizes = [1, 1, 8, 28], strides = [1, 1, 1, 1]} : vector<4x7x8x28xf32> to vector<1x1x8x28xf32>
    %23 = vector.shape_cast %22 : vector<1x1x8x28xf32> to vector<8x28xf32>
    %24 = vector.extract_strided_slice %0 {offsets = [1, 5, 0, 0], sizes = [1, 1, 8, 28], strides = [1, 1, 1, 1]} : vector<4x7x8x28xf32> to vector<1x1x8x28xf32>
    %25 = vector.shape_cast %24 : vector<1x1x8x28xf32> to vector<8x28xf32>
    %26 = tpu.concatenate %15, %17, %19, %21, %23, %25 in 0 : vector<8x28xf32>, vector<8x28xf32>, vector<8x28xf32>, vector<8x28xf32>, vector<8x28xf32>, vector<8x28xf32> -> vector<48x28xf32>
    %27 = vector.extract_strided_slice %0 {offsets = [2, 0, 0, 0], sizes = [1, 1, 8, 28], strides = [1, 1, 1, 1]} : vector<4x7x8x28xf32> to vector<1x1x8x28xf32>
    %28 = vector.shape_cast %27 : vector<1x1x8x28xf32> to vector<8x28xf32>
    %29 = vector.extract_strided_slice %0 {offsets = [2, 1, 0, 0], sizes = [1, 1, 8, 28], strides = [1, 1, 1, 1]} : vector<4x7x8x28xf32> to vector<1x1x8x28xf32>
    %30 = vector.shape_cast %29 : vector<1x1x8x28xf32> to vector<8x28xf32>
    %31 = vector.extract_strided_slice %0 {offsets = [2, 2, 0, 0], sizes = [1, 1, 8, 28], strides = [1, 1, 1, 1]} : vector<4x7x8x28xf32> to vector<1x1x8x28xf32>
    %32 = vector.shape_cast %31 : vector<1x1x8x28xf32> to vector<8x28xf32>
    %33 = vector.extract_strided_slice %0 {offsets = [2, 3, 0, 0], sizes = [1, 1, 8, 28], strides = [1, 1, 1, 1]} : vector<4x7x8x28xf32> to vector<1x1x8x28xf32>
    %34 = vector.shape_cast %33 : vector<1x1x8x28xf32> to vector<8x28xf32>
    %35 = vector.extract_strided_slice %0 {offsets = [2, 4, 0, 0], sizes = [1, 1, 8, 28], strides = [1, 1, 1, 1]} : vector<4x7x8x28xf32> to vector<1x1x8x28xf32>
    %36 = vector.shape_cast %35 : vector<1x1x8x28xf32> to vector<8x28xf32>
    %37 = vector.extract_strided_slice %0 {offsets = [2, 5, 0, 0], sizes = [1, 1, 8, 28], strides = [1, 1, 1, 1]} : vector<4x7x8x28xf32> to vector<1x1x8x28xf32>
    %38 = vector.shape_cast %37 : vector<1x1x8x28xf32> to vector<8x28xf32>
    %39 = tpu.concatenate %28, %30, %32, %34, %36, %38 in 0 : vector<8x28xf32>, vector<8x28xf32>, vector<8x28xf32>, vector<8x28xf32>, vector<8x28xf32>, vector<8x28xf32> -> vector<48x28xf32>
    %40 = vector.extract_strided_slice %0 {offsets = [3, 0, 0, 0], sizes = [1, 1, 8, 28], strides = [1, 1, 1, 1]} : vector<4x7x8x28xf32> to vector<1x1x8x28xf32>
    %41 = vector.shape_cast %40 : vector<1x1x8x28xf32> to vector<8x28xf32>
    %42 = vector.extract_strided_slice %0 {offsets = [3, 1, 0, 0], sizes = [1, 1, 8, 28], strides = [1, 1, 1, 1]} : vector<4x7x8x28xf32> to vector<1x1x8x28xf32>
    %43 = vector.shape_cast %42 : vector<1x1x8x28xf32> to vector<8x28xf32>
    %44 = vector.extract_strided_slice %0 {offsets = [3, 2, 0, 0], sizes = [1, 1, 8, 28], strides = [1, 1, 1, 1]} : vector<4x7x8x28xf32> to vector<1x1x8x28xf32>
    %45 = vector.shape_cast %44 : vector<1x1x8x28xf32> to vector<8x28xf32>
    %46 = vector.extract_strided_slice %0 {offsets = [3, 3, 0, 0], sizes = [1, 1, 8, 28], strides = [1, 1, 1, 1]} : vector<4x7x8x28xf32> to vector<1x1x8x28xf32>
    %47 = vector.shape_cast %46 : vector<1x1x8x28xf32> to vector<8x28xf32>
    %48 = vector.extract_strided_slice %0 {offsets = [3, 4, 0, 0], sizes = [1, 1, 8, 28], strides = [1, 1, 1, 1]} : vector<4x7x8x28xf32> to vector<1x1x8x28xf32>
    %49 = vector.shape_cast %48 : vector<1x1x8x28xf32> to vector<8x28xf32>
    %50 = vector.extract_strided_slice %0 {offsets = [3, 5, 0, 0], sizes = [1, 1, 8, 28], strides = [1, 1, 1, 1]} : vector<4x7x8x28xf32> to vector<1x1x8x28xf32>
    %51 = vector.shape_cast %50 : vector<1x1x8x28xf32> to vector<8x28xf32>
    %52 = tpu.concatenate %41, %43, %45, %47, %49, %51 in 0 : vector<8x28xf32>, vector<8x28xf32>, vector<8x28xf32>, vector<8x28xf32>, vector<8x28xf32>, vector<8x28xf32> -> vector<48x28xf32>
    %53 = vector.extract_strided_slice %0 {offsets = [0, 1, 0, 0], sizes = [1, 1, 8, 28], strides = [1, 1, 1, 1]} : vector<4x7x8x28xf32> to vector<1x1x8x28xf32>
    %54 = vector.shape_cast %53 : vector<1x1x8x28xf32> to vector<8x28xf32>
    %55 = vector.extract_strided_slice %0 {offsets = [0, 2, 0, 0], sizes = [1, 1, 8, 28], strides = [1, 1, 1, 1]} : vector<4x7x8x28xf32> to vector<1x1x8x28xf32>
    %56 = vector.shape_cast %55 : vector<1x1x8x28xf32> to vector<8x28xf32>
    %57 = vector.extract_strided_slice %0 {offsets = [0, 3, 0, 0], sizes = [1, 1, 8, 28], strides = [1, 1, 1, 1]} : vector<4x7x8x28xf32> to vector<1x1x8x28xf32>
    %58 = vector.shape_cast %57 : vector<1x1x8x28xf32> to vector<8x28xf32>
    %59 = vector.extract_strided_slice %0 {offsets = [0, 4, 0, 0], sizes = [1, 1, 8, 28], strides = [1, 1, 1, 1]} : vector<4x7x8x28xf32> to vector<1x1x8x28xf32>
    %60 = vector.shape_cast %59 : vector<1x1x8x28xf32> to vector<8x28xf32>
    %61 = vector.extract_strided_slice %0 {offsets = [0, 5, 0, 0], sizes = [1, 1, 8, 28], strides = [1, 1, 1, 1]} : vector<4x7x8x28xf32> to vector<1x1x8x28xf32>
    %62 = vector.shape_cast %61 : vector<1x1x8x28xf32> to vector<8x28xf32>
    %63 = vector.extract_strided_slice %0 {offsets = [0, 6, 0, 0], sizes = [1, 1, 8, 28], strides = [1, 1, 1, 1]} : vector<4x7x8x28xf32> to vector<1x1x8x28xf32>
    %64 = vector.shape_cast %63 : vector<1x1x8x28xf32> to vector<8x28xf32>
    %65 = tpu.concatenate %54, %56, %58, %60, %62, %64 in 0 : vector<8x28xf32>, vector<8x28xf32>, vector<8x28xf32>, vector<8x28xf32>, vector<8x28xf32>, vector<8x28xf32> -> vector<48x28xf32>
    %66 = vector.extract_strided_slice %0 {offsets = [1, 1, 0, 0], sizes = [1, 1, 8, 28], strides = [1, 1, 1, 1]} : vector<4x7x8x28xf32> to vector<1x1x8x28xf32>
    %67 = vector.shape_cast %66 : vector<1x1x8x28xf32> to vector<8x28xf32>
    %68 = vector.extract_strided_slice %0 {offsets = [1, 2, 0, 0], sizes = [1, 1, 8, 28], strides = [1, 1, 1, 1]} : vector<4x7x8x28xf32> to vector<1x1x8x28xf32>
    %69 = vector.shape_cast %68 : vector<1x1x8x28xf32> to vector<8x28xf32>
    %70 = vector.extract_strided_slice %0 {offsets = [1, 3, 0, 0], sizes = [1, 1, 8, 28], strides = [1, 1, 1, 1]} : vector<4x7x8x28xf32> to vector<1x1x8x28xf32>
    %71 = vector.shape_cast %70 : vector<1x1x8x28xf32> to vector<8x28xf32>
    %72 = vector.extract_strided_slice %0 {offsets = [1, 4, 0, 0], sizes = [1, 1, 8, 28], strides = [1, 1, 1, 1]} : vector<4x7x8x28xf32> to vector<1x1x8x28xf32>
    %73 = vector.shape_cast %72 : vector<1x1x8x28xf32> to vector<8x28xf32>
    %74 = vector.extract_strided_slice %0 {offsets = [1, 5, 0, 0], sizes = [1, 1, 8, 28], strides = [1, 1, 1, 1]} : vector<4x7x8x28xf32> to vector<1x1x8x28xf32>
    %75 = vector.shape_cast %74 : vector<1x1x8x28xf32> to vector<8x28xf32>
    %76 = vector.extract_strided_slice %0 {offsets = [1, 6, 0, 0], sizes = [1, 1, 8, 28], strides = [1, 1, 1, 1]} : vector<4x7x8x28xf32> to vector<1x1x8x28xf32>
    %77 = vector.shape_cast %76 : vector<1x1x8x28xf32> to vector<8x28xf32>
    %78 = tpu.concatenate %67, %69, %71, %73, %75, %77 in 0 : vector<8x28xf32>, vector<8x28xf32>, vector<8x28xf32>, vector<8x28xf32>, vector<8x28xf32>, vector<8x28xf32> -> vector<48x28xf32>
    %79 = vector.extract_strided_slice %0 {offsets = [2, 1, 0, 0], sizes = [1, 1, 8, 28], strides = [1, 1, 1, 1]} : vector<4x7x8x28xf32> to vector<1x1x8x28xf32>
    %80 = vector.shape_cast %79 : vector<1x1x8x28xf32> to vector<8x28xf32>
    %81 = vector.extract_strided_slice %0 {offsets = [2, 2, 0, 0], sizes = [1, 1, 8, 28], strides = [1, 1, 1, 1]} : vector<4x7x8x28xf32> to vector<1x1x8x28xf32>
    %82 = vector.shape_cast %81 : vector<1x1x8x28xf32> to vector<8x28xf32>
    %83 = vector.extract_strided_slice %0 {offsets = [2, 3, 0, 0], sizes = [1, 1, 8, 28], strides = [1, 1, 1, 1]} : vector<4x7x8x28xf32> to vector<1x1x8x28xf32>
    %84 = vector.shape_cast %83 : vector<1x1x8x28xf32> to vector<8x28xf32>
    %85 = vector.extract_strided_slice %0 {offsets = [2, 4, 0, 0], sizes = [1, 1, 8, 28], strides = [1, 1, 1, 1]} : vector<4x7x8x28xf32> to vector<1x1x8x28xf32>
    %86 = vector.shape_cast %85 : vector<1x1x8x28xf32> to vector<8x28xf32>
    %87 = vector.extract_strided_slice %0 {offsets = [2, 5, 0, 0], sizes = [1, 1, 8, 28], strides = [1, 1, 1, 1]} : vector<4x7x8x28xf32> to vector<1x1x8x28xf32>
    %88 = vector.shape_cast %87 : vector<1x1x8x28xf32> to vector<8x28xf32>
    %89 = vector.extract_strided_slice %0 {offsets = [2, 6, 0, 0], sizes = [1, 1, 8, 28], strides = [1, 1, 1, 1]} : vector<4x7x8x28xf32> to vector<1x1x8x28xf32>
    %90 = vector.shape_cast %89 : vector<1x1x8x28xf32> to vector<8x28xf32>
    %91 = tpu.concatenate %80, %82, %84, %86, %88, %90 in 0 : vector<8x28xf32>, vector<8x28xf32>, vector<8x28xf32>, vector<8x28xf32>, vector<8x28xf32>, vector<8x28xf32> -> vector<48x28xf32>
    %92 = vector.extract_strided_slice %0 {offsets = [3, 1, 0, 0], sizes = [1, 1, 8, 28], strides = [1, 1, 1, 1]} : vector<4x7x8x28xf32> to vector<1x1x8x28xf32>
    %93 = vector.shape_cast %92 : vector<1x1x8x28xf32> to vector<8x28xf32>
    %94 = vector.extract_strided_slice %0 {offsets = [3, 2, 0, 0], sizes = [1, 1, 8, 28], strides = [1, 1, 1, 1]} : vector<4x7x8x28xf32> to vector<1x1x8x28xf32>
    %95 = vector.shape_cast %94 : vector<1x1x8x28xf32> to vector<8x28xf32>
    %96 = vector.extract_strided_slice %0 {offsets = [3, 3, 0, 0], sizes = [1, 1, 8, 28], strides = [1, 1, 1, 1]} : vector<4x7x8x28xf32> to vector<1x1x8x28xf32>
    %97 = vector.shape_cast %96 : vector<1x1x8x28xf32> to vector<8x28xf32>
    %98 = vector.extract_strided_slice %0 {offsets = [3, 4, 0, 0], sizes = [1, 1, 8, 28], strides = [1, 1, 1, 1]} : vector<4x7x8x28xf32> to vector<1x1x8x28xf32>
    %99 = vector.shape_cast %98 : vector<1x1x8x28xf32> to vector<8x28xf32>
    %100 = vector.extract_strided_slice %0 {offsets = [3, 5, 0, 0], sizes = [1, 1, 8, 28], strides = [1, 1, 1, 1]} : vector<4x7x8x28xf32> to vector<1x1x8x28xf32>
    %101 = vector.shape_cast %100 : vector<1x1x8x28xf32> to vector<8x28xf32>
    %102 = vector.extract_strided_slice %0 {offsets = [3, 6, 0, 0], sizes = [1, 1, 8, 28], strides = [1, 1, 1, 1]} : vector<4x7x8x28xf32> to vector<1x1x8x28xf32>
    %103 = vector.shape_cast %102 : vector<1x1x8x28xf32> to vector<8x28xf32>
    %104 = tpu.concatenate %93, %95, %97, %99, %101, %103 in 0 : vector<8x28xf32>, vector<8x28xf32>, vector<8x28xf32>, vector<8x28xf32>, vector<8x28xf32>, vector<8x28xf32> -> vector<48x28xf32>
    %105 = tpu.concatenate %13, %26, %39, %52 in 0 : vector<48x28xf32>, vector<48x28xf32>, vector<48x28xf32>, vector<48x28xf32> -> vector<192x28xf32>
    %106 = arith.truncf %105 : vector<192x28xf32> to vector<192x28xbf16>
    %107 = tpu.concatenate %26, %39, %52, %65 in 0 : vector<48x28xf32>, vector<48x28xf32>, vector<48x28xf32>, vector<48x28xf32> -> vector<192x28xf32>
    %108 = arith.truncf %107 : vector<192x28xf32> to vector<192x28xbf16>
    %109 = tpu.concatenate %39, %52, %65, %78 in 0 : vector<48x28xf32>, vector<48x28xf32>, vector<48x28xf32>, vector<48x28xf32> -> vector<192x28xf32>
    %110 = arith.truncf %109 : vector<192x28xf32> to vector<192x28xbf16>
    %111 = tpu.concatenate %52, %65, %78, %91 in 0 : vector<48x28xf32>, vector<48x28xf32>, vector<48x28xf32>, vector<48x28xf32> -> vector<192x28xf32>
    %112 = arith.truncf %111 : vector<192x28xf32> to vector<192x28xbf16>
    %113 = tpu.concatenate %65, %78, %91, %104 in 0 : vector<48x28xf32>, vector<48x28xf32>, vector<48x28xf32>, vector<48x28xf32> -> vector<192x28xf32>
    %114 = arith.truncf %113 : vector<192x28xf32> to vector<192x28xbf16>
    %c0_3 = arith.constant 0 : index
    %c0_4 = arith.constant 0 : index
    %c0_5 = arith.constant 0 : index
    %c0_6 = arith.constant 0 : index
    %115 = vector.load %arg2[%c0_3, %c0_4, %c0_5, %c0_6] : memref<5x2x28x192xbf16, #tpu.memory_space<vmem>>, vector<1x1x28x192xbf16>
    %116 = vector.shape_cast %115 : vector<1x1x28x192xbf16> to vector<28x192xbf16>
    %cst = arith.constant dense<0.000000e+00> : vector<192x192xf32>
    %117 = tpu.matmul %106, %116, %cst {dimension_numbers = #tpu.dot_dimension_numbers<[1], [0], [0], [1], [0, 0, 1, 1], [], []>} : vector<192x28xbf16>, vector<28x192xbf16>, vector<192x192xf32> -> vector<192x192xf32>
    %c1 = arith.constant 1 : index
    %c0_7 = arith.constant 0 : index
    %c0_8 = arith.constant 0 : index
    %c0_9 = arith.constant 0 : index
    %118 = vector.load %arg2[%c1, %c0_7, %c0_8, %c0_9] : memref<5x2x28x192xbf16, #tpu.memory_space<vmem>>, vector<1x1x28x192xbf16>
    %119 = vector.shape_cast %118 : vector<1x1x28x192xbf16> to vector<28x192xbf16>
    %cst_10 = arith.constant dense<0.000000e+00> : vector<192x192xf32>
    %120 = tpu.matmul %108, %119, %cst_10 {dimension_numbers = #tpu.dot_dimension_numbers<[1], [0], [0], [1], [0, 0, 1, 1], [], []>} : vector<192x28xbf16>, vector<28x192xbf16>, vector<192x192xf32> -> vector<192x192xf32>
    %121 = arith.addf %117, %120 : vector<192x192xf32>
    %c2 = arith.constant 2 : index
    %c0_11 = arith.constant 0 : index
    %c0_12 = arith.constant 0 : index
    %c0_13 = arith.constant 0 : index
    %122 = vector.load %arg2[%c2, %c0_11, %c0_12, %c0_13] : memref<5x2x28x192xbf16, #tpu.memory_space<vmem>>, vector<1x1x28x192xbf16>
    %123 = vector.shape_cast %122 : vector<1x1x28x192xbf16> to vector<28x192xbf16>
    %cst_14 = arith.constant dense<0.000000e+00> : vector<192x192xf32>
    %124 = tpu.matmul %110, %123, %cst_14 {dimension_numbers = #tpu.dot_dimension_numbers<[1], [0], [0], [1], [0, 0, 1, 1], [], []>} : vector<192x28xbf16>, vector<28x192xbf16>, vector<192x192xf32> -> vector<192x192xf32>
    %125 = arith.addf %121, %124 : vector<192x192xf32>
    %c3 = arith.constant 3 : index
    %c0_15 = arith.constant 0 : index
    %c0_16 = arith.constant 0 : index
    %c0_17 = arith.constant 0 : index
    %126 = vector.load %arg2[%c3, %c0_15, %c0_16, %c0_17] : memref<5x2x28x192xbf16, #tpu.memory_space<vmem>>, vector<1x1x28x192xbf16>
    %127 = vector.shape_cast %126 : vector<1x1x28x192xbf16> to vector<28x192xbf16>
    %cst_18 = arith.constant dense<0.000000e+00> : vector<192x192xf32>
    %128 = tpu.matmul %112, %127, %cst_18 {dimension_numbers = #tpu.dot_dimension_numbers<[1], [0], [0], [1], [0, 0, 1, 1], [], []>} : vector<192x28xbf16>, vector<28x192xbf16>, vector<192x192xf32> -> vector<192x192xf32>
    %129 = arith.addf %125, %128 : vector<192x192xf32>
    %c4 = arith.constant 4 : index
    %c0_19 = arith.constant 0 : index
    %c0_20 = arith.constant 0 : index
    %c0_21 = arith.constant 0 : index
    %130 = vector.load %arg2[%c4, %c0_19, %c0_20, %c0_21] : memref<5x2x28x192xbf16, #tpu.memory_space<vmem>>, vector<1x1x28x192xbf16>
    %131 = vector.shape_cast %130 : vector<1x1x28x192xbf16> to vector<28x192xbf16>
    %cst_22 = arith.constant dense<0.000000e+00> : vector<192x192xf32>
    %132 = tpu.matmul %114, %131, %cst_22 {dimension_numbers = #tpu.dot_dimension_numbers<[1], [0], [0], [1], [0, 0, 1, 1], [], []>} : vector<192x28xbf16>, vector<28x192xbf16>, vector<192x192xf32> -> vector<192x192xf32>
    %133 = arith.addf %129, %132 : vector<192x192xf32>
    %c0_23 = arith.constant 0 : index
    %c1_24 = arith.constant 1 : index
    %c0_25 = arith.constant 0 : index
    %c0_26 = arith.constant 0 : index
    %134 = vector.load %arg2[%c0_23, %c1_24, %c0_25, %c0_26] : memref<5x2x28x192xbf16, #tpu.memory_space<vmem>>, vector<1x1x28x192xbf16>
    %135 = vector.shape_cast %134 : vector<1x1x28x192xbf16> to vector<28x192xbf16>
    %cst_27 = arith.constant dense<0.000000e+00> : vector<192x192xf32>
    %136 = tpu.matmul %106, %135, %cst_27 {dimension_numbers = #tpu.dot_dimension_numbers<[1], [0], [0], [1], [0, 0, 1, 1], [], []>} : vector<192x28xbf16>, vector<28x192xbf16>, vector<192x192xf32> -> vector<192x192xf32>
    %c1_28 = arith.constant 1 : index
    %c1_29 = arith.constant 1 : index
    %c0_30 = arith.constant 0 : index
    %c0_31 = arith.constant 0 : index
    %137 = vector.load %arg2[%c1_28, %c1_29, %c0_30, %c0_31] : memref<5x2x28x192xbf16, #tpu.memory_space<vmem>>, vector<1x1x28x192xbf16>
    %138 = vector.shape_cast %137 : vector<1x1x28x192xbf16> to vector<28x192xbf16>
    %cst_32 = arith.constant dense<0.000000e+00> : vector<192x192xf32>
    %139 = tpu.matmul %108, %138, %cst_32 {dimension_numbers = #tpu.dot_dimension_numbers<[1], [0], [0], [1], [0, 0, 1, 1], [], []>} : vector<192x28xbf16>, vector<28x192xbf16>, vector<192x192xf32> -> vector<192x192xf32>
    %140 = arith.addf %136, %139 : vector<192x192xf32>
    %c2_33 = arith.constant 2 : index
    %c1_34 = arith.constant 1 : index
    %c0_35 = arith.constant 0 : index
    %c0_36 = arith.constant 0 : index
    %141 = vector.load %arg2[%c2_33, %c1_34, %c0_35, %c0_36] : memref<5x2x28x192xbf16, #tpu.memory_space<vmem>>, vector<1x1x28x192xbf16>
    %142 = vector.shape_cast %141 : vector<1x1x28x192xbf16> to vector<28x192xbf16>
    %cst_37 = arith.constant dense<0.000000e+00> : vector<192x192xf32>
    %143 = tpu.matmul %110, %142, %cst_37 {dimension_numbers = #tpu.dot_dimension_numbers<[1], [0], [0], [1], [0, 0, 1, 1], [], []>} : vector<192x28xbf16>, vector<28x192xbf16>, vector<192x192xf32> -> vector<192x192xf32>
    %144 = arith.addf %140, %143 : vector<192x192xf32>
    %c3_38 = arith.constant 3 : index
    %c1_39 = arith.constant 1 : index
    %c0_40 = arith.constant 0 : index
    %c0_41 = arith.constant 0 : index
    %145 = vector.load %arg2[%c3_38, %c1_39, %c0_40, %c0_41] : memref<5x2x28x192xbf16, #tpu.memory_space<vmem>>, vector<1x1x28x192xbf16>
    %146 = vector.shape_cast %145 : vector<1x1x28x192xbf16> to vector<28x192xbf16>
    %cst_42 = arith.constant dense<0.000000e+00> : vector<192x192xf32>
    %147 = tpu.matmul %112, %146, %cst_42 {dimension_numbers = #tpu.dot_dimension_numbers<[1], [0], [0], [1], [0, 0, 1, 1], [], []>} : vector<192x28xbf16>, vector<28x192xbf16>, vector<192x192xf32> -> vector<192x192xf32>
    %148 = arith.addf %144, %147 : vector<192x192xf32>
    %c4_43 = arith.constant 4 : index
    %c1_44 = arith.constant 1 : index
    %c0_45 = arith.constant 0 : index
    %c0_46 = arith.constant 0 : index
    %149 = vector.load %arg2[%c4_43, %c1_44, %c0_45, %c0_46] : memref<5x2x28x192xbf16, #tpu.memory_space<vmem>>, vector<1x1x28x192xbf16>
    %150 = vector.shape_cast %149 : vector<1x1x28x192xbf16> to vector<28x192xbf16>
    %cst_47 = arith.constant dense<0.000000e+00> : vector<192x192xf32>
    %151 = tpu.matmul %114, %150, %cst_47 {dimension_numbers = #tpu.dot_dimension_numbers<[1], [0], [0], [1], [0, 0, 1, 1], [], []>} : vector<192x28xbf16>, vector<28x192xbf16>, vector<192x192xf32> -> vector<192x192xf32>
    %152 = arith.addf %148, %151 : vector<192x192xf32>
    %153 = arith.maximumf %133, %152 : vector<192x192xf32>
    %c0_48 = arith.constant 0 : index
    %c0_49 = arith.constant 0 : index
    %154 = vector.load %arg3[%c0_48, %c0_49] : memref<1x192xf32, #tpu.memory_space<vmem>>, vector<1x192xf32>
    %155 = vector.extract_strided_slice %153 {offsets = [0, 0], sizes = [48, 192], strides = [1, 1]} : vector<192x192xf32> to vector<48x192xf32>
    %156 = vector.extract_strided_slice %153 {offsets = [48, 0], sizes = [48, 192], strides = [1, 1]} : vector<192x192xf32> to vector<48x192xf32>
    %157 = arith.maximumf %155, %156 : vector<48x192xf32>
    %158 = vector.broadcast %154 : vector<1x192xf32> to vector<48x192xf32>
    %159 = arith.addf %157, %158 : vector<48x192xf32>
    %cst_50 = arith.constant 0.000000e+00 : f32
    %160 = vector.broadcast %cst_50 : f32 to vector<48x192xf32>
    %161 = arith.maximumf %159, %160 : vector<48x192xf32>
    %162 = vector.extract_strided_slice %153 {offsets = [96, 0], sizes = [48, 192], strides = [1, 1]} : vector<192x192xf32> to vector<48x192xf32>
    %163 = vector.extract_strided_slice %153 {offsets = [144, 0], sizes = [48, 192], strides = [1, 1]} : vector<192x192xf32> to vector<48x192xf32>
    %164 = arith.maximumf %162, %163 : vector<48x192xf32>
    %165 = vector.broadcast %154 : vector<1x192xf32> to vector<48x192xf32>
    %166 = arith.addf %164, %165 : vector<48x192xf32>
    %cst_51 = arith.constant 0.000000e+00 : f32
    %167 = vector.broadcast %cst_51 : f32 to vector<48x192xf32>
    %168 = arith.maximumf %166, %167 : vector<48x192xf32>
    %169 = vector.extract_strided_slice %161 {offsets = [0, 0], sizes = [8, 192], strides = [1, 1]} : vector<48x192xf32> to vector<8x192xf32>
    %170 = vector.extract_strided_slice %168 {offsets = [0, 0], sizes = [8, 192], strides = [1, 1]} : vector<48x192xf32> to vector<8x192xf32>
    %171 = vector.extract_strided_slice %161 {offsets = [8, 0], sizes = [8, 192], strides = [1, 1]} : vector<48x192xf32> to vector<8x192xf32>
    %172 = vector.extract_strided_slice %168 {offsets = [8, 0], sizes = [8, 192], strides = [1, 1]} : vector<48x192xf32> to vector<8x192xf32>
    %173 = vector.extract_strided_slice %161 {offsets = [16, 0], sizes = [8, 192], strides = [1, 1]} : vector<48x192xf32> to vector<8x192xf32>
    %174 = vector.extract_strided_slice %168 {offsets = [16, 0], sizes = [8, 192], strides = [1, 1]} : vector<48x192xf32> to vector<8x192xf32>
    %175 = vector.extract_strided_slice %161 {offsets = [24, 0], sizes = [8, 192], strides = [1, 1]} : vector<48x192xf32> to vector<8x192xf32>
    %176 = vector.extract_strided_slice %168 {offsets = [24, 0], sizes = [8, 192], strides = [1, 1]} : vector<48x192xf32> to vector<8x192xf32>
    %177 = tpu.concatenate %169, %170, %171, %172, %173, %174, %175, %176 in 0 : vector<8x192xf32>, vector<8x192xf32>, vector<8x192xf32>, vector<8x192xf32>, vector<8x192xf32>, vector<8x192xf32>, vector<8x192xf32>, vector<8x192xf32> -> vector<64x192xf32>
    %178 = arith.truncf %177 : vector<64x192xf32> to vector<64x192xbf16>
    %179 = vector.extract_strided_slice %168 {offsets = [0, 0], sizes = [8, 192], strides = [1, 1]} : vector<48x192xf32> to vector<8x192xf32>
    %180 = vector.extract_strided_slice %161 {offsets = [8, 0], sizes = [8, 192], strides = [1, 1]} : vector<48x192xf32> to vector<8x192xf32>
    %181 = vector.extract_strided_slice %168 {offsets = [8, 0], sizes = [8, 192], strides = [1, 1]} : vector<48x192xf32> to vector<8x192xf32>
    %182 = vector.extract_strided_slice %161 {offsets = [16, 0], sizes = [8, 192], strides = [1, 1]} : vector<48x192xf32> to vector<8x192xf32>
    %183 = vector.extract_strided_slice %168 {offsets = [16, 0], sizes = [8, 192], strides = [1, 1]} : vector<48x192xf32> to vector<8x192xf32>
    %184 = vector.extract_strided_slice %161 {offsets = [24, 0], sizes = [8, 192], strides = [1, 1]} : vector<48x192xf32> to vector<8x192xf32>
    %185 = vector.extract_strided_slice %168 {offsets = [24, 0], sizes = [8, 192], strides = [1, 1]} : vector<48x192xf32> to vector<8x192xf32>
    %186 = vector.extract_strided_slice %161 {offsets = [32, 0], sizes = [8, 192], strides = [1, 1]} : vector<48x192xf32> to vector<8x192xf32>
    %187 = tpu.concatenate %179, %180, %181, %182, %183, %184, %185, %186 in 0 : vector<8x192xf32>, vector<8x192xf32>, vector<8x192xf32>, vector<8x192xf32>, vector<8x192xf32>, vector<8x192xf32>, vector<8x192xf32>, vector<8x192xf32> -> vector<64x192xf32>
    %188 = arith.truncf %187 : vector<64x192xf32> to vector<64x192xbf16>
    %189 = vector.extract_strided_slice %161 {offsets = [8, 0], sizes = [8, 192], strides = [1, 1]} : vector<48x192xf32> to vector<8x192xf32>
    %190 = vector.extract_strided_slice %168 {offsets = [8, 0], sizes = [8, 192], strides = [1, 1]} : vector<48x192xf32> to vector<8x192xf32>
    %191 = vector.extract_strided_slice %161 {offsets = [16, 0], sizes = [8, 192], strides = [1, 1]} : vector<48x192xf32> to vector<8x192xf32>
    %192 = vector.extract_strided_slice %168 {offsets = [16, 0], sizes = [8, 192], strides = [1, 1]} : vector<48x192xf32> to vector<8x192xf32>
    %193 = vector.extract_strided_slice %161 {offsets = [24, 0], sizes = [8, 192], strides = [1, 1]} : vector<48x192xf32> to vector<8x192xf32>
    %194 = vector.extract_strided_slice %168 {offsets = [24, 0], sizes = [8, 192], strides = [1, 1]} : vector<48x192xf32> to vector<8x192xf32>
    %195 = vector.extract_strided_slice %161 {offsets = [32, 0], sizes = [8, 192], strides = [1, 1]} : vector<48x192xf32> to vector<8x192xf32>
    %196 = vector.extract_strided_slice %168 {offsets = [32, 0], sizes = [8, 192], strides = [1, 1]} : vector<48x192xf32> to vector<8x192xf32>
    %197 = tpu.concatenate %189, %190, %191, %192, %193, %194, %195, %196 in 0 : vector<8x192xf32>, vector<8x192xf32>, vector<8x192xf32>, vector<8x192xf32>, vector<8x192xf32>, vector<8x192xf32>, vector<8x192xf32>, vector<8x192xf32> -> vector<64x192xf32>
    %198 = arith.truncf %197 : vector<64x192xf32> to vector<64x192xbf16>
    %199 = vector.extract_strided_slice %168 {offsets = [8, 0], sizes = [8, 192], strides = [1, 1]} : vector<48x192xf32> to vector<8x192xf32>
    %200 = vector.extract_strided_slice %161 {offsets = [16, 0], sizes = [8, 192], strides = [1, 1]} : vector<48x192xf32> to vector<8x192xf32>
    %201 = vector.extract_strided_slice %168 {offsets = [16, 0], sizes = [8, 192], strides = [1, 1]} : vector<48x192xf32> to vector<8x192xf32>
    %202 = vector.extract_strided_slice %161 {offsets = [24, 0], sizes = [8, 192], strides = [1, 1]} : vector<48x192xf32> to vector<8x192xf32>
    %203 = vector.extract_strided_slice %168 {offsets = [24, 0], sizes = [8, 192], strides = [1, 1]} : vector<48x192xf32> to vector<8x192xf32>
    %204 = vector.extract_strided_slice %161 {offsets = [32, 0], sizes = [8, 192], strides = [1, 1]} : vector<48x192xf32> to vector<8x192xf32>
    %205 = vector.extract_strided_slice %168 {offsets = [32, 0], sizes = [8, 192], strides = [1, 1]} : vector<48x192xf32> to vector<8x192xf32>
    %206 = vector.extract_strided_slice %161 {offsets = [40, 0], sizes = [8, 192], strides = [1, 1]} : vector<48x192xf32> to vector<8x192xf32>
    %207 = tpu.concatenate %199, %200, %201, %202, %203, %204, %205, %206 in 0 : vector<8x192xf32>, vector<8x192xf32>, vector<8x192xf32>, vector<8x192xf32>, vector<8x192xf32>, vector<8x192xf32>, vector<8x192xf32>, vector<8x192xf32> -> vector<64x192xf32>
    %208 = arith.truncf %207 : vector<64x192xf32> to vector<64x192xbf16>
    %209 = vector.extract_strided_slice %161 {offsets = [16, 0], sizes = [8, 192], strides = [1, 1]} : vector<48x192xf32> to vector<8x192xf32>
    %210 = vector.extract_strided_slice %168 {offsets = [16, 0], sizes = [8, 192], strides = [1, 1]} : vector<48x192xf32> to vector<8x192xf32>
    %211 = vector.extract_strided_slice %161 {offsets = [24, 0], sizes = [8, 192], strides = [1, 1]} : vector<48x192xf32> to vector<8x192xf32>
    %212 = vector.extract_strided_slice %168 {offsets = [24, 0], sizes = [8, 192], strides = [1, 1]} : vector<48x192xf32> to vector<8x192xf32>
    %213 = vector.extract_strided_slice %161 {offsets = [32, 0], sizes = [8, 192], strides = [1, 1]} : vector<48x192xf32> to vector<8x192xf32>
    %214 = vector.extract_strided_slice %168 {offsets = [32, 0], sizes = [8, 192], strides = [1, 1]} : vector<48x192xf32> to vector<8x192xf32>
    %215 = vector.extract_strided_slice %161 {offsets = [40, 0], sizes = [8, 192], strides = [1, 1]} : vector<48x192xf32> to vector<8x192xf32>
    %216 = vector.extract_strided_slice %168 {offsets = [40, 0], sizes = [8, 192], strides = [1, 1]} : vector<48x192xf32> to vector<8x192xf32>
    %217 = tpu.concatenate %209, %210, %211, %212, %213, %214, %215, %216 in 0 : vector<8x192xf32>, vector<8x192xf32>, vector<8x192xf32>, vector<8x192xf32>, vector<8x192xf32>, vector<8x192xf32>, vector<8x192xf32>, vector<8x192xf32> -> vector<64x192xf32>
    %218 = arith.truncf %217 : vector<64x192xf32> to vector<64x192xbf16>
    %c0_52 = arith.constant 0 : index
    %c0_53 = arith.constant 0 : index
    %c0_54 = arith.constant 0 : index
    %c0_55 = arith.constant 0 : index
    %219 = vector.load %arg4[%c0_52, %c0_53, %c0_54, %c0_55] : memref<5x2x192x128xbf16, #tpu.memory_space<vmem>>, vector<1x1x192x128xbf16>
    %220 = vector.shape_cast %219 : vector<1x1x192x128xbf16> to vector<192x128xbf16>
    %cst_56 = arith.constant dense<0.000000e+00> : vector<64x128xf32>
    %221 = tpu.matmul %178, %220, %cst_56 {dimension_numbers = #tpu.dot_dimension_numbers<[1], [0], [0], [1], [0, 0, 1, 1], [], []>} : vector<64x192xbf16>, vector<192x128xbf16>, vector<64x128xf32> -> vector<64x128xf32>
    %c1_57 = arith.constant 1 : index
    %c0_58 = arith.constant 0 : index
    %c0_59 = arith.constant 0 : index
    %c0_60 = arith.constant 0 : index
    %222 = vector.load %arg4[%c1_57, %c0_58, %c0_59, %c0_60] : memref<5x2x192x128xbf16, #tpu.memory_space<vmem>>, vector<1x1x192x128xbf16>
    %223 = vector.shape_cast %222 : vector<1x1x192x128xbf16> to vector<192x128xbf16>
    %cst_61 = arith.constant dense<0.000000e+00> : vector<64x128xf32>
    %224 = tpu.matmul %188, %223, %cst_61 {dimension_numbers = #tpu.dot_dimension_numbers<[1], [0], [0], [1], [0, 0, 1, 1], [], []>} : vector<64x192xbf16>, vector<192x128xbf16>, vector<64x128xf32> -> vector<64x128xf32>
    %225 = arith.addf %221, %224 : vector<64x128xf32>
    %c2_62 = arith.constant 2 : index
    %c0_63 = arith.constant 0 : index
    %c0_64 = arith.constant 0 : index
    %c0_65 = arith.constant 0 : index
    %226 = vector.load %arg4[%c2_62, %c0_63, %c0_64, %c0_65] : memref<5x2x192x128xbf16, #tpu.memory_space<vmem>>, vector<1x1x192x128xbf16>
    %227 = vector.shape_cast %226 : vector<1x1x192x128xbf16> to vector<192x128xbf16>
    %cst_66 = arith.constant dense<0.000000e+00> : vector<64x128xf32>
    %228 = tpu.matmul %198, %227, %cst_66 {dimension_numbers = #tpu.dot_dimension_numbers<[1], [0], [0], [1], [0, 0, 1, 1], [], []>} : vector<64x192xbf16>, vector<192x128xbf16>, vector<64x128xf32> -> vector<64x128xf32>
    %229 = arith.addf %225, %228 : vector<64x128xf32>
    %c3_67 = arith.constant 3 : index
    %c0_68 = arith.constant 0 : index
    %c0_69 = arith.constant 0 : index
    %c0_70 = arith.constant 0 : index
    %230 = vector.load %arg4[%c3_67, %c0_68, %c0_69, %c0_70] : memref<5x2x192x128xbf16, #tpu.memory_space<vmem>>, vector<1x1x192x128xbf16>
    %231 = vector.shape_cast %230 : vector<1x1x192x128xbf16> to vector<192x128xbf16>
    %cst_71 = arith.constant dense<0.000000e+00> : vector<64x128xf32>
    %232 = tpu.matmul %208, %231, %cst_71 {dimension_numbers = #tpu.dot_dimension_numbers<[1], [0], [0], [1], [0, 0, 1, 1], [], []>} : vector<64x192xbf16>, vector<192x128xbf16>, vector<64x128xf32> -> vector<64x128xf32>
    %233 = arith.addf %229, %232 : vector<64x128xf32>
    %c4_72 = arith.constant 4 : index
    %c0_73 = arith.constant 0 : index
    %c0_74 = arith.constant 0 : index
    %c0_75 = arith.constant 0 : index
    %234 = vector.load %arg4[%c4_72, %c0_73, %c0_74, %c0_75] : memref<5x2x192x128xbf16, #tpu.memory_space<vmem>>, vector<1x1x192x128xbf16>
    %235 = vector.shape_cast %234 : vector<1x1x192x128xbf16> to vector<192x128xbf16>
    %cst_76 = arith.constant dense<0.000000e+00> : vector<64x128xf32>
    %236 = tpu.matmul %218, %235, %cst_76 {dimension_numbers = #tpu.dot_dimension_numbers<[1], [0], [0], [1], [0, 0, 1, 1], [], []>} : vector<64x192xbf16>, vector<192x128xbf16>, vector<64x128xf32> -> vector<64x128xf32>
    %237 = arith.addf %233, %236 : vector<64x128xf32>
    %c0_77 = arith.constant 0 : index
    %c1_78 = arith.constant 1 : index
    %c0_79 = arith.constant 0 : index
    %c0_80 = arith.constant 0 : index
    %238 = vector.load %arg4[%c0_77, %c1_78, %c0_79, %c0_80] : memref<5x2x192x128xbf16, #tpu.memory_space<vmem>>, vector<1x1x192x128xbf16>
    %239 = vector.shape_cast %238 : vector<1x1x192x128xbf16> to vector<192x128xbf16>
    %cst_81 = arith.constant dense<0.000000e+00> : vector<64x128xf32>
    %240 = tpu.matmul %178, %239, %cst_81 {dimension_numbers = #tpu.dot_dimension_numbers<[1], [0], [0], [1], [0, 0, 1, 1], [], []>} : vector<64x192xbf16>, vector<192x128xbf16>, vector<64x128xf32> -> vector<64x128xf32>
    %c1_82 = arith.constant 1 : index
    %c1_83 = arith.constant 1 : index
    %c0_84 = arith.constant 0 : index
    %c0_85 = arith.constant 0 : index
    %241 = vector.load %arg4[%c1_82, %c1_83, %c0_84, %c0_85] : memref<5x2x192x128xbf16, #tpu.memory_space<vmem>>, vector<1x1x192x128xbf16>
    %242 = vector.shape_cast %241 : vector<1x1x192x128xbf16> to vector<192x128xbf16>
    %cst_86 = arith.constant dense<0.000000e+00> : vector<64x128xf32>
    %243 = tpu.matmul %188, %242, %cst_86 {dimension_numbers = #tpu.dot_dimension_numbers<[1], [0], [0], [1], [0, 0, 1, 1], [], []>} : vector<64x192xbf16>, vector<192x128xbf16>, vector<64x128xf32> -> vector<64x128xf32>
    %244 = arith.addf %240, %243 : vector<64x128xf32>
    %c2_87 = arith.constant 2 : index
    %c1_88 = arith.constant 1 : index
    %c0_89 = arith.constant 0 : index
    %c0_90 = arith.constant 0 : index
    %245 = vector.load %arg4[%c2_87, %c1_88, %c0_89, %c0_90] : memref<5x2x192x128xbf16, #tpu.memory_space<vmem>>, vector<1x1x192x128xbf16>
    %246 = vector.shape_cast %245 : vector<1x1x192x128xbf16> to vector<192x128xbf16>
    %cst_91 = arith.constant dense<0.000000e+00> : vector<64x128xf32>
    %247 = tpu.matmul %198, %246, %cst_91 {dimension_numbers = #tpu.dot_dimension_numbers<[1], [0], [0], [1], [0, 0, 1, 1], [], []>} : vector<64x192xbf16>, vector<192x128xbf16>, vector<64x128xf32> -> vector<64x128xf32>
    %248 = arith.addf %244, %247 : vector<64x128xf32>
    %c3_92 = arith.constant 3 : index
    %c1_93 = arith.constant 1 : index
    %c0_94 = arith.constant 0 : index
    %c0_95 = arith.constant 0 : index
    %249 = vector.load %arg4[%c3_92, %c1_93, %c0_94, %c0_95] : memref<5x2x192x128xbf16, #tpu.memory_space<vmem>>, vector<1x1x192x128xbf16>
    %250 = vector.shape_cast %249 : vector<1x1x192x128xbf16> to vector<192x128xbf16>
    %cst_96 = arith.constant dense<0.000000e+00> : vector<64x128xf32>
    %251 = tpu.matmul %208, %250, %cst_96 {dimension_numbers = #tpu.dot_dimension_numbers<[1], [0], [0], [1], [0, 0, 1, 1], [], []>} : vector<64x192xbf16>, vector<192x128xbf16>, vector<64x128xf32> -> vector<64x128xf32>
    %252 = arith.addf %248, %251 : vector<64x128xf32>
    %c4_97 = arith.constant 4 : index
    %c1_98 = arith.constant 1 : index
    %c0_99 = arith.constant 0 : index
    %c0_100 = arith.constant 0 : index
    %253 = vector.load %arg4[%c4_97, %c1_98, %c0_99, %c0_100] : memref<5x2x192x128xbf16, #tpu.memory_space<vmem>>, vector<1x1x192x128xbf16>
    %254 = vector.shape_cast %253 : vector<1x1x192x128xbf16> to vector<192x128xbf16>
    %cst_101 = arith.constant dense<0.000000e+00> : vector<64x128xf32>
    %255 = tpu.matmul %218, %254, %cst_101 {dimension_numbers = #tpu.dot_dimension_numbers<[1], [0], [0], [1], [0, 0, 1, 1], [], []>} : vector<64x192xbf16>, vector<192x128xbf16>, vector<64x128xf32> -> vector<64x128xf32>
    %256 = arith.addf %252, %255 : vector<64x128xf32>
    %257 = arith.maximumf %237, %256 : vector<64x128xf32>
    %c0_102 = arith.constant 0 : index
    %c0_103 = arith.constant 0 : index
    %258 = vector.load %arg5[%c0_102, %c0_103] : memref<1x128xf32, #tpu.memory_space<vmem>>, vector<1x128xf32>
    %259 = vector.extract_strided_slice %257 {offsets = [0, 0], sizes = [8, 128], strides = [1, 1]} : vector<64x128xf32> to vector<8x128xf32>
    %260 = vector.extract_strided_slice %257 {offsets = [8, 0], sizes = [8, 128], strides = [1, 1]} : vector<64x128xf32> to vector<8x128xf32>
    %261 = arith.maximumf %259, %260 : vector<8x128xf32>
    %262 = vector.broadcast %258 : vector<1x128xf32> to vector<8x128xf32>
    %263 = arith.addf %261, %262 : vector<8x128xf32>
    %cst_104 = arith.constant 0.000000e+00 : f32
    %264 = vector.broadcast %cst_104 : f32 to vector<8x128xf32>
    %265 = arith.maximumf %263, %264 : vector<8x128xf32>
    %c0_105 = arith.constant 0 : index
    %c0_106 = arith.constant 0 : index
    %c0_107 = arith.constant 0 : index
    %266 = vector.load %arg9[%c0_105, %c0_106, %c0_107] : memref<4x8x128xf32, #tpu.memory_space<vmem>>, vector<1x8x128xf32>
    %267 = vector.shape_cast %266 : vector<1x8x128xf32> to vector<8x128xf32>
    %268 = vector.shape_cast %265 : vector<8x128xf32> to vector<1x8x128xf32>
    tpu.vector_store %arg9[%c0_105, %c0_106, %c0_107], %268 {strides = array<i32>} : memref<4x8x128xf32, #tpu.memory_space<vmem>>, vector<1x8x128xf32>,
    %269 = arith.truncf %265 : vector<8x128xf32> to vector<8x128xbf16>
    %c0_108 = arith.constant 0 : index
    %c0_109 = arith.constant 0 : index
    %c0_110 = arith.constant 0 : index
    %270 = vector.load %arg6[%c0_108, %c0_109, %c0_110] : memref<4x128x10xbf16, #tpu.memory_space<vmem>>, vector<1x128x10xbf16>
    %271 = vector.shape_cast %270 : vector<1x128x10xbf16> to vector<128x10xbf16>
    %cst_111 = arith.constant dense<0.000000e+00> : vector<8x10xf32>
    %272 = tpu.matmul %269, %271, %cst_111 {dimension_numbers = #tpu.dot_dimension_numbers<[1], [0], [0], [1], [0, 0, 1, 1], [], []>} : vector<8x128xbf16>, vector<128x10xbf16>, vector<8x10xf32> -> vector<8x10xf32>
    %273 = vector.extract_strided_slice %257 {offsets = [16, 0], sizes = [8, 128], strides = [1, 1]} : vector<64x128xf32> to vector<8x128xf32>
    %274 = vector.extract_strided_slice %257 {offsets = [24, 0], sizes = [8, 128], strides = [1, 1]} : vector<64x128xf32> to vector<8x128xf32>
    %275 = arith.maximumf %273, %274 : vector<8x128xf32>
    %276 = vector.broadcast %258 : vector<1x128xf32> to vector<8x128xf32>
    %277 = arith.addf %275, %276 : vector<8x128xf32>
    %cst_112 = arith.constant 0.000000e+00 : f32
    %278 = vector.broadcast %cst_112 : f32 to vector<8x128xf32>
    %279 = arith.maximumf %277, %278 : vector<8x128xf32>
    %c1_113 = arith.constant 1 : index
    %c0_114 = arith.constant 0 : index
    %c0_115 = arith.constant 0 : index
    %280 = vector.load %arg9[%c1_113, %c0_114, %c0_115] : memref<4x8x128xf32, #tpu.memory_space<vmem>>, vector<1x8x128xf32>
    %281 = vector.shape_cast %280 : vector<1x8x128xf32> to vector<8x128xf32>
    %282 = vector.shape_cast %279 : vector<8x128xf32> to vector<1x8x128xf32>
    tpu.vector_store %arg9[%c1_113, %c0_114, %c0_115], %282 {strides = array<i32>} : memref<4x8x128xf32, #tpu.memory_space<vmem>>, vector<1x8x128xf32>,
    %283 = arith.truncf %279 : vector<8x128xf32> to vector<8x128xbf16>
    %c1_116 = arith.constant 1 : index
    %c0_117 = arith.constant 0 : index
    %c0_118 = arith.constant 0 : index
    %284 = vector.load %arg6[%c1_116, %c0_117, %c0_118] : memref<4x128x10xbf16, #tpu.memory_space<vmem>>, vector<1x128x10xbf16>
    %285 = vector.shape_cast %284 : vector<1x128x10xbf16> to vector<128x10xbf16>
    %cst_119 = arith.constant dense<0.000000e+00> : vector<8x10xf32>
    %286 = tpu.matmul %283, %285, %cst_119 {dimension_numbers = #tpu.dot_dimension_numbers<[1], [0], [0], [1], [0, 0, 1, 1], [], []>} : vector<8x128xbf16>, vector<128x10xbf16>, vector<8x10xf32> -> vector<8x10xf32>
    %287 = arith.addf %272, %286 : vector<8x10xf32>
    %288 = vector.extract_strided_slice %257 {offsets = [32, 0], sizes = [8, 128], strides = [1, 1]} : vector<64x128xf32> to vector<8x128xf32>
    %289 = vector.extract_strided_slice %257 {offsets = [40, 0], sizes = [8, 128], strides = [1, 1]} : vector<64x128xf32> to vector<8x128xf32>
    %290 = arith.maximumf %288, %289 : vector<8x128xf32>
    %291 = vector.broadcast %258 : vector<1x128xf32> to vector<8x128xf32>
    %292 = arith.addf %290, %291 : vector<8x128xf32>
    %cst_120 = arith.constant 0.000000e+00 : f32
    %293 = vector.broadcast %cst_120 : f32 to vector<8x128xf32>
    %294 = arith.maximumf %292, %293 : vector<8x128xf32>
    %c2_121 = arith.constant 2 : index
    %c0_122 = arith.constant 0 : index
    %c0_123 = arith.constant 0 : index
    %295 = vector.load %arg9[%c2_121, %c0_122, %c0_123] : memref<4x8x128xf32, #tpu.memory_space<vmem>>, vector<1x8x128xf32>
    %296 = vector.shape_cast %295 : vector<1x8x128xf32> to vector<8x128xf32>
    %297 = vector.shape_cast %294 : vector<8x128xf32> to vector<1x8x128xf32>
    tpu.vector_store %arg9[%c2_121, %c0_122, %c0_123], %297 {strides = array<i32>} : memref<4x8x128xf32, #tpu.memory_space<vmem>>, vector<1x8x128xf32>,
    %298 = arith.truncf %294 : vector<8x128xf32> to vector<8x128xbf16>
    %c2_124 = arith.constant 2 : index
    %c0_125 = arith.constant 0 : index
    %c0_126 = arith.constant 0 : index
    %299 = vector.load %arg6[%c2_124, %c0_125, %c0_126] : memref<4x128x10xbf16, #tpu.memory_space<vmem>>, vector<1x128x10xbf16>
    %300 = vector.shape_cast %299 : vector<1x128x10xbf16> to vector<128x10xbf16>
    %cst_127 = arith.constant dense<0.000000e+00> : vector<8x10xf32>
    %301 = tpu.matmul %298, %300, %cst_127 {dimension_numbers = #tpu.dot_dimension_numbers<[1], [0], [0], [1], [0, 0, 1, 1], [], []>} : vector<8x128xbf16>, vector<128x10xbf16>, vector<8x10xf32> -> vector<8x10xf32>
    %302 = arith.addf %287, %301 : vector<8x10xf32>
    %303 = vector.extract_strided_slice %257 {offsets = [48, 0], sizes = [8, 128], strides = [1, 1]} : vector<64x128xf32> to vector<8x128xf32>
    %304 = vector.extract_strided_slice %257 {offsets = [56, 0], sizes = [8, 128], strides = [1, 1]} : vector<64x128xf32> to vector<8x128xf32>
    %305 = arith.maximumf %303, %304 : vector<8x128xf32>
    %306 = vector.broadcast %258 : vector<1x128xf32> to vector<8x128xf32>
    %307 = arith.addf %305, %306 : vector<8x128xf32>
    %cst_128 = arith.constant 0.000000e+00 : f32
    %308 = vector.broadcast %cst_128 : f32 to vector<8x128xf32>
    %309 = arith.maximumf %307, %308 : vector<8x128xf32>
    %c3_129 = arith.constant 3 : index
    %c0_130 = arith.constant 0 : index
    %c0_131 = arith.constant 0 : index
    %310 = vector.load %arg9[%c3_129, %c0_130, %c0_131] : memref<4x8x128xf32, #tpu.memory_space<vmem>>, vector<1x8x128xf32>
    %311 = vector.shape_cast %310 : vector<1x8x128xf32> to vector<8x128xf32>
    %312 = vector.shape_cast %309 : vector<8x128xf32> to vector<1x8x128xf32>
    tpu.vector_store %arg9[%c3_129, %c0_130, %c0_131], %312 {strides = array<i32>} : memref<4x8x128xf32, #tpu.memory_space<vmem>>, vector<1x8x128xf32>,
    %313 = arith.truncf %309 : vector<8x128xf32> to vector<8x128xbf16>
    %c3_132 = arith.constant 3 : index
    %c0_133 = arith.constant 0 : index
    %c0_134 = arith.constant 0 : index
    %314 = vector.load %arg6[%c3_132, %c0_133, %c0_134] : memref<4x128x10xbf16, #tpu.memory_space<vmem>>, vector<1x128x10xbf16>
    %315 = vector.shape_cast %314 : vector<1x128x10xbf16> to vector<128x10xbf16>
    %cst_135 = arith.constant dense<0.000000e+00> : vector<8x10xf32>
    %316 = tpu.matmul %313, %315, %cst_135 {dimension_numbers = #tpu.dot_dimension_numbers<[1], [0], [0], [1], [0, 0, 1, 1], [], []>} : vector<8x128xbf16>, vector<128x10xbf16>, vector<8x10xf32> -> vector<8x10xf32>
    %317 = arith.addf %302, %316 : vector<8x10xf32>
    %c0_136 = arith.constant 0 : index
    %c0_137 = arith.constant 0 : index
    %318 = vector.load %arg7[%c0_136, %c0_137] : memref<1x10xf32, #tpu.memory_space<vmem>>, vector<1x10xf32>
    %319 = vector.broadcast %318 : vector<1x10xf32> to vector<8x10xf32>
    %320 = arith.addf %317, %319 : vector<8x10xf32>
    %c0_138 = arith.constant 0 : index
    %c0_139 = arith.constant 0 : index
    %321 = vector.load %arg8[%c0_138, %c0_139] : memref<8x10xf32, #tpu.memory_space<vmem>>, vector<8x10xf32>
    tpu.vector_store %arg8[%c0_138, %c0_139], %320 {strides = array<i32>} : memref<8x10xf32, #tpu.memory_space<vmem>>, vector<8x10xf32>,
    return
  }
  func.func @transform_0(%arg0: i32) -> (i32, i32, i32, i32) {
    %c0_i32 = arith.constant 0 : i32
    %c0_i32_0 = arith.constant 0 : i32
    %c0_i32_1 = arith.constant 0 : i32
    %c0_i32_2 = arith.constant 0 : i32
    return %c0_i32, %c0_i32_0, %arg0, %c0_i32_1 : i32, i32, i32, i32
  }
  func.func @transform_1(%arg0: i32) -> (i32, i32, i32, i32) {
    %c0_i32 = arith.constant 0 : i32
    %c0_i32_0 = arith.constant 0 : i32
    %c0_i32_1 = arith.constant 0 : i32
    %c0_i32_2 = arith.constant 0 : i32
    %c0_i32_3 = arith.constant 0 : i32
    return %c0_i32, %c0_i32_0, %c0_i32_1, %c0_i32_2 : i32, i32, i32, i32
  }
  func.func @transform_2(%arg0: i32) -> (i32, i32) {
    %c0_i32 = arith.constant 0 : i32
    %c0_i32_0 = arith.constant 0 : i32
    %c0_i32_1 = arith.constant 0 : i32
    return %c0_i32, %c0_i32_0 : i32, i32
  }
  func.func @transform_3(%arg0: i32) -> (i32, i32, i32, i32) {
    %c0_i32 = arith.constant 0 : i32
    %c0_i32_0 = arith.constant 0 : i32
    %c0_i32_1 = arith.constant 0 : i32
    %c0_i32_2 = arith.constant 0 : i32
    %c0_i32_3 = arith.constant 0 : i32
    return %c0_i32, %c0_i32_0, %c0_i32_1, %c0_i32_2 : i32, i32, i32, i32
  }
  func.func @transform_4(%arg0: i32) -> (i32, i32) {
    %c0_i32 = arith.constant 0 : i32
    %c0_i32_0 = arith.constant 0 : i32
    %c0_i32_1 = arith.constant 0 : i32
    return %c0_i32, %c0_i32_0 : i32, i32
  }
  func.func @transform_5(%arg0: i32) -> (i32, i32, i32) {
    %c0_i32 = arith.constant 0 : i32
    %c0_i32_0 = arith.constant 0 : i32
    %c0_i32_1 = arith.constant 0 : i32
    %c0_i32_2 = arith.constant 0 : i32
    return %c0_i32, %c0_i32_0, %c0_i32_1 : i32, i32, i32
  }
  func.func @transform_6(%arg0: i32) -> (i32, i32) {
    %c0_i32 = arith.constant 0 : i32
    %c0_i32_0 = arith.constant 0 : i32
    %c0_i32_1 = arith.constant 0 : i32
    return %c0_i32, %c0_i32_0 : i32, i32
  }
  func.func @transform_7(%arg0: i32) -> (i32, i32) {
    %c0_i32 = arith.constant 0 : i32
    %c0_i32_0 = arith.constant 0 : i32
    return %arg0, %c0_i32 : i32, i32
  }
  func.func @transform_8(%arg0: i32) -> (i32, i32, i32) {
    %c0_i32 = arith.constant 0 : i32
    %c0_i32_0 = arith.constant 0 : i32
    %c0_i32_1 = arith.constant 0 : i32
    return %c0_i32, %arg0, %c0_i32_0 : i32, i32, i32
  }
}

</mosaic_0001>

<llo_original>
// kernel: cnn_forward.1
$region0: #{cnn_forward.1}
  #allocation0 [shape = 'u32[]', space=smem, size = 0x4, offset = 0x4, fixed_abs, tag = 'smem constant byte address 0x4 - core index']
  #allocation1 [shape = 'u32[144,128]{1,0:T(1,128)}', space=vmem, size = 0x12000, scoped, tag = 'internal scratch']
  %s0 = inlined_call_operand.vmem [shape: f32[4,7,8,28], index: 0, kind: input, shape index: {}]
  %s1 = inlined_call_operand.vmem [shape: bf16[5,2,28,192], index: 1, kind: input, shape index: {}]
  %s2 = inlined_call_operand.vmem [shape: f32[1,192], index: 2, kind: input, shape index: {}]
  %s3 = inlined_call_operand.vmem [shape: bf16[5,2,192,128], index: 3, kind: input, shape index: {}]
  %s4 = inlined_call_operand.vmem [shape: f32[1,128], index: 4, kind: input, shape index: {}]
  %s5 = inlined_call_operand.vmem [shape: bf16[4,128,10], index: 5, kind: input, shape index: {}]
  %s6 = inlined_call_operand.vmem [shape: f32[1,10], index: 6, kind: input, shape index: {}]
  %s7 = inlined_call_operand.vmem [shape: f32[8,10], index: 7, kind: output, shape index: {0}]
  %s8 = inlined_call_operand.vmem [shape: f32[4,8,128], index: 8, kind: output, shape index: {1}]
  %9 = xla_tuple %s7, %s8
  %s10 = sld [smem:[#allocation0]]
  $region46: #{cnn_forward.1} parent=0
    _
  %s12 = ssub.s32 1, %s10
  %s13 = scalar_select 0, %s12, %s10
  // Predicated region
  $region2: #{cnn_forward.1} parent=0 // pred_check
    _
  $region3: #{cnn_forward.1} parent=0 // pred_check_branch
    %15 = sbr.rel (0) target = $region5
  $region4: #{cnn_forward.1} parent=0 // pred_region
    _
  $region5: #{cnn_forward.1} parent=0 // pred_fallthru
    _
  // Predicated region
  $region6: #{cnn_forward.1} parent=0 // pred_check
    _
  $region7: #{cnn_forward.1} parent=0 // pred_check_branch
    %17 = sbr.rel (0) target = $region9
  $region8: #{cnn_forward.1} parent=0 // pred_region
    _
  $region9: #{cnn_forward.1} parent=0 // pred_fallthru
    _
  // Predicated region
  $region10: #{cnn_forward.1} parent=0 // pred_check
    _
  $region11: #{cnn_forward.1} parent=0 // pred_check_branch
    %19 = sbr.rel (0) target = $region13
  $region12: #{cnn_forward.1} parent=0 // pred_region
    _
  $region13: #{cnn_forward.1} parent=0 // pred_fallthru
    _
  // Predicated region
  $region14: #{cnn_forward.1} parent=0 // pred_check
    _
  $region15: #{cnn_forward.1} parent=0 // pred_check_branch
    %21 = sbr.rel (0) target = $region17
  $region16: #{cnn_forward.1} parent=0 // pred_region
    _
  $region17: #{cnn_forward.1} parent=0 // pred_fallthru
    _
  // Predicated region
  $region18: #{cnn_forward.1} parent=0 // pred_check
    _
  $region19: #{cnn_forward.1} parent=0 // pred_check_branch
    %23 = sbr.rel (0) target = $region21
  $region20: #{cnn_forward.1} parent=0 // pred_region
    _
  $region21: #{cnn_forward.1} parent=0 // pred_fallthru
    _
  // Predicated region
  $region22: #{cnn_forward.1} parent=0 // pred_check
    _
  $region23: #{cnn_forward.1} parent=0 // pred_check_branch
    %25 = sbr.rel (0) target = $region25
  $region24: #{cnn_forward.1} parent=0 // pred_region
    _
  $region25: #{cnn_forward.1} parent=0 // pred_fallthru
    _
  // Predicated region
  $region26: #{cnn_forward.1} parent=0 // pred_check
    _
  $region27: #{cnn_forward.1} parent=0 // pred_check_branch
    %27 = sbr.rel (0) target = $region29
  $region28: #{cnn_forward.1} parent=0 // pred_region
    _
  $region29: #{cnn_forward.1} parent=0 // pred_fallthru
    _
  %v29 = vld [vmem:[%s0] sm:$0xff]
  %v30 = vld [vmem:[%s0 + $0x8] sm:$0xff]
  %v31 = vld [vmem:[%s0 + $0x10] sm:$0xff]
  %v32 = vld [vmem:[%s0 + $0x18] sm:$0xff]
  %v33 = vld [vmem:[%s0 + $0x20] sm:$0xff]
  %v34 = vld [vmem:[%s0 + $0x28] sm:$0xff]
  %v35 = vld [vmem:[%s0 + $0x30] sm:$0xff]
  %v36 = vld [vmem:[%s0 + $0x38] sm:$0xff]
  %v37 = vld [vmem:[%s0 + $0x40] sm:$0xff]
  %v38 = vld [vmem:[%s0 + $0x48] sm:$0xff]
  %v39 = vld [vmem:[%s0 + $0x50] sm:$0xff]
  %v40 = vld [vmem:[%s0 + $0x58] sm:$0xff]
  %v41 = vld [vmem:[%s0 + $0x60] sm:$0xff]
  %v42 = vld [vmem:[%s0 + $0x68] sm:$0xff]
  %v43 = vld [vmem:[%s0 + $0x70] sm:$0xff]
  %v44 = vld [vmem:[%s0 + $0x78] sm:$0xff]
  %v45 = vld [vmem:[%s0 + $0x80] sm:$0xff]
  %v46 = vld [vmem:[%s0 + $0x88] sm:$0xff]
  %v47 = vld [vmem:[%s0 + $0x90] sm:$0xff]
  %v48 = vld [vmem:[%s0 + $0x98] sm:$0xff]
  %v49 = vld [vmem:[%s0 + $0xa0] sm:$0xff]
  %v50 = vld [vmem:[%s0 + $0xa8] sm:$0xff]
  %v51 = vld [vmem:[%s0 + $0xb0] sm:$0xff]
  %v52 = vld [vmem:[%s0 + $0xb8] sm:$0xff]
  %v53 = vld [vmem:[%s0 + $0xc0] sm:$0xff]
  %v54 = vld [vmem:[%s0 + $0xc8] sm:$0xff]
  %v55 = vld [vmem:[%s0 + $0xd0] sm:$0xff]
  %v56 = vld [vmem:[%s0 + $0xd8] sm:$0xff]
  %v57 = vpack.c.bf16 %v30, %v29
  %v58 = vpack.c.bf16 %v32, %v31
  %v59 = vpack.c.bf16 %v34, %v33
  %v60 = vpack.c.bf16 %v37, %v36
  %v61 = vpack.c.bf16 %v39, %v38
  %v62 = vpack.c.bf16 %v41, %v40
  %v63 = vpack.c.bf16 %v44, %v43
  %v64 = vpack.c.bf16 %v46, %v45
  %v65 = vpack.c.bf16 %v48, %v47
  %v66 = vpack.c.bf16 %v51, %v50
  %v67 = vpack.c.bf16 %v53, %v52
  %v68 = vpack.c.bf16 %v55, %v54
  %v69 = vpack.c.bf16 %v31, %v30
  %v70 = vpack.c.bf16 %v33, %v32
  %v71 = vpack.c.bf16 %v35, %v34
  %v72 = vpack.c.bf16 %v38, %v37
  %v73 = vpack.c.bf16 %v40, %v39
  %v74 = vpack.c.bf16 %v42, %v41
  %v75 = vpack.c.bf16 %v45, %v44
  %v76 = vpack.c.bf16 %v47, %v46
  %v77 = vpack.c.bf16 %v49, %v48
  %v78 = vpack.c.bf16 %v52, %v51
  %v79 = vpack.c.bf16 %v54, %v53
  %v80 = vpack.c.bf16 %v56, %v55
  %v81 = vld [vmem:[%s1] sm:$0xff]
  %v82 = vld [vmem:[%s1 + $0x8] sm:$0xff]
  %v83 = vld [vmem:[%s1 + $0x10] sm:$0xff]
  %v84 = vld [vmem:[%s1 + $0x18] sm:$0x33]
  %s85 = scalar_lea.vmem %s1, 64
  %v86 = vld [vmem:[%s85] sm:$0xff]
  %v87 = vld [vmem:[%s85 + $0x8] sm:$0xff]
  %v88 = vld [vmem:[%s85 + $0x10] sm:$0xff]
  %v89 = vld [vmem:[%s85 + $0x18] sm:$0x33]
  %v94 = vunpack.c.l.b16 %v86
  %v95 = vunpack.c.h.b16 %v86
  %v96 = vunpack.c.l.b16 %v87
  %v97 = vunpack.c.h.b16 %v87
  %v98 = vunpack.c.l.b16 %v88
  %v99 = vunpack.c.h.b16 %v88
  %v100 = vunpack.c.l.b16 %v89
  %v101 = vunpack.c.h.b16 %v89
  %v102 = vpack.c.b16 %v96, %v94
  %v103 = vpack.c.b16 %v97, %v95
  %v104 = vpack.c.b16 %v100, %v98
  %v105 = vpack.c.b16 %v101, %v99
  %vm108 = vcmask 228352
  %v110 = vsel %vm108, %v60, 0
  %v113 = vsel %vm108, %v61, 0
  %v116 = vsel %vm108, %v62, 0
  %v119 = vsel %vm108, %v63, 0
  %v122 = vsel %vm108, %v64, 0
  %v125 = vsel %vm108, %v65, 0
  %v128 = vsel %vm108, %v66, 0
  %v131 = vsel %vm108, %v67, 0
  %v134 = vsel %vm108, %v68, 0
  %v137 = vsel %vm108, %v69, 0
  %v140 = vsel %vm108, %v70, 0
  %v143 = vsel %vm108, %v71, 0
  %vm145 = vcmask 1045504
  %v147 = vsel %vm145, %v104, 0
  %v150 = vsel %vm145, %v105, 0
  %152 = vmatprep.subr.bf16.mxu0 %v103
  %153 = vmatpush1.bf16.msra.mxu0 %v102
  %154 = vmatprep.subr.bf16.mxu0 %v150
  %155 = vmatpush1.bf16.msra.mxu0 %v147
  %156 = vmatprep.subr.bf16.mxu0 0
  %157 = vmatpush1.bf16.msra.mxu0 0
  %158 = vmatprep.subr.bf16.mxu0 0
  %159 = vmatpush1.bf16.msra.mxu0 0
  %160 = vmatprep.subr.bf16.mxu0 0
  %161 = vmatpush1.bf16.msra.mxu0 0
  %162 = vmatprep.subr.bf16.mxu0 0
  %163 = vmatpush1.bf16.msra.mxu0 0
  %164 = vmatprep.subr.bf16.mxu0 0
  %165 = vmatpush1.bf16.msra.mxu0 0
  %166 = vmatprep.subr.bf16.mxu0 0
  %167 = vmatpush1.bf16.msra.mxu0 0
  %168 = vmatprep.subr.bf16.mxu0 0
  %169 = vmatpush1.bf16.msra.mxu0 0
  %170 = vmatprep.subr.bf16.mxu0 0
  %171 = vmatpush1.bf16.msra.mxu0 0
  %172 = vmatprep.subr.bf16.mxu0 0
  %173 = vmatpush1.bf16.msra.mxu0 0
  %174 = vmatprep.subr.bf16.mxu0 0
  %175 = vmatpush1.bf16.msra.mxu0 0
  %176 = vmatprep.subr.bf16.mxu0 0
  %177 = vmatpush1.bf16.msra.mxu0 0
  %178 = vmatprep.subr.bf16.mxu0 0
  %179 = vmatpush1.bf16.msra.mxu0 0
  %180 = vmatprep.subr.bf16.mxu0 0
  %181 = vmatpush1.bf16.msra.mxu0 0
  %182 = vmatprep.subr.bf16.mxu0 0
  %183 = vmatpush1.bf16.msra.mxu0 0
  %184 = vmatprep.mubr.bf16.mxu0 0
  %185 = vmatmul.mubr.bf16.gmra.mrb[0].mxu0 %v110
  %v186 = vpop.f32.mrb[0].mxu0
  %v187 = vadd.f32 0.0, %v186
  %v188 = vpop.f32.mrb[0].mxu0
  %v189 = vadd.f32 0.0, %v188
  %v190 = vpop.f32.mrb[0].mxu0
  %v191 = vadd.f32 0.0, %v190
  %v192 = vpop.f32.mrb[0].mxu0
  %v193 = vadd.f32 0.0, %v192
  %194 = vmatprep.mubr.bf16.mxu0 0
  %195 = vmatmul.mubr.bf16.gmra.mrb[0].mxu0 %v113
  %v196 = vpop.f32.mrb[0].mxu0
  %v197 = vadd.f32 0.0, %v196
  %v198 = vpop.f32.mrb[0].mxu0
  %v199 = vadd.f32 0.0, %v198
  %v200 = vpop.f32.mrb[0].mxu0
  %v201 = vadd.f32 0.0, %v200
  %v202 = vpop.f32.mrb[0].mxu0
  %v203 = vadd.f32 0.0, %v202
  %204 = vmatprep.mubr.bf16.mxu0 0
  %205 = vmatmul.mubr.bf16.gmra.mrb[0].mxu0 %v116
  %v206 = vpop.f32.mrb[0].mxu0
  %v207 = vadd.f32 0.0, %v206
  %v208 = vpop.f32.mrb[0].mxu0
  %v209 = vadd.f32 0.0, %v208
  %v210 = vpop.f32.mrb[0].mxu0
  %v211 = vadd.f32 0.0, %v210
  %v212 = vpop.f32.mrb[0].mxu0
  %v213 = vadd.f32 0.0, %v212
  %214 = vmatprep.mubr.bf16.mxu0 0
  %215 = vmatmul.mubr.bf16.gmra.mrb[0].mxu0 %v119
  %v216 = vpop.f32.mrb[0].mxu0
  %v217 = vadd.f32 0.0, %v216
  %v218 = vpop.f32.mrb[0].mxu0
  %v219 = vadd.f32 0.0, %v218
  %v220 = vpop.f32.mrb[0].mxu0
  %v221 = vadd.f32 0.0, %v220
  %v222 = vpop.f32.mrb[0].mxu0
  %v223 = vadd.f32 0.0, %v222
  %224 = vmatprep.mubr.bf16.mxu0 0
  %225 = vmatmul.mubr.bf16.gmra.mrb[0].mxu0 %v122
  %v226 = vpop.f32.mrb[0].mxu0
  %v227 = vadd.f32 0.0, %v226
  %v228 = vpop.f32.mrb[0].mxu0
  %v229 = vadd.f32 0.0, %v228
  %v230 = vpop.f32.mrb[0].mxu0
  %v231 = vadd.f32 0.0, %v230
  %v232 = vpop.f32.mrb[0].mxu0
  %v233 = vadd.f32 0.0, %v232
  %234 = vmatprep.mubr.bf16.mxu0 0
  %235 = vmatmul.mubr.bf16.gmra.mrb[0].mxu0 %v125
  %v236 = vpop.f32.mrb[0].mxu0
  %v237 = vadd.f32 0.0, %v236
  %v238 = vpop.f32.mrb[0].mxu0
  %v239 = vadd.f32 0.0, %v238
  %v240 = vpop.f32.mrb[0].mxu0
  %v241 = vadd.f32 0.0, %v240
  %v242 = vpop.f32.mrb[0].mxu0
  %v243 = vadd.f32 0.0, %v242
  %244 = vmatprep.mubr.bf16.mxu0 0
  %245 = vmatmul.mubr.bf16.gmra.mrb[0].mxu0 %v128
  %v246 = vpop.f32.mrb[0].mxu0
  %v247 = vadd.f32 0.0, %v246
  %v248 = vpop.f32.mrb[0].mxu0
  %v249 = vadd.f32 0.0, %v248
  %v250 = vpop.f32.mrb[0].mxu0
  %v251 = vadd.f32 0.0, %v250
  %v252 = vpop.f32.mrb[0].mxu0
  %v253 = vadd.f32 0.0, %v252
  %254 = vmatprep.mubr.bf16.mxu0 0
  %255 = vmatmul.mubr.bf16.gmra.mrb[0].mxu0 %v131
  %v256 = vpop.f32.mrb[0].mxu0
  %v257 = vadd.f32 0.0, %v256
  %v258 = vpop.f32.mrb[0].mxu0
  %v259 = vadd.f32 0.0, %v258
  %v260 = vpop.f32.mrb[0].mxu0
  %v261 = vadd.f32 0.0, %v260
  %v262 = vpop.f32.mrb[0].mxu0
  %v263 = vadd.f32 0.0, %v262
  %264 = vmatprep.mubr.bf16.mxu0 0
  %265 = vmatmul.mubr.bf16.gmra.mrb[0].mxu0 %v134
  %v266 = vpop.f32.mrb[0].mxu0
  %v267 = vadd.f32 0.0, %v266
  %v268 = vpop.f32.mrb[0].mxu0
  %v269 = vadd.f32 0.0, %v268
  %v270 = vpop.f32.mrb[0].mxu0
  %v271 = vadd.f32 0.0, %v270
  %v272 = vpop.f32.mrb[0].mxu0
  %v273 = vadd.f32 0.0, %v272
  %274 = vmatprep.mubr.bf16.mxu0 0
  %275 = vmatmul.mubr.bf16.gmra.mrb[0].mxu0 %v137
  %v276 = vpop.f32.mrb[0].mxu0
  %v277 = vadd.f32 0.0, %v276
  %v278 = vpop.f32.mrb[0].mxu0
  %v279 = vadd.f32 0.0, %v278
  %v280 = vpop.f32.mrb[0].mxu0
  %v281 = vadd.f32 0.0, %v280
  %v282 = vpop.f32.mrb[0].mxu0
  %v283 = vadd.f32 0.0, %v282
  %284 = vmatprep.mubr.bf16.mxu0 0
  %285 = vmatmul.mubr.bf16.gmra.mrb[0].mxu0 %v140
  %v286 = vpop.f32.mrb[0].mxu0
  %v287 = vadd.f32 0.0, %v286
  %v288 = vpop.f32.mrb[0].mxu0
  %v289 = vadd.f32 0.0, %v288
  %v290 = vpop.f32.mrb[0].mxu0
  %v291 = vadd.f32 0.0, %v290
  %v292 = vpop.f32.mrb[0].mxu0
  %v293 = vadd.f32 0.0, %v292
  %294 = vmatprep.mubr.bf16.mxu0 0
  %295 = vmatmul.mubr.bf16.gmra.mrb[0].mxu0 %v143
  %v296 = vpop.f32.mrb[0].mxu0
  %v297 = vadd.f32 0.0, %v296
  %v298 = vpop.f32.mrb[0].mxu0
  %v299 = vadd.f32 0.0, %v298
  %v300 = vpop.f32.mrb[0].mxu0
  %v301 = vadd.f32 0.0, %v300
  %v302 = vpop.f32.mrb[0].mxu0
  %v303 = vadd.f32 0.0, %v302
  %304 = vdwg.mxu0
  %v309 = vunpack.c.l.b16 %v81
  %v310 = vunpack.c.h.b16 %v81
  %v311 = vunpack.c.l.b16 %v82
  %v312 = vunpack.c.h.b16 %v82
  %v313 = vunpack.c.l.b16 %v83
  %v314 = vunpack.c.h.b16 %v83
  %v315 = vunpack.c.l.b16 %v84
  %v316 = vunpack.c.h.b16 %v84
  %v317 = vpack.c.b16 %v311, %v309
  %v318 = vpack.c.b16 %v312, %v310
  %v319 = vpack.c.b16 %v315, %v313
  %v320 = vpack.c.b16 %v316, %v314
  %v324 = vsel %vm108, %v57, 0
  %v327 = vsel %vm108, %v58, 0
  %v330 = vsel %vm108, %v59, 0
  %v333 = vsel %vm145, %v319, 0
  %v336 = vsel %vm145, %v320, 0
  %338 = vmatprep.subr.bf16.mxu0 %v318
  %339 = vmatpush1.bf16.msra.mxu0 %v317
  %340 = vmatprep.subr.bf16.mxu0 %v336
  %341 = vmatpush1.bf16.msra.mxu0 %v333
  %342 = vmatprep.subr.bf16.mxu0 0
  %343 = vmatpush1.bf16.msra.mxu0 0
  %344 = vmatprep.subr.bf16.mxu0 0
  %345 = vmatpush1.bf16.msra.mxu0 0
  %346 = vmatprep.subr.bf16.mxu0 0
  %347 = vmatpush1.bf16.msra.mxu0 0
  %348 = vmatprep.subr.bf16.mxu0 0
  %349 = vmatpush1.bf16.msra.mxu0 0
  %350 = vmatprep.subr.bf16.mxu0 0
  %351 = vmatpush1.bf16.msra.mxu0 0
  %352 = vmatprep.subr.bf16.mxu0 0
  %353 = vmatpush1.bf16.msra.mxu0 0
  %354 = vmatprep.subr.bf16.mxu0 0
  %355 = vmatpush1.bf16.msra.mxu0 0
  %356 = vmatprep.subr.bf16.mxu0 0
  %357 = vmatpush1.bf16.msra.mxu0 0
  %358 = vmatprep.subr.bf16.mxu0 0
  %359 = vmatpush1.bf16.msra.mxu0 0
  %360 = vmatprep.subr.bf16.mxu0 0
  %361 = vmatpush1.bf16.msra.mxu0 0
  %362 = vmatprep.subr.bf16.mxu0 0
  %363 = vmatpush1.bf16.msra.mxu0 0
  %364 = vmatprep.subr.bf16.mxu0 0
  %365 = vmatpush1.bf16.msra.mxu0 0
  %366 = vmatprep.subr.bf16.mxu0 0
  %367 = vmatpush1.bf16.msra.mxu0 0
  %368 = vmatprep.subr.bf16.mxu0 0
  %369 = vmatpush1.bf16.msra.mxu0 0
  %370 = vmatprep.mubr.bf16.mxu0 0
  %371 = vmatmul.mubr.bf16.gmra.mrb[0].mxu0 %v324
  %v372 = vpop.f32.mrb[0].mxu0
  %v373 = vadd.f32 %v187, %v372
  %v374 = vpop.f32.mrb[0].mxu0
  %v375 = vadd.f32 %v189, %v374
  %v376 = vpop.f32.mrb[0].mxu0
  %v377 = vadd.f32 %v191, %v376
  %v378 = vpop.f32.mrb[0].mxu0
  %v379 = vadd.f32 %v193, %v378
  %380 = vmatprep.mubr.bf16.mxu0 0
  %381 = vmatmul.mubr.bf16.gmra.mrb[0].mxu0 %v327
  %v382 = vpop.f32.mrb[0].mxu0
  %v383 = vadd.f32 %v197, %v382
  %v384 = vpop.f32.mrb[0].mxu0
  %v385 = vadd.f32 %v199, %v384
  %v386 = vpop.f32.mrb[0].mxu0
  %v387 = vadd.f32 %v201, %v386
  %v388 = vpop.f32.mrb[0].mxu0
  %v389 = vadd.f32 %v203, %v388
  %390 = vmatprep.mubr.bf16.mxu0 0
  %391 = vmatmul.mubr.bf16.gmra.mrb[0].mxu0 %v330
  %v392 = vpop.f32.mrb[0].mxu0
  %v393 = vadd.f32 %v207, %v392
  %v394 = vpop.f32.mrb[0].mxu0
  %v395 = vadd.f32 %v209, %v394
  %v396 = vpop.f32.mrb[0].mxu0
  %v397 = vadd.f32 %v211, %v396
  %v398 = vpop.f32.mrb[0].mxu0
  %v399 = vadd.f32 %v213, %v398
  %400 = vmatprep.mubr.bf16.mxu0 0
  %401 = vmatmul.mubr.bf16.gmra.mrb[0].mxu0 %v110
  %v402 = vpop.f32.mrb[0].mxu0
  %v403 = vadd.f32 %v217, %v402
  %v404 = vpop.f32.mrb[0].mxu0
  %v405 = vadd.f32 %v219, %v404
  %v406 = vpop.f32.mrb[0].mxu0
  %v407 = vadd.f32 %v221, %v406
  %v408 = vpop.f32.mrb[0].mxu0
  %v409 = vadd.f32 %v223, %v408
  %410 = vmatprep.mubr.bf16.mxu0 0
  %411 = vmatmul.mubr.bf16.gmra.mrb[0].mxu0 %v113
  %v412 = vpop.f32.mrb[0].mxu0
  %v413 = vadd.f32 %v227, %v412
  %v414 = vpop.f32.mrb[0].mxu0
  %v415 = vadd.f32 %v229, %v414
  %v416 = vpop.f32.mrb[0].mxu0
  %v417 = vadd.f32 %v231, %v416
  %v418 = vpop.f32.mrb[0].mxu0
  %v419 = vadd.f32 %v233, %v418
  %420 = vmatprep.mubr.bf16.mxu0 0
  %421 = vmatmul.mubr.bf16.gmra.mrb[0].mxu0 %v116
  %v422 = vpop.f32.mrb[0].mxu0
  %v423 = vadd.f32 %v237, %v422
  %v424 = vpop.f32.mrb[0].mxu0
  %v425 = vadd.f32 %v239, %v424
  %v426 = vpop.f32.mrb[0].mxu0
  %v427 = vadd.f32 %v241, %v426
  %v428 = vpop.f32.mrb[0].mxu0
  %v429 = vadd.f32 %v243, %v428
  %430 = vmatprep.mubr.bf16.mxu0 0
  %431 = vmatmul.mubr.bf16.gmra.mrb[0].mxu0 %v119
  %v432 = vpop.f32.mrb[0].mxu0
  %v433 = vadd.f32 %v247, %v432
  %v434 = vpop.f32.mrb[0].mxu0
  %v435 = vadd.f32 %v249, %v434
  %v436 = vpop.f32.mrb[0].mxu0
  %v437 = vadd.f32 %v251, %v436
  %v438 = vpop.f32.mrb[0].mxu0
  %v439 = vadd.f32 %v253, %v438
  %440 = vmatprep.mubr.bf16.mxu0 0
  %441 = vmatmul.mubr.bf16.gmra.mrb[0].mxu0 %v122
  %v442 = vpop.f32.mrb[0].mxu0
  %v443 = vadd.f32 %v257, %v442
  %v444 = vpop.f32.mrb[0].mxu0
  %v445 = vadd.f32 %v259, %v444
  %v446 = vpop.f32.mrb[0].mxu0
  %v447 = vadd.f32 %v261, %v446
  %v448 = vpop.f32.mrb[0].mxu0
  %v449 = vadd.f32 %v263, %v448
  %450 = vmatprep.mubr.bf16.mxu0 0
  %451 = vmatmul.mubr.bf16.gmra.mrb[0].mxu0 %v125
  %v452 = vpop.f32.mrb[0].mxu0
  %v453 = vadd.f32 %v267, %v452
  %v454 = vpop.f32.mrb[0].mxu0
  %v455 = vadd.f32 %v269, %v454
  %v456 = vpop.f32.mrb[0].mxu0
  %v457 = vadd.f32 %v271, %v456
  %v458 = vpop.f32.mrb[0].mxu0
  %v459 = vadd.f32 %v273, %v458
  %460 = vmatprep.mubr.bf16.mxu0 0
  %461 = vmatmul.mubr.bf16.gmra.mrb[0].mxu0 %v128
  %v462 = vpop.f32.mrb[0].mxu0
  %v463 = vadd.f32 %v277, %v462
  %v464 = vpop.f32.mrb[0].mxu0
  %v465 = vadd.f32 %v279, %v464
  %v466 = vpop.f32.mrb[0].mxu0
  %v467 = vadd.f32 %v281, %v466
  %v468 = vpop.f32.mrb[0].mxu0
  %v469 = vadd.f32 %v283, %v468
  %470 = vmatprep.mubr.bf16.mxu0 0
  %471 = vmatmul.mubr.bf16.gmra.mrb[0].mxu0 %v131
  %v472 = vpop.f32.mrb[0].mxu0
  %v473 = vadd.f32 %v287, %v472
  %v474 = vpop.f32.mrb[0].mxu0
  %v475 = vadd.f32 %v289, %v474
  %v476 = vpop.f32.mrb[0].mxu0
  %v477 = vadd.f32 %v291, %v476
  %v478 = vpop.f32.mrb[0].mxu0
  %v479 = vadd.f32 %v293, %v478
  %480 = vmatprep.mubr.bf16.mxu0 0
  %481 = vmatmul.mubr.bf16.gmra.mrb[0].mxu0 %v134
  %v482 = vpop.f32.mrb[0].mxu0
  %v483 = vadd.f32 %v297, %v482
  %v484 = vpop.f32.mrb[0].mxu0
  %v485 = vadd.f32 %v299, %v484
  %v486 = vpop.f32.mrb[0].mxu0
  %v487 = vadd.f32 %v301, %v486
  %v488 = vpop.f32.mrb[0].mxu0
  %v489 = vadd.f32 %v303, %v488
  %490 = vdwg.mxu0
  %s491 = scalar_lea.vmem %s1, 128
  %v492 = vld [vmem:[%s491] sm:$0xff]
  %v493 = vld [vmem:[%s491 + $0x8] sm:$0xff]
  %v494 = vld [vmem:[%s491 + $0x10] sm:$0xff]
  %v495 = vld [vmem:[%s491 + $0x18] sm:$0x33]
  %v500 = vunpack.c.l.b16 %v492
  %v501 = vunpack.c.h.b16 %v492
  %v502 = vunpack.c.l.b16 %v493
  %v503 = vunpack.c.h.b16 %v493
  %v504 = vunpack.c.l.b16 %v494
  %v505 = vunpack.c.h.b16 %v494
  %v506 = vunpack.c.l.b16 %v495
  %v507 = vunpack.c.h.b16 %v495
  %v508 = vpack.c.b16 %v502, %v500
  %v509 = vpack.c.b16 %v503, %v501
  %v510 = vpack.c.b16 %v506, %v504
  %v511 = vpack.c.b16 %v507, %v505
  %v515 = vsel %vm108, %v72, 0
  %v518 = vsel %vm108, %v73, 0
  %v521 = vsel %vm108, %v74, 0
  %v524 = vsel %vm145, %v510, 0
  %v527 = vsel %vm145, %v511, 0
  %529 = vmatprep.subr.bf16.mxu0 %v509
  %530 = vmatpush1.bf16.msra.mxu0 %v508
  %531 = vmatprep.subr.bf16.mxu0 %v527
  %532 = vmatpush1.bf16.msra.mxu0 %v524
  %533 = vmatprep.subr.bf16.mxu0 0
  %534 = vmatpush1.bf16.msra.mxu0 0
  %535 = vmatprep.subr.bf16.mxu0 0
  %536 = vmatpush1.bf16.msra.mxu0 0
  %537 = vmatprep.subr.bf16.mxu0 0
  %538 = vmatpush1.bf16.msra.mxu0 0
  %539 = vmatprep.subr.bf16.mxu0 0
  %540 = vmatpush1.bf16.msra.mxu0 0
  %541 = vmatprep.subr.bf16.mxu0 0
  %542 = vmatpush1.bf16.msra.mxu0 0
  %543 = vmatprep.subr.bf16.mxu0 0
  %544 = vmatpush1.bf16.msra.mxu0 0
  %545 = vmatprep.subr.bf16.mxu0 0
  %546 = vmatpush1.bf16.msra.mxu0 0
  %547 = vmatprep.subr.bf16.mxu0 0
  %548 = vmatpush1.bf16.msra.mxu0 0
  %549 = vmatprep.subr.bf16.mxu0 0
  %550 = vmatpush1.bf16.msra.mxu0 0
  %551 = vmatprep.subr.bf16.mxu0 0
  %552 = vmatpush1.bf16.msra.mxu0 0
  %553 = vmatprep.subr.bf16.mxu0 0
  %554 = vmatpush1.bf16.msra.mxu0 0
  %555 = vmatprep.subr.bf16.mxu0 0
  %556 = vmatpush1.bf16.msra.mxu0 0
  %557 = vmatprep.subr.bf16.mxu0 0
  %558 = vmatpush1.bf16.msra.mxu0 0
  %559 = vmatprep.subr.bf16.mxu0 0
  %560 = vmatpush1.bf16.msra.mxu0 0
  %561 = vmatprep.mubr.bf16.mxu0 0
  %562 = vmatmul.mubr.bf16.gmra.mrb[0].mxu0 %v119
  %v563 = vpop.f32.mrb[0].mxu0
  %v564 = vadd.f32 0.0, %v563
  %v565 = vpop.f32.mrb[0].mxu0
  %v566 = vadd.f32 0.0, %v565
  %v567 = vpop.f32.mrb[0].mxu0
  %v568 = vadd.f32 0.0, %v567
  %v569 = vpop.f32.mrb[0].mxu0
  %v570 = vadd.f32 0.0, %v569
  %571 = vmatprep.mubr.bf16.mxu0 0
  %572 = vmatmul.mubr.bf16.gmra.mrb[0].mxu0 %v122
  %v573 = vpop.f32.mrb[0].mxu0
  %v574 = vadd.f32 0.0, %v573
  %v575 = vpop.f32.mrb[0].mxu0
  %v576 = vadd.f32 0.0, %v575
  %v577 = vpop.f32.mrb[0].mxu0
  %v578 = vadd.f32 0.0, %v577
  %v579 = vpop.f32.mrb[0].mxu0
  %v580 = vadd.f32 0.0, %v579
  %581 = vmatprep.mubr.bf16.mxu0 0
  %582 = vmatmul.mubr.bf16.gmra.mrb[0].mxu0 %v125
  %v583 = vpop.f32.mrb[0].mxu0
  %v584 = vadd.f32 0.0, %v583
  %v585 = vpop.f32.mrb[0].mxu0
  %v586 = vadd.f32 0.0, %v585
  %v587 = vpop.f32.mrb[0].mxu0
  %v588 = vadd.f32 0.0, %v587
  %v589 = vpop.f32.mrb[0].mxu0
  %v590 = vadd.f32 0.0, %v589
  %591 = vmatprep.mubr.bf16.mxu0 0
  %592 = vmatmul.mubr.bf16.gmra.mrb[0].mxu0 %v128
  %v593 = vpop.f32.mrb[0].mxu0
  %v594 = vadd.f32 0.0, %v593
  %v595 = vpop.f32.mrb[0].mxu0
  %v596 = vadd.f32 0.0, %v595
  %v597 = vpop.f32.mrb[0].mxu0
  %v598 = vadd.f32 0.0, %v597
  %v599 = vpop.f32.mrb[0].mxu0
  %v600 = vadd.f32 0.0, %v599
  %601 = vmatprep.mubr.bf16.mxu0 0
  %602 = vmatmul.mubr.bf16.gmra.mrb[0].mxu0 %v131
  %v603 = vpop.f32.mrb[0].mxu0
  %v604 = vadd.f32 0.0, %v603
  %v605 = vpop.f32.mrb[0].mxu0
  %v606 = vadd.f32 0.0, %v605
  %v607 = vpop.f32.mrb[0].mxu0
  %v608 = vadd.f32 0.0, %v607
  %v609 = vpop.f32.mrb[0].mxu0
  %v610 = vadd.f32 0.0, %v609
  %611 = vmatprep.mubr.bf16.mxu0 0
  %612 = vmatmul.mubr.bf16.gmra.mrb[0].mxu0 %v134
  %v613 = vpop.f32.mrb[0].mxu0
  %v614 = vadd.f32 0.0, %v613
  %v615 = vpop.f32.mrb[0].mxu0
  %v616 = vadd.f32 0.0, %v615
  %v617 = vpop.f32.mrb[0].mxu0
  %v618 = vadd.f32 0.0, %v617
  %v619 = vpop.f32.mrb[0].mxu0
  %v620 = vadd.f32 0.0, %v619
  %621 = vmatprep.mubr.bf16.mxu0 0
  %622 = vmatmul.mubr.bf16.gmra.mrb[0].mxu0 %v137
  %v623 = vpop.f32.mrb[0].mxu0
  %v624 = vadd.f32 0.0, %v623
  %v625 = vpop.f32.mrb[0].mxu0
  %v626 = vadd.f32 0.0, %v625
  %v627 = vpop.f32.mrb[0].mxu0
  %v628 = vadd.f32 0.0, %v627
  %v629 = vpop.f32.mrb[0].mxu0
  %v630 = vadd.f32 0.0, %v629
  %631 = vmatprep.mubr.bf16.mxu0 0
  %632 = vmatmul.mubr.bf16.gmra.mrb[0].mxu0 %v140
  %v633 = vpop.f32.mrb[0].mxu0
  %v634 = vadd.f32 0.0, %v633
  %v635 = vpop.f32.mrb[0].mxu0
  %v636 = vadd.f32 0.0, %v635
  %v637 = vpop.f32.mrb[0].mxu0
  %v638 = vadd.f32 0.0, %v637
  %v639 = vpop.f32.mrb[0].mxu0
  %v640 = vadd.f32 0.0, %v639
  %641 = vmatprep.mubr.bf16.mxu0 0
  %642 = vmatmul.mubr.bf16.gmra.mrb[0].mxu0 %v143
  %v643 = vpop.f32.mrb[0].mxu0
  %v644 = vadd.f32 0.0, %v643
  %v645 = vpop.f32.mrb[0].mxu0
  %v646 = vadd.f32 0.0, %v645
  %v647 = vpop.f32.mrb[0].mxu0
  %v648 = vadd.f32 0.0, %v647
  %v649 = vpop.f32.mrb[0].mxu0
  %v650 = vadd.f32 0.0, %v649
  %651 = vmatprep.mubr.bf16.mxu0 0
  %652 = vmatmul.mubr.bf16.gmra.mrb[0].mxu0 %v515
  %v653 = vpop.f32.mrb[0].mxu0
  %v654 = vadd.f32 0.0, %v653
  %v655 = vpop.f32.mrb[0].mxu0
  %v656 = vadd.f32 0.0, %v655
  %v657 = vpop.f32.mrb[0].mxu0
  %v658 = vadd.f32 0.0, %v657
  %v659 = vpop.f32.mrb[0].mxu0
  %v660 = vadd.f32 0.0, %v659
  %661 = vmatprep.mubr.bf16.mxu0 0
  %662 = vmatmul.mubr.bf16.gmra.mrb[0].mxu0 %v518
  %v663 = vpop.f32.mrb[0].mxu0
  %v664 = vadd.f32 0.0, %v663
  %v665 = vpop.f32.mrb[0].mxu0
  %v666 = vadd.f32 0.0, %v665
  %v667 = vpop.f32.mrb[0].mxu0
  %v668 = vadd.f32 0.0, %v667
  %v669 = vpop.f32.mrb[0].mxu0
  %v670 = vadd.f32 0.0, %v669
  %671 = vmatprep.mubr.bf16.mxu0 0
  %672 = vmatmul.mubr.bf16.gmra.mrb[0].mxu0 %v521
  %v673 = vpop.f32.mrb[0].mxu0
  %v674 = vadd.f32 0.0, %v673
  %v675 = vpop.f32.mrb[0].mxu0
  %v676 = vadd.f32 0.0, %v675
  %v677 = vpop.f32.mrb[0].mxu0
  %v678 = vadd.f32 0.0, %v677
  %v679 = vpop.f32.mrb[0].mxu0
  %v680 = vadd.f32 0.0, %v679
  %681 = vdwg.mxu0
  %v682 = vadd.f32 %v373, %v564
  %v683 = vadd.f32 %v375, %v566
  %v684 = vadd.f32 %v377, %v568
  %v685 = vadd.f32 %v379, %v570
  %v686 = vadd.f32 %v383, %v574
  %v687 = vadd.f32 %v385, %v576
  %v688 = vadd.f32 %v387, %v578
  %v689 = vadd.f32 %v389, %v580
  %v690 = vadd.f32 %v393, %v584
  %v691 = vadd.f32 %v395, %v586
  %v692 = vadd.f32 %v397, %v588
  %v693 = vadd.f32 %v399, %v590
  %v694 = vadd.f32 %v403, %v594
  %v695 = vadd.f32 %v405, %v596
  %v696 = vadd.f32 %v407, %v598
  %v697 = vadd.f32 %v409, %v600
  %v698 = vadd.f32 %v413, %v604
  %v699 = vadd.f32 %v415, %v606
  %v700 = vadd.f32 %v417, %v608
  %v701 = vadd.f32 %v419, %v610
  %v702 = vadd.f32 %v423, %v614
  %v703 = vadd.f32 %v425, %v616
  %v704 = vadd.f32 %v427, %v618
  %v705 = vadd.f32 %v429, %v620
  %v706 = vadd.f32 %v433, %v624
  %v707 = vadd.f32 %v435, %v626
  %v708 = vadd.f32 %v437, %v628
  %v709 = vadd.f32 %v439, %v630
  %v710 = vadd.f32 %v443, %v634
  %v711 = vadd.f32 %v445, %v636
  %v712 = vadd.f32 %v447, %v638
  %v713 = vadd.f32 %v449, %v640
  %v714 = vadd.f32 %v453, %v644
  %v715 = vadd.f32 %v455, %v646
  %v716 = vadd.f32 %v457, %v648
  %v717 = vadd.f32 %v459, %v650
  %v718 = vadd.f32 %v463, %v654
  %v719 = vadd.f32 %v465, %v656
  %v720 = vadd.f32 %v467, %v658
  %v721 = vadd.f32 %v469, %v660
  %v722 = vadd.f32 %v473, %v664
  %v723 = vadd.f32 %v475, %v666
  %v724 = vadd.f32 %v477, %v668
  %v725 = vadd.f32 %v479, %v670
  %v726 = vadd.f32 %v483, %v674
  %v727 = vadd.f32 %v485, %v676
  %v728 = vadd.f32 %v487, %v678
  %v729 = vadd.f32 %v489, %v680
  %s730 = scalar_lea.vmem %s1, 192
  %v731 = vld [vmem:[%s730] sm:$0xff]
  %v732 = vld [vmem:[%s730 + $0x8] sm:$0xff]
  %v733 = vld [vmem:[%s730 + $0x10] sm:$0xff]
  %v734 = vld [vmem:[%s730 + $0x18] sm:$0x33]
  %v739 = vunpack.c.l.b16 %v731
  %v740 = vunpack.c.h.b16 %v731
  %v741 = vunpack.c.l.b16 %v732
  %v742 = vunpack.c.h.b16 %v732
  %v743 = vunpack.c.l.b16 %v733
  %v744 = vunpack.c.h.b16 %v733
  %v745 = vunpack.c.l.b16 %v734
  %v746 = vunpack.c.h.b16 %v734
  %v747 = vpack.c.b16 %v741, %v739
  %v748 = vpack.c.b16 %v742, %v740
  %v749 = vpack.c.b16 %v745, %v743
  %v750 = vpack.c.b16 %v746, %v744
  %v754 = vsel %vm108, %v75, 0
  %v757 = vsel %vm108, %v76, 0
  %v760 = vsel %vm108, %v77, 0
  %v763 = vsel %vm145, %v749, 0
  %v766 = vsel %vm145, %v750, 0
  %768 = vmatprep.subr.bf16.mxu0 %v748
  %769 = vmatpush1.bf16.msra.mxu0 %v747
  %770 = vmatprep.subr.bf16.mxu0 %v766
  %771 = vmatpush1.bf16.msra.mxu0 %v763
  %772 = vmatprep.subr.bf16.mxu0 0
  %773 = vmatpush1.bf16.msra.mxu0 0
  %774 = vmatprep.subr.bf16.mxu0 0
  %775 = vmatpush1.bf16.msra.mxu0 0
  %776 = vmatprep.subr.bf16.mxu0 0
  %777 = vmatpush1.bf16.msra.mxu0 0
  %778 = vmatprep.subr.bf16.mxu0 0
  %779 = vmatpush1.bf16.msra.mxu0 0
  %780 = vmatprep.subr.bf16.mxu0 0
  %781 = vmatpush1.bf16.msra.mxu0 0
  %782 = vmatprep.subr.bf16.mxu0 0
  %783 = vmatpush1.bf16.msra.mxu0 0
  %784 = vmatprep.subr.bf16.mxu0 0
  %785 = vmatpush1.bf16.msra.mxu0 0
  %786 = vmatprep.subr.bf16.mxu0 0
  %787 = vmatpush1.bf16.msra.mxu0 0
  %788 = vmatprep.subr.bf16.mxu0 0
  %789 = vmatpush1.bf16.msra.mxu0 0
  %790 = vmatprep.subr.bf16.mxu0 0
  %791 = vmatpush1.bf16.msra.mxu0 0
  %792 = vmatprep.subr.bf16.mxu0 0
  %793 = vmatpush1.bf16.msra.mxu0 0
  %794 = vmatprep.subr.bf16.mxu0 0
  %795 = vmatpush1.bf16.msra.mxu0 0
  %796 = vmatprep.subr.bf16.mxu0 0
  %797 = vmatpush1.bf16.msra.mxu0 0
  %798 = vmatprep.subr.bf16.mxu0 0
  %799 = vmatpush1.bf16.msra.mxu0 0
  %800 = vmatprep.mubr.bf16.mxu0 0
  %801 = vmatmul.mubr.bf16.gmra.mrb[0].mxu0 %v128
  %v802 = vpop.f32.mrb[0].mxu0
  %v803 = vadd.f32 0.0, %v802
  %v804 = vpop.f32.mrb[0].mxu0
  %v805 = vadd.f32 0.0, %v804
  %v806 = vpop.f32.mrb[0].mxu0
  %v807 = vadd.f32 0.0, %v806
  %v808 = vpop.f32.mrb[0].mxu0
  %v809 = vadd.f32 0.0, %v808
  %810 = vmatprep.mubr.bf16.mxu0 0
  %811 = vmatmul.mubr.bf16.gmra.mrb[0].mxu0 %v131
  %v812 = vpop.f32.mrb[0].mxu0
  %v813 = vadd.f32 0.0, %v812
  %v814 = vpop.f32.mrb[0].mxu0
  %v815 = vadd.f32 0.0, %v814
  %v816 = vpop.f32.mrb[0].mxu0
  %v817 = vadd.f32 0.0, %v816
  %v818 = vpop.f32.mrb[0].mxu0
  %v819 = vadd.f32 0.0, %v818
  %820 = vmatprep.mubr.bf16.mxu0 0
  %821 = vmatmul.mubr.bf16.gmra.mrb[0].mxu0 %v134
  %v822 = vpop.f32.mrb[0].mxu0
  %v823 = vadd.f32 0.0, %v822
  %v824 = vpop.f32.mrb[0].mxu0
  %v825 = vadd.f32 0.0, %v824
  %v826 = vpop.f32.mrb[0].mxu0
  %v827 = vadd.f32 0.0, %v826
  %v828 = vpop.f32.mrb[0].mxu0
  %v829 = vadd.f32 0.0, %v828
  %830 = vmatprep.mubr.bf16.mxu0 0
  %831 = vmatmul.mubr.bf16.gmra.mrb[0].mxu0 %v137
  %v832 = vpop.f32.mrb[0].mxu0
  %v833 = vadd.f32 0.0, %v832
  %v834 = vpop.f32.mrb[0].mxu0
  %v835 = vadd.f32 0.0, %v834
  %v836 = vpop.f32.mrb[0].mxu0
  %v837 = vadd.f32 0.0, %v836
  %v838 = vpop.f32.mrb[0].mxu0
  %v839 = vadd.f32 0.0, %v838
  %840 = vmatprep.mubr.bf16.mxu0 0
  %841 = vmatmul.mubr.bf16.gmra.mrb[0].mxu0 %v140
  %v842 = vpop.f32.mrb[0].mxu0
  %v843 = vadd.f32 0.0, %v842
  %v844 = vpop.f32.mrb[0].mxu0
  %v845 = vadd.f32 0.0, %v844
  %v846 = vpop.f32.mrb[0].mxu0
  %v847 = vadd.f32 0.0, %v846
  %v848 = vpop.f32.mrb[0].mxu0
  %v849 = vadd.f32 0.0, %v848
  %850 = vmatprep.mubr.bf16.mxu0 0
  %851 = vmatmul.mubr.bf16.gmra.mrb[0].mxu0 %v143
  %v852 = vpop.f32.mrb[0].mxu0
  %v853 = vadd.f32 0.0, %v852
  %v854 = vpop.f32.mrb[0].mxu0
  %v855 = vadd.f32 0.0, %v854
  %v856 = vpop.f32.mrb[0].mxu0
  %v857 = vadd.f32 0.0, %v856
  %v858 = vpop.f32.mrb[0].mxu0
  %v859 = vadd.f32 0.0, %v858
  %860 = vmatprep.mubr.bf16.mxu0 0
  %861 = vmatmul.mubr.bf16.gmra.mrb[0].mxu0 %v515
  %v862 = vpop.f32.mrb[0].mxu0
  %v863 = vadd.f32 0.0, %v862
  %v864 = vpop.f32.mrb[0].mxu0
  %v865 = vadd.f32 0.0, %v864
  %v866 = vpop.f32.mrb[0].mxu0
  %v867 = vadd.f32 0.0, %v866
  %v868 = vpop.f32.mrb[0].mxu0
  %v869 = vadd.f32 0.0, %v868
  %870 = vmatprep.mubr.bf16.mxu0 0
  %871 = vmatmul.mubr.bf16.gmra.mrb[0].mxu0 %v518
  %v872 = vpop.f32.mrb[0].mxu0
  %v873 = vadd.f32 0.0, %v872
  %v874 = vpop.f32.mrb[0].mxu0
  %v875 = vadd.f32 0.0, %v874
  %v876 = vpop.f32.mrb[0].mxu0
  %v877 = vadd.f32 0.0, %v876
  %v878 = vpop.f32.mrb[0].mxu0
  %v879 = vadd.f32 0.0, %v878
  %880 = vmatprep.mubr.bf16.mxu0 0
  %881 = vmatmul.mubr.bf16.gmra.mrb[0].mxu0 %v521
  %v882 = vpop.f32.mrb[0].mxu0
  %v883 = vadd.f32 0.0, %v882
  %v884 = vpop.f32.mrb[0].mxu0
  %v885 = vadd.f32 0.0, %v884
  %v886 = vpop.f32.mrb[0].mxu0
  %v887 = vadd.f32 0.0, %v886
  %v888 = vpop.f32.mrb[0].mxu0
  %v889 = vadd.f32 0.0, %v888
  %890 = vmatprep.mubr.bf16.mxu0 0
  %891 = vmatmul.mubr.bf16.gmra.mrb[0].mxu0 %v754
  %v892 = vpop.f32.mrb[0].mxu0
  %v893 = vadd.f32 0.0, %v892
  %v894 = vpop.f32.mrb[0].mxu0
  %v895 = vadd.f32 0.0, %v894
  %v896 = vpop.f32.mrb[0].mxu0
  %v897 = vadd.f32 0.0, %v896
  %v898 = vpop.f32.mrb[0].mxu0
  %v899 = vadd.f32 0.0, %v898
  %900 = vmatprep.mubr.bf16.mxu0 0
  %901 = vmatmul.mubr.bf16.gmra.mrb[0].mxu0 %v757
  %v902 = vpop.f32.mrb[0].mxu0
  %v903 = vadd.f32 0.0, %v902
  %v904 = vpop.f32.mrb[0].mxu0
  %v905 = vadd.f32 0.0, %v904
  %v906 = vpop.f32.mrb[0].mxu0
  %v907 = vadd.f32 0.0, %v906
  %v908 = vpop.f32.mrb[0].mxu0
  %v909 = vadd.f32 0.0, %v908
  %910 = vmatprep.mubr.bf16.mxu0 0
  %911 = vmatmul.mubr.bf16.gmra.mrb[0].mxu0 %v760
  %v912 = vpop.f32.mrb[0].mxu0
  %v913 = vadd.f32 0.0, %v912
  %v914 = vpop.f32.mrb[0].mxu0
  %v915 = vadd.f32 0.0, %v914
  %v916 = vpop.f32.mrb[0].mxu0
  %v917 = vadd.f32 0.0, %v916
  %v918 = vpop.f32.mrb[0].mxu0
  %v919 = vadd.f32 0.0, %v918
  %920 = vdwg.mxu0
  %v921 = vadd.f32 %v682, %v803
  %v922 = vadd.f32 %v683, %v805
  %v923 = vadd.f32 %v684, %v807
  %v924 = vadd.f32 %v685, %v809
  %v925 = vadd.f32 %v686, %v813
  %v926 = vadd.f32 %v687, %v815
  %v927 = vadd.f32 %v688, %v817
  %v928 = vadd.f32 %v689, %v819
  %v929 = vadd.f32 %v690, %v823
  %v930 = vadd.f32 %v691, %v825
  %v931 = vadd.f32 %v692, %v827
  %v932 = vadd.f32 %v693, %v829
  %v933 = vadd.f32 %v694, %v833
  %v934 = vadd.f32 %v695, %v835
  %v935 = vadd.f32 %v696, %v837
  %v936 = vadd.f32 %v697, %v839
  %v937 = vadd.f32 %v698, %v843
  %v938 = vadd.f32 %v699, %v845
  %v939 = vadd.f32 %v700, %v847
  %v940 = vadd.f32 %v701, %v849
  %v941 = vadd.f32 %v702, %v853
  %v942 = vadd.f32 %v703, %v855
  %v943 = vadd.f32 %v704, %v857
  %v944 = vadd.f32 %v705, %v859
  %v945 = vadd.f32 %v706, %v863
  %v946 = vadd.f32 %v707, %v865
  %v947 = vadd.f32 %v708, %v867
  %v948 = vadd.f32 %v709, %v869
  %v949 = vadd.f32 %v710, %v873
  %v950 = vadd.f32 %v711, %v875
  %v951 = vadd.f32 %v712, %v877
  %v952 = vadd.f32 %v713, %v879
  %v953 = vadd.f32 %v714, %v883
  %v954 = vadd.f32 %v715, %v885
  %v955 = vadd.f32 %v716, %v887
  %v956 = vadd.f32 %v717, %v889
  %v957 = vadd.f32 %v718, %v893
  %v958 = vadd.f32 %v719, %v895
  %v959 = vadd.f32 %v720, %v897
  %v960 = vadd.f32 %v721, %v899
  %v961 = vadd.f32 %v722, %v903
  %v962 = vadd.f32 %v723, %v905
  %v963 = vadd.f32 %v724, %v907
  %v964 = vadd.f32 %v725, %v909
  %v965 = vadd.f32 %v726, %v913
  %v966 = vadd.f32 %v727, %v915
  %v967 = vadd.f32 %v728, %v917
  %v968 = vadd.f32 %v729, %v919
  %s969 = scalar_lea.vmem %s1, 256
  %v970 = vld [vmem:[%s969] sm:$0xff]
  %v971 = vld [vmem:[%s969 + $0x8] sm:$0xff]
  %v972 = vld [vmem:[%s969 + $0x10] sm:$0xff]
  %v973 = vld [vmem:[%s969 + $0x18] sm:$0x33]
  %v978 = vunpack.c.l.b16 %v970
  %v979 = vunpack.c.h.b16 %v970
  %v980 = vunpack.c.l.b16 %v971
  %v981 = vunpack.c.h.b16 %v971
  %v982 = vunpack.c.l.b16 %v972
  %v983 = vunpack.c.h.b16 %v972
  %v984 = vunpack.c.l.b16 %v973
  %v985 = vunpack.c.h.b16 %v973
  %v986 = vpack.c.b16 %v980, %v978
  %v987 = vpack.c.b16 %v981, %v979
  %v988 = vpack.c.b16 %v984, %v982
  %v989 = vpack.c.b16 %v985, %v983
  %v993 = vsel %vm108, %v78, 0
  %v996 = vsel %vm108, %v79, 0
  %v999 = vsel %vm108, %v80, 0
  %v1002 = vsel %vm145, %v988, 0
  %v1005 = vsel %vm145, %v989, 0
  %1007 = vmatprep.subr.bf16.mxu0 %v987
  %1008 = vmatpush1.bf16.msra.mxu0 %v986
  %1009 = vmatprep.subr.bf16.mxu0 %v1005
  %1010 = vmatpush1.bf16.msra.mxu0 %v1002
  %1011 = vmatprep.subr.bf16.mxu0 0
  %1012 = vmatpush1.bf16.msra.mxu0 0
  %1013 = vmatprep.subr.bf16.mxu0 0
  %1014 = vmatpush1.bf16.msra.mxu0 0
  %1015 = vmatprep.subr.bf16.mxu0 0
  %1016 = vmatpush1.bf16.msra.mxu0 0
  %1017 = vmatprep.subr.bf16.mxu0 0
  %1018 = vmatpush1.bf16.msra.mxu0 0
  %1019 = vmatprep.subr.bf16.mxu0 0
  %1020 = vmatpush1.bf16.msra.mxu0 0
  %1021 = vmatprep.subr.bf16.mxu0 0
  %1022 = vmatpush1.bf16.msra.mxu0 0
  %1023 = vmatprep.subr.bf16.mxu0 0
  %1024 = vmatpush1.bf16.msra.mxu0 0
  %1025 = vmatprep.subr.bf16.mxu0 0
  %1026 = vmatpush1.bf16.msra.mxu0 0
  %1027 = vmatprep.subr.bf16.mxu0 0
  %1028 = vmatpush1.bf16.msra.mxu0 0
  %1029 = vmatprep.subr.bf16.mxu0 0
  %1030 = vmatpush1.bf16.msra.mxu0 0
  %1031 = vmatprep.subr.bf16.mxu0 0
  %1032 = vmatpush1.bf16.msra.mxu0 0
  %1033 = vmatprep.subr.bf16.mxu0 0
  %1034 = vmatpush1.bf16.msra.mxu0 0
  %1035 = vmatprep.subr.bf16.mxu0 0
  %1036 = vmatpush1.bf16.msra.mxu0 0
  %1037 = vmatprep.subr.bf16.mxu0 0
  %1038 = vmatpush1.bf16.msra.mxu0 0
  %1039 = vmatprep.mubr.bf16.mxu0 0
  %1040 = vmatmul.mubr.bf16.gmra.mrb[0].mxu0 %v137
  %v1041 = vpop.f32.mrb[0].mxu0
  %v1042 = vadd.f32 0.0, %v1041
  %v1043 = vpop.f32.mrb[0].mxu0
  %v1044 = vadd.f32 0.0, %v1043
  %v1045 = vpop.f32.mrb[0].mxu0
  %v1046 = vadd.f32 0.0, %v1045
  %v1047 = vpop.f32.mrb[0].mxu0
  %v1048 = vadd.f32 0.0, %v1047
  %1049 = vmatprep.mubr.bf16.mxu0 0
  %1050 = vmatmul.mubr.bf16.gmra.mrb[0].mxu0 %v140
  %v1051 = vpop.f32.mrb[0].mxu0
  %v1052 = vadd.f32 0.0, %v1051
  %v1053 = vpop.f32.mrb[0].mxu0
  %v1054 = vadd.f32 0.0, %v1053
  %v1055 = vpop.f32.mrb[0].mxu0
  %v1056 = vadd.f32 0.0, %v1055
  %v1057 = vpop.f32.mrb[0].mxu0
  %v1058 = vadd.f32 0.0, %v1057
  %1059 = vmatprep.mubr.bf16.mxu0 0
  %1060 = vmatmul.mubr.bf16.gmra.mrb[0].mxu0 %v143
  %v1061 = vpop.f32.mrb[0].mxu0
  %v1062 = vadd.f32 0.0, %v1061
  %v1063 = vpop.f32.mrb[0].mxu0
  %v1064 = vadd.f32 0.0, %v1063
  %v1065 = vpop.f32.mrb[0].mxu0
  %v1066 = vadd.f32 0.0, %v1065
  %v1067 = vpop.f32.mrb[0].mxu0
  %v1068 = vadd.f32 0.0, %v1067
  %1069 = vmatprep.mubr.bf16.mxu0 0
  %1070 = vmatmul.mubr.bf16.gmra.mrb[0].mxu0 %v515
  %v1071 = vpop.f32.mrb[0].mxu0
  %v1072 = vadd.f32 0.0, %v1071
  %v1073 = vpop.f32.mrb[0].mxu0
  %v1074 = vadd.f32 0.0, %v1073
  %v1075 = vpop.f32.mrb[0].mxu0
  %v1076 = vadd.f32 0.0, %v1075
  %v1077 = vpop.f32.mrb[0].mxu0
  %v1078 = vadd.f32 0.0, %v1077
  %1079 = vmatprep.mubr.bf16.mxu0 0
  %1080 = vmatmul.mubr.bf16.gmra.mrb[0].mxu0 %v518
  %v1081 = vpop.f32.mrb[0].mxu0
  %v1082 = vadd.f32 0.0, %v1081
  %v1083 = vpop.f32.mrb[0].mxu0
  %v1084 = vadd.f32 0.0, %v1083
  %v1085 = vpop.f32.mrb[0].mxu0
  %v1086 = vadd.f32 0.0, %v1085
  %v1087 = vpop.f32.mrb[0].mxu0
  %v1088 = vadd.f32 0.0, %v1087
  %1089 = vmatprep.mubr.bf16.mxu0 0
  %1090 = vmatmul.mubr.bf16.gmra.mrb[0].mxu0 %v521
  %v1091 = vpop.f32.mrb[0].mxu0
  %v1092 = vadd.f32 0.0, %v1091
  %v1093 = vpop.f32.mrb[0].mxu0
  %v1094 = vadd.f32 0.0, %v1093
  %v1095 = vpop.f32.mrb[0].mxu0
  %v1096 = vadd.f32 0.0, %v1095
  %v1097 = vpop.f32.mrb[0].mxu0
  %v1098 = vadd.f32 0.0, %v1097
  %1099 = vmatprep.mubr.bf16.mxu0 0
  %1100 = vmatmul.mubr.bf16.gmra.mrb[0].mxu0 %v754
  %v1101 = vpop.f32.mrb[0].mxu0
  %v1102 = vadd.f32 0.0, %v1101
  %v1103 = vpop.f32.mrb[0].mxu0
  %v1104 = vadd.f32 0.0, %v1103
  %v1105 = vpop.f32.mrb[0].mxu0
  %v1106 = vadd.f32 0.0, %v1105
  %v1107 = vpop.f32.mrb[0].mxu0
  %v1108 = vadd.f32 0.0, %v1107
  %1109 = vmatprep.mubr.bf16.mxu0 0
  %1110 = vmatmul.mubr.bf16.gmra.mrb[0].mxu0 %v757
  %v1111 = vpop.f32.mrb[0].mxu0
  %v1112 = vadd.f32 0.0, %v1111
  %v1113 = vpop.f32.mrb[0].mxu0
  %v1114 = vadd.f32 0.0, %v1113
  %v1115 = vpop.f32.mrb[0].mxu0
  %v1116 = vadd.f32 0.0, %v1115
  %v1117 = vpop.f32.mrb[0].mxu0
  %v1118 = vadd.f32 0.0, %v1117
  %1119 = vmatprep.mubr.bf16.mxu0 0
  %1120 = vmatmul.mubr.bf16.gmra.mrb[0].mxu0 %v760
  %v1121 = vpop.f32.mrb[0].mxu0
  %v1122 = vadd.f32 0.0, %v1121
  %v1123 = vpop.f32.mrb[0].mxu0
  %v1124 = vadd.f32 0.0, %v1123
  %v1125 = vpop.f32.mrb[0].mxu0
  %v1126 = vadd.f32 0.0, %v1125
  %v1127 = vpop.f32.mrb[0].mxu0
  %v1128 = vadd.f32 0.0, %v1127
  %1129 = vmatprep.mubr.bf16.mxu0 0
  %1130 = vmatmul.mubr.bf16.gmra.mrb[0].mxu0 %v993
  %v1131 = vpop.f32.mrb[0].mxu0
  %v1132 = vadd.f32 0.0, %v1131
  %v1133 = vpop.f32.mrb[0].mxu0
  %v1134 = vadd.f32 0.0, %v1133
  %v1135 = vpop.f32.mrb[0].mxu0
  %v1136 = vadd.f32 0.0, %v1135
  %v1137 = vpop.f32.mrb[0].mxu0
  %v1138 = vadd.f32 0.0, %v1137
  %1139 = vmatprep.mubr.bf16.mxu0 0
  %1140 = vmatmul.mubr.bf16.gmra.mrb[0].mxu0 %v996
  %v1141 = vpop.f32.mrb[0].mxu0
  %v1142 = vadd.f32 0.0, %v1141
  %v1143 = vpop.f32.mrb[0].mxu0
  %v1144 = vadd.f32 0.0, %v1143
  %v1145 = vpop.f32.mrb[0].mxu0
  %v1146 = vadd.f32 0.0, %v1145
  %v1147 = vpop.f32.mrb[0].mxu0
  %v1148 = vadd.f32 0.0, %v1147
  %1149 = vmatprep.mubr.bf16.mxu0 0
  %1150 = vmatmul.mubr.bf16.gmra.mrb[0].mxu0 %v999
  %v1151 = vpop.f32.mrb[0].mxu0
  %v1152 = vadd.f32 0.0, %v1151
  %v1153 = vpop.f32.mrb[0].mxu0
  %v1154 = vadd.f32 0.0, %v1153
  %v1155 = vpop.f32.mrb[0].mxu0
  %v1156 = vadd.f32 0.0, %v1155
  %v1157 = vpop.f32.mrb[0].mxu0
  %v1158 = vadd.f32 0.0, %v1157
  %1159 = vdwg.mxu0
  %v1160 = vadd.f32 %v921, %v1042
  %v1161 = vadd.f32 %v922, %v1044
  %v1162 = vadd.f32 %v923, %v1046
  %v1163 = vadd.f32 %v924, %v1048
  %v1164 = vadd.f32 %v925, %v1052
  %v1165 = vadd.f32 %v926, %v1054
  %v1166 = vadd.f32 %v927, %v1056
  %v1167 = vadd.f32 %v928, %v1058
  %v1168 = vadd.f32 %v929, %v1062
  %v1169 = vadd.f32 %v930, %v1064
  %v1170 = vadd.f32 %v931, %v1066
  %v1171 = vadd.f32 %v932, %v1068
  %v1172 = vadd.f32 %v933, %v1072
  %v1173 = vadd.f32 %v934, %v1074
  %v1174 = vadd.f32 %v935, %v1076
  %v1175 = vadd.f32 %v936, %v1078
  %v1176 = vadd.f32 %v937, %v1082
  %v1177 = vadd.f32 %v938, %v1084
  %v1178 = vadd.f32 %v939, %v1086
  %v1179 = vadd.f32 %v940, %v1088
  %v1180 = vadd.f32 %v941, %v1092
  %v1181 = vadd.f32 %v942, %v1094
  %v1182 = vadd.f32 %v943, %v1096
  %v1183 = vadd.f32 %v944, %v1098
  %v1184 = vadd.f32 %v945, %v1102
  %v1185 = vadd.f32 %v946, %v1104
  %v1186 = vadd.f32 %v947, %v1106
  %v1187 = vadd.f32 %v948, %v1108
  %v1188 = vadd.f32 %v949, %v1112
  %v1189 = vadd.f32 %v950, %v1114
  %v1190 = vadd.f32 %v951, %v1116
  %v1191 = vadd.f32 %v952, %v1118
  %v1192 = vadd.f32 %v953, %v1122
  %v1193 = vadd.f32 %v954, %v1124
  %v1194 = vadd.f32 %v955, %v1126
  %v1195 = vadd.f32 %v956, %v1128
  %v1196 = vadd.f32 %v957, %v1132
  %v1197 = vadd.f32 %v958, %v1134
  %v1198 = vadd.f32 %v959, %v1136
  %v1199 = vadd.f32 %v960, %v1138
  %v1200 = vadd.f32 %v961, %v1142
  %v1201 = vadd.f32 %v962, %v1144
  %v1202 = vadd.f32 %v963, %v1146
  %v1203 = vadd.f32 %v964, %v1148
  %v1204 = vadd.f32 %v965, %v1152
  %v1205 = vadd.f32 %v966, %v1154
  %v1206 = vadd.f32 %v967, %v1156
  %v1207 = vadd.f32 %v968, %v1158
  %s1208 = scalar_lea.vmem %s1, 32
  %v1209 = vld [vmem:[%s1208] sm:$0xff]
  %v1210 = vld [vmem:[%s1208 + $0x8] sm:$0xff]
  %v1211 = vld [vmem:[%s1208 + $0x10] sm:$0xff]
  %v1212 = vld [vmem:[%s1208 + $0x18] sm:$0x33]
  %s1213 = scalar_lea.vmem %s1, 96
  %v1214 = vld [vmem:[%s1213] sm:$0xff]
  %v1215 = vld [vmem:[%s1213 + $0x8] sm:$0xff]
  %v1216 = vld [vmem:[%s1213 + $0x10] sm:$0xff]
  %v1217 = vld [vmem:[%s1213 + $0x18] sm:$0x33]
  %v1222 = vunpack.c.l.b16 %v1214
  %v1223 = vunpack.c.h.b16 %v1214
  %v1224 = vunpack.c.l.b16 %v1215
  %v1225 = vunpack.c.h.b16 %v1215
  %v1226 = vunpack.c.l.b16 %v1216
  %v1227 = vunpack.c.h.b16 %v1216
  %v1228 = vunpack.c.l.b16 %v1217
  %v1229 = vunpack.c.h.b16 %v1217
  %v1230 = vpack.c.b16 %v1224, %v1222
  %v1231 = vpack.c.b16 %v1225, %v1223
  %v1232 = vpack.c.b16 %v1228, %v1226
  %v1233 = vpack.c.b16 %v1229, %v1227
  %v1237 = vsel %vm145, %v1232, 0
  %v1240 = vsel %vm145, %v1233, 0
  %1242 = vmatprep.subr.bf16.mxu0 %v1231
  %1243 = vmatpush1.bf16.msra.mxu0 %v1230
  %1244 = vmatprep.subr.bf16.mxu0 %v1240
  %1245 = vmatpush1.bf16.msra.mxu0 %v1237
  %1246 = vmatprep.subr.bf16.mxu0 0
  %1247 = vmatpush1.bf16.msra.mxu0 0
  %1248 = vmatprep.subr.bf16.mxu0 0
  %1249 = vmatpush1.bf16.msra.mxu0 0
  %1250 = vmatprep.subr.bf16.mxu0 0
  %1251 = vmatpush1.bf16.msra.mxu0 0
  %1252 = vmatprep.subr.bf16.mxu0 0
  %1253 = vmatpush1.bf16.msra.mxu0 0
  %1254 = vmatprep.subr.bf16.mxu0 0
  %1255 = vmatpush1.bf16.msra.mxu0 0
  %1256 = vmatprep.subr.bf16.mxu0 0
  %1257 = vmatpush1.bf16.msra.mxu0 0
  %1258 = vmatprep.subr.bf16.mxu0 0
  %1259 = vmatpush1.bf16.msra.mxu0 0
  %1260 = vmatprep.subr.bf16.mxu0 0
  %1261 = vmatpush1.bf16.msra.mxu0 0
  %1262 = vmatprep.subr.bf16.mxu0 0
  %1263 = vmatpush1.bf16.msra.mxu0 0
  %1264 = vmatprep.subr.bf16.mxu0 0
  %1265 = vmatpush1.bf16.msra.mxu0 0
  %1266 = vmatprep.subr.bf16.mxu0 0
  %1267 = vmatpush1.bf16.msra.mxu0 0
  %1268 = vmatprep.subr.bf16.mxu0 0
  %1269 = vmatpush1.bf16.msra.mxu0 0
  %1270 = vmatprep.subr.bf16.mxu0 0
  %1271 = vmatpush1.bf16.msra.mxu0 0
  %1272 = vmatprep.subr.bf16.mxu0 0
  %1273 = vmatpush1.bf16.msra.mxu0 0
  %1274 = vmatprep.mubr.bf16.mxu0 0
  %1275 = vmatmul.mubr.bf16.gmra.mrb[0].mxu0 %v110
  %v1276 = vpop.f32.mrb[0].mxu0
  %v1277 = vadd.f32 0.0, %v1276
  %v1278 = vpop.f32.mrb[0].mxu0
  %v1279 = vadd.f32 0.0, %v1278
  %v1280 = vpop.f32.mrb[0].mxu0
  %v1281 = vadd.f32 0.0, %v1280
  %v1282 = vpop.f32.mrb[0].mxu0
  %v1283 = vadd.f32 0.0, %v1282
  %1284 = vmatprep.mubr.bf16.mxu0 0
  %1285 = vmatmul.mubr.bf16.gmra.mrb[0].mxu0 %v113
  %v1286 = vpop.f32.mrb[0].mxu0
  %v1287 = vadd.f32 0.0, %v1286
  %v1288 = vpop.f32.mrb[0].mxu0
  %v1289 = vadd.f32 0.0, %v1288
  %v1290 = vpop.f32.mrb[0].mxu0
  %v1291 = vadd.f32 0.0, %v1290
  %v1292 = vpop.f32.mrb[0].mxu0
  %v1293 = vadd.f32 0.0, %v1292
  %1294 = vmatprep.mubr.bf16.mxu0 0
  %1295 = vmatmul.mubr.bf16.gmra.mrb[0].mxu0 %v116
  %v1296 = vpop.f32.mrb[0].mxu0
  %v1297 = vadd.f32 0.0, %v1296
  %v1298 = vpop.f32.mrb[0].mxu0
  %v1299 = vadd.f32 0.0, %v1298
  %v1300 = vpop.f32.mrb[0].mxu0
  %v1301 = vadd.f32 0.0, %v1300
  %v1302 = vpop.f32.mrb[0].mxu0
  %v1303 = vadd.f32 0.0, %v1302
  %1304 = vmatprep.mubr.bf16.mxu0 0
  %1305 = vmatmul.mubr.bf16.gmra.mrb[0].mxu0 %v119
  %v1306 = vpop.f32.mrb[0].mxu0
  %v1307 = vadd.f32 0.0, %v1306
  %v1308 = vpop.f32.mrb[0].mxu0
  %v1309 = vadd.f32 0.0, %v1308
  %v1310 = vpop.f32.mrb[0].mxu0
  %v1311 = vadd.f32 0.0, %v1310
  %v1312 = vpop.f32.mrb[0].mxu0
  %v1313 = vadd.f32 0.0, %v1312
  %1314 = vmatprep.mubr.bf16.mxu0 0
  %1315 = vmatmul.mubr.bf16.gmra.mrb[0].mxu0 %v122
  %v1316 = vpop.f32.mrb[0].mxu0
  %v1317 = vadd.f32 0.0, %v1316
  %v1318 = vpop.f32.mrb[0].mxu0
  %v1319 = vadd.f32 0.0, %v1318
  %v1320 = vpop.f32.mrb[0].mxu0
  %v1321 = vadd.f32 0.0, %v1320
  %v1322 = vpop.f32.mrb[0].mxu0
  %v1323 = vadd.f32 0.0, %v1322
  %1324 = vmatprep.mubr.bf16.mxu0 0
  %1325 = vmatmul.mubr.bf16.gmra.mrb[0].mxu0 %v125
  %v1326 = vpop.f32.mrb[0].mxu0
  %v1327 = vadd.f32 0.0, %v1326
  %v1328 = vpop.f32.mrb[0].mxu0
  %v1329 = vadd.f32 0.0, %v1328
  %v1330 = vpop.f32.mrb[0].mxu0
  %v1331 = vadd.f32 0.0, %v1330
  %v1332 = vpop.f32.mrb[0].mxu0
  %v1333 = vadd.f32 0.0, %v1332
  %1334 = vmatprep.mubr.bf16.mxu0 0
  %1335 = vmatmul.mubr.bf16.gmra.mrb[0].mxu0 %v128
  %v1336 = vpop.f32.mrb[0].mxu0
  %v1337 = vadd.f32 0.0, %v1336
  %v1338 = vpop.f32.mrb[0].mxu0
  %v1339 = vadd.f32 0.0, %v1338
  %v1340 = vpop.f32.mrb[0].mxu0
  %v1341 = vadd.f32 0.0, %v1340
  %v1342 = vpop.f32.mrb[0].mxu0
  %v1343 = vadd.f32 0.0, %v1342
  %1344 = vmatprep.mubr.bf16.mxu0 0
  %1345 = vmatmul.mubr.bf16.gmra.mrb[0].mxu0 %v131
  %v1346 = vpop.f32.mrb[0].mxu0
  %v1347 = vadd.f32 0.0, %v1346
  %v1348 = vpop.f32.mrb[0].mxu0
  %v1349 = vadd.f32 0.0, %v1348
  %v1350 = vpop.f32.mrb[0].mxu0
  %v1351 = vadd.f32 0.0, %v1350
  %v1352 = vpop.f32.mrb[0].mxu0
  %v1353 = vadd.f32 0.0, %v1352
  %1354 = vmatprep.mubr.bf16.mxu0 0
  %1355 = vmatmul.mubr.bf16.gmra.mrb[0].mxu0 %v134
  %v1356 = vpop.f32.mrb[0].mxu0
  %v1357 = vadd.f32 0.0, %v1356
  %v1358 = vpop.f32.mrb[0].mxu0
  %v1359 = vadd.f32 0.0, %v1358
  %v1360 = vpop.f32.mrb[0].mxu0
  %v1361 = vadd.f32 0.0, %v1360
  %v1362 = vpop.f32.mrb[0].mxu0
  %v1363 = vadd.f32 0.0, %v1362
  %1364 = vmatprep.mubr.bf16.mxu0 0
  %1365 = vmatmul.mubr.bf16.gmra.mrb[0].mxu0 %v137
  %v1366 = vpop.f32.mrb[0].mxu0
  %v1367 = vadd.f32 0.0, %v1366
  %v1368 = vpop.f32.mrb[0].mxu0
  %v1369 = vadd.f32 0.0, %v1368
  %v1370 = vpop.f32.mrb[0].mxu0
  %v1371 = vadd.f32 0.0, %v1370
  %v1372 = vpop.f32.mrb[0].mxu0
  %v1373 = vadd.f32 0.0, %v1372
  %1374 = vmatprep.mubr.bf16.mxu0 0
  %1375 = vmatmul.mubr.bf16.gmra.mrb[0].mxu0 %v140
  %v1376 = vpop.f32.mrb[0].mxu0
  %v1377 = vadd.f32 0.0, %v1376
  %v1378 = vpop.f32.mrb[0].mxu0
  %v1379 = vadd.f32 0.0, %v1378
  %v1380 = vpop.f32.mrb[0].mxu0
  %v1381 = vadd.f32 0.0, %v1380
  %v1382 = vpop.f32.mrb[0].mxu0
  %v1383 = vadd.f32 0.0, %v1382
  %1384 = vmatprep.mubr.bf16.mxu0 0
  %1385 = vmatmul.mubr.bf16.gmra.mrb[0].mxu0 %v143
  %v1386 = vpop.f32.mrb[0].mxu0
  %v1387 = vadd.f32 0.0, %v1386
  %v1388 = vpop.f32.mrb[0].mxu0
  %v1389 = vadd.f32 0.0, %v1388
  %v1390 = vpop.f32.mrb[0].mxu0
  %v1391 = vadd.f32 0.0, %v1390
  %v1392 = vpop.f32.mrb[0].mxu0
  %v1393 = vadd.f32 0.0, %v1392
  %1394 = vdwg.mxu0
  %v1399 = vunpack.c.l.b16 %v1209
  %v1400 = vunpack.c.h.b16 %v1209
  %v1401 = vunpack.c.l.b16 %v1210
  %v1402 = vunpack.c.h.b16 %v1210
  %v1403 = vunpack.c.l.b16 %v1211
  %v1404 = vunpack.c.h.b16 %v1211
  %v1405 = vunpack.c.l.b16 %v1212
  %v1406 = vunpack.c.h.b16 %v1212
  %v1407 = vpack.c.b16 %v1401, %v1399
  %v1408 = vpack.c.b16 %v1402, %v1400
  %v1409 = vpack.c.b16 %v1405, %v1403
  %v1410 = vpack.c.b16 %v1406, %v1404
  %v1414 = vsel %vm145, %v1409, 0
  %v1417 = vsel %vm145, %v1410, 0
  %1419 = vmatprep.subr.bf16.mxu0 %v1408
  %1420 = vmatpush1.bf16.msra.mxu0 %v1407
  %1421 = vmatprep.subr.bf16.mxu0 %v1417
  %1422 = vmatpush1.bf16.msra.mxu0 %v1414
  %1423 = vmatprep.subr.bf16.mxu0 0
  %1424 = vmatpush1.bf16.msra.mxu0 0
  %1425 = vmatprep.subr.bf16.mxu0 0
  %1426 = vmatpush1.bf16.msra.mxu0 0
  %1427 = vmatprep.subr.bf16.mxu0 0
  %1428 = vmatpush1.bf16.msra.mxu0 0
  %1429 = vmatprep.subr.bf16.mxu0 0
  %1430 = vmatpush1.bf16.msra.mxu0 0
  %1431 = vmatprep.subr.bf16.mxu0 0
  %1432 = vmatpush1.bf16.msra.mxu0 0
  %1433 = vmatprep.subr.bf16.mxu0 0
  %1434 = vmatpush1.bf16.msra.mxu0 0
  %1435 = vmatprep.subr.bf16.mxu0 0
  %1436 = vmatpush1.bf16.msra.mxu0 0
  %1437 = vmatprep.subr.bf16.mxu0 0
  %1438 = vmatpush1.bf16.msra.mxu0 0
  %1439 = vmatprep.subr.bf16.mxu0 0
  %1440 = vmatpush1.bf16.msra.mxu0 0
  %1441 = vmatprep.subr.bf16.mxu0 0
  %1442 = vmatpush1.bf16.msra.mxu0 0
  %1443 = vmatprep.subr.bf16.mxu0 0
  %1444 = vmatpush1.bf16.msra.mxu0 0
  %1445 = vmatprep.subr.bf16.mxu0 0
  %1446 = vmatpush1.bf16.msra.mxu0 0
  %1447 = vmatprep.subr.bf16.mxu0 0
  %1448 = vmatpush1.bf16.msra.mxu0 0
  %1449 = vmatprep.subr.bf16.mxu0 0
  %1450 = vmatpush1.bf16.msra.mxu0 0
  %1451 = vmatprep.mubr.bf16.mxu0 0
  %1452 = vmatmul.mubr.bf16.gmra.mrb[0].mxu0 %v324
  %v1453 = vpop.f32.mrb[0].mxu0
  %v1454 = vadd.f32 %v1277, %v1453
  %v1455 = vpop.f32.mrb[0].mxu0
  %v1456 = vadd.f32 %v1279, %v1455
  %v1457 = vpop.f32.mrb[0].mxu0
  %v1458 = vadd.f32 %v1281, %v1457
  %v1459 = vpop.f32.mrb[0].mxu0
  %v1460 = vadd.f32 %v1283, %v1459
  %1461 = vmatprep.mubr.bf16.mxu0 0
  %1462 = vmatmul.mubr.bf16.gmra.mrb[0].mxu0 %v327
  %v1463 = vpop.f32.mrb[0].mxu0
  %v1464 = vadd.f32 %v1287, %v1463
  %v1465 = vpop.f32.mrb[0].mxu0
  %v1466 = vadd.f32 %v1289, %v1465
  %v1467 = vpop.f32.mrb[0].mxu0
  %v1468 = vadd.f32 %v1291, %v1467
  %v1469 = vpop.f32.mrb[0].mxu0
  %v1470 = vadd.f32 %v1293, %v1469
  %1471 = vmatprep.mubr.bf16.mxu0 0
  %1472 = vmatmul.mubr.bf16.gmra.mrb[0].mxu0 %v330
  %v1473 = vpop.f32.mrb[0].mxu0
  %v1474 = vadd.f32 %v1297, %v1473
  %v1475 = vpop.f32.mrb[0].mxu0
  %v1476 = vadd.f32 %v1299, %v1475
  %v1477 = vpop.f32.mrb[0].mxu0
  %v1478 = vadd.f32 %v1301, %v1477
  %v1479 = vpop.f32.mrb[0].mxu0
  %v1480 = vadd.f32 %v1303, %v1479
  %1481 = vmatprep.mubr.bf16.mxu0 0
  %1482 = vmatmul.mubr.bf16.gmra.mrb[0].mxu0 %v110
  %v1483 = vpop.f32.mrb[0].mxu0
  %v1484 = vadd.f32 %v1307, %v1483
  %v1485 = vpop.f32.mrb[0].mxu0
  %v1486 = vadd.f32 %v1309, %v1485
  %v1487 = vpop.f32.mrb[0].mxu0
  %v1488 = vadd.f32 %v1311, %v1487
  %v1489 = vpop.f32.mrb[0].mxu0
  %v1490 = vadd.f32 %v1313, %v1489
  %1491 = vmatprep.mubr.bf16.mxu0 0
  %1492 = vmatmul.mubr.bf16.gmra.mrb[0].mxu0 %v113
  %v1493 = vpop.f32.mrb[0].mxu0
  %v1494 = vadd.f32 %v1317, %v1493
  %v1495 = vpop.f32.mrb[0].mxu0
  %v1496 = vadd.f32 %v1319, %v1495
  %v1497 = vpop.f32.mrb[0].mxu0
  %v1498 = vadd.f32 %v1321, %v1497
  %v1499 = vpop.f32.mrb[0].mxu0
  %v1500 = vadd.f32 %v1323, %v1499
  %1501 = vmatprep.mubr.bf16.mxu0 0
  %1502 = vmatmul.mubr.bf16.gmra.mrb[0].mxu0 %v116
  %v1503 = vpop.f32.mrb[0].mxu0
  %v1504 = vadd.f32 %v1327, %v1503
  %v1505 = vpop.f32.mrb[0].mxu0
  %v1506 = vadd.f32 %v1329, %v1505
  %v1507 = vpop.f32.mrb[0].mxu0
  %v1508 = vadd.f32 %v1331, %v1507
  %v1509 = vpop.f32.mrb[0].mxu0
  %v1510 = vadd.f32 %v1333, %v1509
  %1511 = vmatprep.mubr.bf16.mxu0 0
  %1512 = vmatmul.mubr.bf16.gmra.mrb[0].mxu0 %v119
  %v1513 = vpop.f32.mrb[0].mxu0
  %v1514 = vadd.f32 %v1337, %v1513
  %v1515 = vpop.f32.mrb[0].mxu0
  %v1516 = vadd.f32 %v1339, %v1515
  %v1517 = vpop.f32.mrb[0].mxu0
  %v1518 = vadd.f32 %v1341, %v1517
  %v1519 = vpop.f32.mrb[0].mxu0
  %v1520 = vadd.f32 %v1343, %v1519
  %1521 = vmatprep.mubr.bf16.mxu0 0
  %1522 = vmatmul.mubr.bf16.gmra.mrb[0].mxu0 %v122
  %v1523 = vpop.f32.mrb[0].mxu0
  %v1524 = vadd.f32 %v1347, %v1523
  %v1525 = vpop.f32.mrb[0].mxu0
  %v1526 = vadd.f32 %v1349, %v1525
  %v1527 = vpop.f32.mrb[0].mxu0
  %v1528 = vadd.f32 %v1351, %v1527
  %v1529 = vpop.f32.mrb[0].mxu0
  %v1530 = vadd.f32 %v1353, %v1529
  %1531 = vmatprep.mubr.bf16.mxu0 0
  %1532 = vmatmul.mubr.bf16.gmra.mrb[0].mxu0 %v125
  %v1533 = vpop.f32.mrb[0].mxu0
  %v1534 = vadd.f32 %v1357, %v1533
  %v1535 = vpop.f32.mrb[0].mxu0
  %v1536 = vadd.f32 %v1359, %v1535
  %v1537 = vpop.f32.mrb[0].mxu0
  %v1538 = vadd.f32 %v1361, %v1537
  %v1539 = vpop.f32.mrb[0].mxu0
  %v1540 = vadd.f32 %v1363, %v1539
  %1541 = vmatprep.mubr.bf16.mxu0 0
  %1542 = vmatmul.mubr.bf16.gmra.mrb[0].mxu0 %v128
  %v1543 = vpop.f32.mrb[0].mxu0
  %v1544 = vadd.f32 %v1367, %v1543
  %v1545 = vpop.f32.mrb[0].mxu0
  %v1546 = vadd.f32 %v1369, %v1545
  %v1547 = vpop.f32.mrb[0].mxu0
  %v1548 = vadd.f32 %v1371, %v1547
  %v1549 = vpop.f32.mrb[0].mxu0
  %v1550 = vadd.f32 %v1373, %v1549
  %1551 = vmatprep.mubr.bf16.mxu0 0
  %1552 = vmatmul.mubr.bf16.gmra.mrb[0].mxu0 %v131
  %v1553 = vpop.f32.mrb[0].mxu0
  %v1554 = vadd.f32 %v1377, %v1553
  %v1555 = vpop.f32.mrb[0].mxu0
  %v1556 = vadd.f32 %v1379, %v1555
  %v1557 = vpop.f32.mrb[0].mxu0
  %v1558 = vadd.f32 %v1381, %v1557
  %v1559 = vpop.f32.mrb[0].mxu0
  %v1560 = vadd.f32 %v1383, %v1559
  %1561 = vmatprep.mubr.bf16.mxu0 0
  %1562 = vmatmul.mubr.bf16.gmra.mrb[0].mxu0 %v134
  %v1563 = vpop.f32.mrb[0].mxu0
  %v1564 = vadd.f32 %v1387, %v1563
  %v1565 = vpop.f32.mrb[0].mxu0
  %v1566 = vadd.f32 %v1389, %v1565
  %v1567 = vpop.f32.mrb[0].mxu0
  %v1568 = vadd.f32 %v1391, %v1567
  %v1569 = vpop.f32.mrb[0].mxu0
  %v1570 = vadd.f32 %v1393, %v1569
  %1571 = vdwg.mxu0
  %s1572 = scalar_lea.vmem %s1, 160
  %v1573 = vld [vmem:[%s1572] sm:$0xff]
  %v1574 = vld [vmem:[%s1572 + $0x8] sm:$0xff]
  %v1575 = vld [vmem:[%s1572 + $0x10] sm:$0xff]
  %v1576 = vld [vmem:[%s1572 + $0x18] sm:$0x33]
  %v1581 = vunpack.c.l.b16 %v1573
  %v1582 = vunpack.c.h.b16 %v1573
  %v1583 = vunpack.c.l.b16 %v1574
  %v1584 = vunpack.c.h.b16 %v1574
  %v1585 = vunpack.c.l.b16 %v1575
  %v1586 = vunpack.c.h.b16 %v1575
  %v1587 = vunpack.c.l.b16 %v1576
  %v1588 = vunpack.c.h.b16 %v1576
  %v1589 = vpack.c.b16 %v1583, %v1581
  %v1590 = vpack.c.b16 %v1584, %v1582
  %v1591 = vpack.c.b16 %v1587, %v1585
  %v1592 = vpack.c.b16 %v1588, %v1586
  %v1596 = vsel %vm145, %v1591, 0
  %v1599 = vsel %vm145, %v1592, 0
  %1601 = vmatprep.subr.bf16.mxu0 %v1590
  %1602 = vmatpush1.bf16.msra.mxu0 %v1589
  %1603 = vmatprep.subr.bf16.mxu0 %v1599
  %1604 = vmatpush1.bf16.msra.mxu0 %v1596
  %1605 = vmatprep.subr.bf16.mxu0 0
  %1606 = vmatpush1.bf16.msra.mxu0 0
  %1607 = vmatprep.subr.bf16.mxu0 0
  %1608 = vmatpush1.bf16.msra.mxu0 0
  %1609 = vmatprep.subr.bf16.mxu0 0
  %1610 = vmatpush1.bf16.msra.mxu0 0
  %1611 = vmatprep.subr.bf16.mxu0 0
  %1612 = vmatpush1.bf16.msra.mxu0 0
  %1613 = vmatprep.subr.bf16.mxu0 0
  %1614 = vmatpush1.bf16.msra.mxu0 0
  %1615 = vmatprep.subr.bf16.mxu0 0
  %1616 = vmatpush1.bf16.msra.mxu0 0
  %1617 = vmatprep.subr.bf16.mxu0 0
  %1618 = vmatpush1.bf16.msra.mxu0 0
  %1619 = vmatprep.subr.bf16.mxu0 0
  %1620 = vmatpush1.bf16.msra.mxu0 0
  %1621 = vmatprep.subr.bf16.mxu0 0
  %1622 = vmatpush1.bf16.msra.mxu0 0
  %1623 = vmatprep.subr.bf16.mxu0 0
  %1624 = vmatpush1.bf16.msra.mxu0 0
  %1625 = vmatprep.subr.bf16.mxu0 0
  %1626 = vmatpush1.bf16.msra.mxu0 0
  %1627 = vmatprep.subr.bf16.mxu0 0
  %1628 = vmatpush1.bf16.msra.mxu0 0
  %1629 = vmatprep.subr.bf16.mxu0 0
  %1630 = vmatpush1.bf16.msra.mxu0 0
  %1631 = vmatprep.subr.bf16.mxu0 0
  %1632 = vmatpush1.bf16.msra.mxu0 0
  %1633 = vmatprep.mubr.bf16.mxu0 0
  %1634 = vmatmul.mubr.bf16.gmra.mrb[0].mxu0 %v119
  %v1635 = vpop.f32.mrb[0].mxu0
  %v1636 = vadd.f32 0.0, %v1635
  %v1637 = vpop.f32.mrb[0].mxu0
  %v1638 = vadd.f32 0.0, %v1637
  %v1639 = vpop.f32.mrb[0].mxu0
  %v1640 = vadd.f32 0.0, %v1639
  %v1641 = vpop.f32.mrb[0].mxu0
  %v1642 = vadd.f32 0.0, %v1641
  %1643 = vmatprep.mubr.bf16.mxu0 0
  %1644 = vmatmul.mubr.bf16.gmra.mrb[0].mxu0 %v122
  %v1645 = vpop.f32.mrb[0].mxu0
  %v1646 = vadd.f32 0.0, %v1645
  %v1647 = vpop.f32.mrb[0].mxu0
  %v1648 = vadd.f32 0.0, %v1647
  %v1649 = vpop.f32.mrb[0].mxu0
  %v1650 = vadd.f32 0.0, %v1649
  %v1651 = vpop.f32.mrb[0].mxu0
  %v1652 = vadd.f32 0.0, %v1651
  %1653 = vmatprep.mubr.bf16.mxu0 0
  %1654 = vmatmul.mubr.bf16.gmra.mrb[0].mxu0 %v125
  %v1655 = vpop.f32.mrb[0].mxu0
  %v1656 = vadd.f32 0.0, %v1655
  %v1657 = vpop.f32.mrb[0].mxu0
  %v1658 = vadd.f32 0.0, %v1657
  %v1659 = vpop.f32.mrb[0].mxu0
  %v1660 = vadd.f32 0.0, %v1659
  %v1661 = vpop.f32.mrb[0].mxu0
  %v1662 = vadd.f32 0.0, %v1661
  %1663 = vmatprep.mubr.bf16.mxu0 0
  %1664 = vmatmul.mubr.bf16.gmra.mrb[0].mxu0 %v128
  %v1665 = vpop.f32.mrb[0].mxu0
  %v1666 = vadd.f32 0.0, %v1665
  %v1667 = vpop.f32.mrb[0].mxu0
  %v1668 = vadd.f32 0.0, %v1667
  %v1669 = vpop.f32.mrb[0].mxu0
  %v1670 = vadd.f32 0.0, %v1669
  %v1671 = vpop.f32.mrb[0].mxu0
  %v1672 = vadd.f32 0.0, %v1671
  %1673 = vmatprep.mubr.bf16.mxu0 0
  %1674 = vmatmul.mubr.bf16.gmra.mrb[0].mxu0 %v131
  %v1675 = vpop.f32.mrb[0].mxu0
  %v1676 = vadd.f32 0.0, %v1675
  %v1677 = vpop.f32.mrb[0].mxu0
  %v1678 = vadd.f32 0.0, %v1677
  %v1679 = vpop.f32.mrb[0].mxu0
  %v1680 = vadd.f32 0.0, %v1679
  %v1681 = vpop.f32.mrb[0].mxu0
  %v1682 = vadd.f32 0.0, %v1681
  %1683 = vmatprep.mubr.bf16.mxu0 0
  %1684 = vmatmul.mubr.bf16.gmra.mrb[0].mxu0 %v134
  %v1685 = vpop.f32.mrb[0].mxu0
  %v1686 = vadd.f32 0.0, %v1685
  %v1687 = vpop.f32.mrb[0].mxu0
  %v1688 = vadd.f32 0.0, %v1687
  %v1689 = vpop.f32.mrb[0].mxu0
  %v1690 = vadd.f32 0.0, %v1689
  %v1691 = vpop.f32.mrb[0].mxu0
  %v1692 = vadd.f32 0.0, %v1691
  %1693 = vmatprep.mubr.bf16.mxu0 0
  %1694 = vmatmul.mubr.bf16.gmra.mrb[0].mxu0 %v137
  %v1695 = vpop.f32.mrb[0].mxu0
  %v1696 = vadd.f32 0.0, %v1695
  %v1697 = vpop.f32.mrb[0].mxu0
  %v1698 = vadd.f32 0.0, %v1697
  %v1699 = vpop.f32.mrb[0].mxu0
  %v1700 = vadd.f32 0.0, %v1699
  %v1701 = vpop.f32.mrb[0].mxu0
  %v1702 = vadd.f32 0.0, %v1701
  %1703 = vmatprep.mubr.bf16.mxu0 0
  %1704 = vmatmul.mubr.bf16.gmra.mrb[0].mxu0 %v140
  %v1705 = vpop.f32.mrb[0].mxu0
  %v1706 = vadd.f32 0.0, %v1705
  %v1707 = vpop.f32.mrb[0].mxu0
  %v1708 = vadd.f32 0.0, %v1707
  %v1709 = vpop.f32.mrb[0].mxu0
  %v1710 = vadd.f32 0.0, %v1709
  %v1711 = vpop.f32.mrb[0].mxu0
  %v1712 = vadd.f32 0.0, %v1711
  %1713 = vmatprep.mubr.bf16.mxu0 0
  %1714 = vmatmul.mubr.bf16.gmra.mrb[0].mxu0 %v143
  %v1715 = vpop.f32.mrb[0].mxu0
  %v1716 = vadd.f32 0.0, %v1715
  %v1717 = vpop.f32.mrb[0].mxu0
  %v1718 = vadd.f32 0.0, %v1717
  %v1719 = vpop.f32.mrb[0].mxu0
  %v1720 = vadd.f32 0.0, %v1719
  %v1721 = vpop.f32.mrb[0].mxu0
  %v1722 = vadd.f32 0.0, %v1721
  %1723 = vmatprep.mubr.bf16.mxu0 0
  %1724 = vmatmul.mubr.bf16.gmra.mrb[0].mxu0 %v515
  %v1725 = vpop.f32.mrb[0].mxu0
  %v1726 = vadd.f32 0.0, %v1725
  %v1727 = vpop.f32.mrb[0].mxu0
  %v1728 = vadd.f32 0.0, %v1727
  %v1729 = vpop.f32.mrb[0].mxu0
  %v1730 = vadd.f32 0.0, %v1729
  %v1731 = vpop.f32.mrb[0].mxu0
  %v1732 = vadd.f32 0.0, %v1731
  %1733 = vmatprep.mubr.bf16.mxu0 0
  %1734 = vmatmul.mubr.bf16.gmra.mrb[0].mxu0 %v518
  %v1735 = vpop.f32.mrb[0].mxu0
  %v1736 = vadd.f32 0.0, %v1735
  %v1737 = vpop.f32.mrb[0].mxu0
  %v1738 = vadd.f32 0.0, %v1737
  %v1739 = vpop.f32.mrb[0].mxu0
  %v1740 = vadd.f32 0.0, %v1739
  %v1741 = vpop.f32.mrb[0].mxu0
  %v1742 = vadd.f32 0.0, %v1741
  %1743 = vmatprep.mubr.bf16.mxu0 0
  %1744 = vmatmul.mubr.bf16.gmra.mrb[0].mxu0 %v521
  %v1745 = vpop.f32.mrb[0].mxu0
  %v1746 = vadd.f32 0.0, %v1745
  %v1747 = vpop.f32.mrb[0].mxu0
  %v1748 = vadd.f32 0.0, %v1747
  %v1749 = vpop.f32.mrb[0].mxu0
  %v1750 = vadd.f32 0.0, %v1749
  %v1751 = vpop.f32.mrb[0].mxu0
  %v1752 = vadd.f32 0.0, %v1751
  %1753 = vdwg.mxu0
  %v1754 = vadd.f32 %v1454, %v1636
  %v1755 = vadd.f32 %v1456, %v1638
  %v1756 = vadd.f32 %v1458, %v1640
  %v1757 = vadd.f32 %v1460, %v1642
  %v1758 = vadd.f32 %v1464, %v1646
  %v1759 = vadd.f32 %v1466, %v1648
  %v1760 = vadd.f32 %v1468, %v1650
  %v1761 = vadd.f32 %v1470, %v1652
  %v1762 = vadd.f32 %v1474, %v1656
  %v1763 = vadd.f32 %v1476, %v1658
  %v1764 = vadd.f32 %v1478, %v1660
  %v1765 = vadd.f32 %v1480, %v1662
  %v1766 = vadd.f32 %v1484, %v1666
  %v1767 = vadd.f32 %v1486, %v1668
  %v1768 = vadd.f32 %v1488, %v1670
  %v1769 = vadd.f32 %v1490, %v1672
  %v1770 = vadd.f32 %v1494, %v1676
  %v1771 = vadd.f32 %v1496, %v1678
  %v1772 = vadd.f32 %v1498, %v1680
  %v1773 = vadd.f32 %v1500, %v1682
  %v1774 = vadd.f32 %v1504, %v1686
  %v1775 = vadd.f32 %v1506, %v1688
  %v1776 = vadd.f32 %v1508, %v1690
  %v1777 = vadd.f32 %v1510, %v1692
  %v1778 = vadd.f32 %v1514, %v1696
  %v1779 = vadd.f32 %v1516, %v1698
  %v1780 = vadd.f32 %v1518, %v1700
  %v1781 = vadd.f32 %v1520, %v1702
  %v1782 = vadd.f32 %v1524, %v1706
  %v1783 = vadd.f32 %v1526, %v1708
  %v1784 = vadd.f32 %v1528, %v1710
  %v1785 = vadd.f32 %v1530, %v1712
  %v1786 = vadd.f32 %v1534, %v1716
  %v1787 = vadd.f32 %v1536, %v1718
  %v1788 = vadd.f32 %v1538, %v1720
  %v1789 = vadd.f32 %v1540, %v1722
  %v1790 = vadd.f32 %v1544, %v1726
  %v1791 = vadd.f32 %v1546, %v1728
  %v1792 = vadd.f32 %v1548, %v1730
  %v1793 = vadd.f32 %v1550, %v1732
  %v1794 = vadd.f32 %v1554, %v1736
  %v1795 = vadd.f32 %v1556, %v1738
  %v1796 = vadd.f32 %v1558, %v1740
  %v1797 = vadd.f32 %v1560, %v1742
  %v1798 = vadd.f32 %v1564, %v1746
  %v1799 = vadd.f32 %v1566, %v1748
  %v1800 = vadd.f32 %v1568, %v1750
  %v1801 = vadd.f32 %v1570, %v1752
  %s1802 = scalar_lea.vmem %s1, 224
  %v1803 = vld [vmem:[%s1802] sm:$0xff]
  %v1804 = vld [vmem:[%s1802 + $0x8] sm:$0xff]
  %v1805 = vld [vmem:[%s1802 + $0x10] sm:$0xff]
  %v1806 = vld [vmem:[%s1802 + $0x18] sm:$0x33]
  %v1811 = vunpack.c.l.b16 %v1803
  %v1812 = vunpack.c.h.b16 %v1803
  %v1813 = vunpack.c.l.b16 %v1804
  %v1814 = vunpack.c.h.b16 %v1804
  %v1815 = vunpack.c.l.b16 %v1805
  %v1816 = vunpack.c.h.b16 %v1805
  %v1817 = vunpack.c.l.b16 %v1806
  %v1818 = vunpack.c.h.b16 %v1806
  %v1819 = vpack.c.b16 %v1813, %v1811
  %v1820 = vpack.c.b16 %v1814, %v1812
  %v1821 = vpack.c.b16 %v1817, %v1815
  %v1822 = vpack.c.b16 %v1818, %v1816
  %v1826 = vsel %vm145, %v1821, 0
  %v1829 = vsel %vm145, %v1822, 0
  %1831 = vmatprep.subr.bf16.mxu0 %v1820
  %1832 = vmatpush1.bf16.msra.mxu0 %v1819
  %1833 = vmatprep.subr.bf16.mxu0 %v1829
  %1834 = vmatpush1.bf16.msra.mxu0 %v1826
  %1835 = vmatprep.subr.bf16.mxu0 0
  %1836 = vmatpush1.bf16.msra.mxu0 0
  %1837 = vmatprep.subr.bf16.mxu0 0
  %1838 = vmatpush1.bf16.msra.mxu0 0
  %1839 = vmatprep.subr.bf16.mxu0 0
  %1840 = vmatpush1.bf16.msra.mxu0 0
  %1841 = vmatprep.subr.bf16.mxu0 0
  %1842 = vmatpush1.bf16.msra.mxu0 0
  %1843 = vmatprep.subr.bf16.mxu0 0
  %1844 = vmatpush1.bf16.msra.mxu0 0
  %1845 = vmatprep.subr.bf16.mxu0 0
  %1846 = vmatpush1.bf16.msra.mxu0 0
  %1847 = vmatprep.subr.bf16.mxu0 0
  %1848 = vmatpush1.bf16.msra.mxu0 0
  %1849 = vmatprep.subr.bf16.mxu0 0
  %1850 = vmatpush1.bf16.msra.mxu0 0
  %1851 = vmatprep.subr.bf16.mxu0 0
  %1852 = vmatpush1.bf16.msra.mxu0 0
  %1853 = vmatprep.subr.bf16.mxu0 0
  %1854 = vmatpush1.bf16.msra.mxu0 0
  %1855 = vmatprep.subr.bf16.mxu0 0
  %1856 = vmatpush1.bf16.msra.mxu0 0
  %1857 = vmatprep.subr.bf16.mxu0 0
  %1858 = vmatpush1.bf16.msra.mxu0 0
  %1859 = vmatprep.subr.bf16.mxu0 0
  %1860 = vmatpush1.bf16.msra.mxu0 0
  %1861 = vmatprep.subr.bf16.mxu0 0
  %1862 = vmatpush1.bf16.msra.mxu0 0
  %1863 = vmatprep.mubr.bf16.mxu0 0
  %1864 = vmatmul.mubr.bf16.gmra.mrb[0].mxu0 %v128
  %v1865 = vpop.f32.mrb[0].mxu0
  %v1866 = vadd.f32 0.0, %v1865
  %v1867 = vpop.f32.mrb[0].mxu0
  %v1868 = vadd.f32 0.0, %v1867
  %v1869 = vpop.f32.mrb[0].mxu0
  %v1870 = vadd.f32 0.0, %v1869
  %v1871 = vpop.f32.mrb[0].mxu0
  %v1872 = vadd.f32 0.0, %v1871
  %1873 = vmatprep.mubr.bf16.mxu0 0
  %1874 = vmatmul.mubr.bf16.gmra.mrb[0].mxu0 %v131
  %v1875 = vpop.f32.mrb[0].mxu0
  %v1876 = vadd.f32 0.0, %v1875
  %v1877 = vpop.f32.mrb[0].mxu0
  %v1878 = vadd.f32 0.0, %v1877
  %v1879 = vpop.f32.mrb[0].mxu0
  %v1880 = vadd.f32 0.0, %v1879
  %v1881 = vpop.f32.mrb[0].mxu0
  %v1882 = vadd.f32 0.0, %v1881
  %1883 = vmatprep.mubr.bf16.mxu0 0
  %1884 = vmatmul.mubr.bf16.gmra.mrb[0].mxu0 %v134
  %v1885 = vpop.f32.mrb[0].mxu0
  %v1886 = vadd.f32 0.0, %v1885
  %v1887 = vpop.f32.mrb[0].mxu0
  %v1888 = vadd.f32 0.0, %v1887
  %v1889 = vpop.f32.mrb[0].mxu0
  %v1890 = vadd.f32 0.0, %v1889
  %v1891 = vpop.f32.mrb[0].mxu0
  %v1892 = vadd.f32 0.0, %v1891
  %1893 = vmatprep.mubr.bf16.mxu0 0
  %1894 = vmatmul.mubr.bf16.gmra.mrb[0].mxu0 %v137
  %v1895 = vpop.f32.mrb[0].mxu0
  %v1896 = vadd.f32 0.0, %v1895
  %v1897 = vpop.f32.mrb[0].mxu0
  %v1898 = vadd.f32 0.0, %v1897
  %v1899 = vpop.f32.mrb[0].mxu0
  %v1900 = vadd.f32 0.0, %v1899
  %v1901 = vpop.f32.mrb[0].mxu0
  %v1902 = vadd.f32 0.0, %v1901
  %1903 = vmatprep.mubr.bf16.mxu0 0
  %1904 = vmatmul.mubr.bf16.gmra.mrb[0].mxu0 %v140
  %v1905 = vpop.f32.mrb[0].mxu0
  %v1906 = vadd.f32 0.0, %v1905
  %v1907 = vpop.f32.mrb[0].mxu0
  %v1908 = vadd.f32 0.0, %v1907
  %v1909 = vpop.f32.mrb[0].mxu0
  %v1910 = vadd.f32 0.0, %v1909
  %v1911 = vpop.f32.mrb[0].mxu0
  %v1912 = vadd.f32 0.0, %v1911
  %1913 = vmatprep.mubr.bf16.mxu0 0
  %1914 = vmatmul.mubr.bf16.gmra.mrb[0].mxu0 %v143
  %v1915 = vpop.f32.mrb[0].mxu0
  %v1916 = vadd.f32 0.0, %v1915
  %v1917 = vpop.f32.mrb[0].mxu0
  %v1918 = vadd.f32 0.0, %v1917
  %v1919 = vpop.f32.mrb[0].mxu0
  %v1920 = vadd.f32 0.0, %v1919
  %v1921 = vpop.f32.mrb[0].mxu0
  %v1922 = vadd.f32 0.0, %v1921
  %1923 = vmatprep.mubr.bf16.mxu0 0
  %1924 = vmatmul.mubr.bf16.gmra.mrb[0].mxu0 %v515
  %v1925 = vpop.f32.mrb[0].mxu0
  %v1926 = vadd.f32 0.0, %v1925
  %v1927 = vpop.f32.mrb[0].mxu0
  %v1928 = vadd.f32 0.0, %v1927
  %v1929 = vpop.f32.mrb[0].mxu0
  %v1930 = vadd.f32 0.0, %v1929
  %v1931 = vpop.f32.mrb[0].mxu0
  %v1932 = vadd.f32 0.0, %v1931
  %1933 = vmatprep.mubr.bf16.mxu0 0
  %1934 = vmatmul.mubr.bf16.gmra.mrb[0].mxu0 %v518
  %v1935 = vpop.f32.mrb[0].mxu0
  %v1936 = vadd.f32 0.0, %v1935
  %v1937 = vpop.f32.mrb[0].mxu0
  %v1938 = vadd.f32 0.0, %v1937
  %v1939 = vpop.f32.mrb[0].mxu0
  %v1940 = vadd.f32 0.0, %v1939
  %v1941 = vpop.f32.mrb[0].mxu0
  %v1942 = vadd.f32 0.0, %v1941
  %1943 = vmatprep.mubr.bf16.mxu0 0
  %1944 = vmatmul.mubr.bf16.gmra.mrb[0].mxu0 %v521
  %v1945 = vpop.f32.mrb[0].mxu0
  %v1946 = vadd.f32 0.0, %v1945
  %v1947 = vpop.f32.mrb[0].mxu0
  %v1948 = vadd.f32 0.0, %v1947
  %v1949 = vpop.f32.mrb[0].mxu0
  %v1950 = vadd.f32 0.0, %v1949
  %v1951 = vpop.f32.mrb[0].mxu0
  %v1952 = vadd.f32 0.0, %v1951
  %1953 = vmatprep.mubr.bf16.mxu0 0
  %1954 = vmatmul.mubr.bf16.gmra.mrb[0].mxu0 %v754
  %v1955 = vpop.f32.mrb[0].mxu0
  %v1956 = vadd.f32 0.0, %v1955
  %v1957 = vpop.f32.mrb[0].mxu0
  %v1958 = vadd.f32 0.0, %v1957
  %v1959 = vpop.f32.mrb[0].mxu0
  %v1960 = vadd.f32 0.0, %v1959
  %v1961 = vpop.f32.mrb[0].mxu0
  %v1962 = vadd.f32 0.0, %v1961
  %1963 = vmatprep.mubr.bf16.mxu0 0
  %1964 = vmatmul.mubr.bf16.gmra.mrb[0].mxu0 %v757
  %v1965 = vpop.f32.mrb[0].mxu0
  %v1966 = vadd.f32 0.0, %v1965
  %v1967 = vpop.f32.mrb[0].mxu0
  %v1968 = vadd.f32 0.0, %v1967
  %v1969 = vpop.f32.mrb[0].mxu0
  %v1970 = vadd.f32 0.0, %v1969
  %v1971 = vpop.f32.mrb[0].mxu0
  %v1972 = vadd.f32 0.0, %v1971
  %1973 = vmatprep.mubr.bf16.mxu0 0
  %1974 = vmatmul.mubr.bf16.gmra.mrb[0].mxu0 %v760
  %v1975 = vpop.f32.mrb[0].mxu0
  %v1976 = vadd.f32 0.0, %v1975
  %v1977 = vpop.f32.mrb[0].mxu0
  %v1978 = vadd.f32 0.0, %v1977
  %v1979 = vpop.f32.mrb[0].mxu0
  %v1980 = vadd.f32 0.0, %v1979
  %v1981 = vpop.f32.mrb[0].mxu0
  %v1982 = vadd.f32 0.0, %v1981
  %1983 = vdwg.mxu0
  %v1984 = vadd.f32 %v1754, %v1866
  %v1985 = vadd.f32 %v1755, %v1868
  %v1986 = vadd.f32 %v1756, %v1870
  %v1987 = vadd.f32 %v1757, %v1872
  %v1988 = vadd.f32 %v1758, %v1876
  %v1989 = vadd.f32 %v1759, %v1878
  %v1990 = vadd.f32 %v1760, %v1880
  %v1991 = vadd.f32 %v1761, %v1882
  %v1992 = vadd.f32 %v1762, %v1886
  %v1993 = vadd.f32 %v1763, %v1888
  %v1994 = vadd.f32 %v1764, %v1890
  %v1995 = vadd.f32 %v1765, %v1892
  %v1996 = vadd.f32 %v1766, %v1896
  %v1997 = vadd.f32 %v1767, %v1898
  %v1998 = vadd.f32 %v1768, %v1900
  %v1999 = vadd.f32 %v1769, %v1902
  %v2000 = vadd.f32 %v1770, %v1906
  %v2001 = vadd.f32 %v1771, %v1908
  %v2002 = vadd.f32 %v1772, %v1910
  %v2003 = vadd.f32 %v1773, %v1912
  %v2004 = vadd.f32 %v1774, %v1916
  %v2005 = vadd.f32 %v1775, %v1918
  %v2006 = vadd.f32 %v1776, %v1920
  %v2007 = vadd.f32 %v1777, %v1922
  %v2008 = vadd.f32 %v1778, %v1926
  %v2009 = vadd.f32 %v1779, %v1928
  %v2010 = vadd.f32 %v1780, %v1930
  %v2011 = vadd.f32 %v1781, %v1932
  %v2012 = vadd.f32 %v1782, %v1936
  %v2013 = vadd.f32 %v1783, %v1938
  %v2014 = vadd.f32 %v1784, %v1940
  %v2015 = vadd.f32 %v1785, %v1942
  %v2016 = vadd.f32 %v1786, %v1946
  %v2017 = vadd.f32 %v1787, %v1948
  %v2018 = vadd.f32 %v1788, %v1950
  %v2019 = vadd.f32 %v1789, %v1952
  %v2020 = vadd.f32 %v1790, %v1956
  %v2021 = vadd.f32 %v1791, %v1958
  %v2022 = vadd.f32 %v1792, %v1960
  %v2023 = vadd.f32 %v1793, %v1962
  %v2024 = vadd.f32 %v1794, %v1966
  %v2025 = vadd.f32 %v1795, %v1968
  %v2026 = vadd.f32 %v1796, %v1970
  %v2027 = vadd.f32 %v1797, %v1972
  %v2028 = vadd.f32 %v1798, %v1976
  %v2029 = vadd.f32 %v1799, %v1978
  %v2030 = vadd.f32 %v1800, %v1980
  %v2031 = vadd.f32 %v1801, %v1982
  %s2032 = scalar_lea.vmem %s1, 288
  %v2033 = vld [vmem:[%s2032] sm:$0xff]
  %v2034 = vld [vmem:[%s2032 + $0x8] sm:$0xff]
  %v2035 = vld [vmem:[%s2032 + $0x10] sm:$0xff]
  %v2036 = vld [vmem:[%s2032 + $0x18] sm:$0x33]
  %v2041 = vunpack.c.l.b16 %v2033
  %v2042 = vunpack.c.h.b16 %v2033
  %v2043 = vunpack.c.l.b16 %v2034
  %v2044 = vunpack.c.h.b16 %v2034
  %v2045 = vunpack.c.l.b16 %v2035
  %v2046 = vunpack.c.h.b16 %v2035
  %v2047 = vunpack.c.l.b16 %v2036
  %v2048 = vunpack.c.h.b16 %v2036
  %v2049 = vpack.c.b16 %v2043, %v2041
  %v2050 = vpack.c.b16 %v2044, %v2042
  %v2051 = vpack.c.b16 %v2047, %v2045
  %v2052 = vpack.c.b16 %v2048, %v2046
  %v2056 = vsel %vm145, %v2051, 0
  %v2059 = vsel %vm145, %v2052, 0
  %2061 = vmatprep.subr.bf16.mxu0 %v2050
  %2062 = vmatpush1.bf16.msra.mxu0 %v2049
  %2063 = vmatprep.subr.bf16.mxu0 %v2059
  %2064 = vmatpush1.bf16.msra.mxu0 %v2056
  %2065 = vmatprep.subr.bf16.mxu0 0
  %2066 = vmatpush1.bf16.msra.mxu0 0
  %2067 = vmatprep.subr.bf16.mxu0 0
  %2068 = vmatpush1.bf16.msra.mxu0 0
  %2069 = vmatprep.subr.bf16.mxu0 0
  %2070 = vmatpush1.bf16.msra.mxu0 0
  %2071 = vmatprep.subr.bf16.mxu0 0
  %2072 = vmatpush1.bf16.msra.mxu0 0
  %2073 = vmatprep.subr.bf16.mxu0 0
  %2074 = vmatpush1.bf16.msra.mxu0 0
  %2075 = vmatprep.subr.bf16.mxu0 0
  %2076 = vmatpush1.bf16.msra.mxu0 0
  %2077 = vmatprep.subr.bf16.mxu0 0
  %2078 = vmatpush1.bf16.msra.mxu0 0
  %2079 = vmatprep.subr.bf16.mxu0 0
  %2080 = vmatpush1.bf16.msra.mxu0 0
  %2081 = vmatprep.subr.bf16.mxu0 0
  %2082 = vmatpush1.bf16.msra.mxu0 0
  %2083 = vmatprep.subr.bf16.mxu0 0
  %2084 = vmatpush1.bf16.msra.mxu0 0
  %2085 = vmatprep.subr.bf16.mxu0 0
  %2086 = vmatpush1.bf16.msra.mxu0 0
  %2087 = vmatprep.subr.bf16.mxu0 0
  %2088 = vmatpush1.bf16.msra.mxu0 0
  %2089 = vmatprep.subr.bf16.mxu0 0
  %2090 = vmatpush1.bf16.msra.mxu0 0
  %2091 = vmatprep.subr.bf16.mxu0 0
  %2092 = vmatpush1.bf16.msra.mxu0 0
  %2093 = vmatprep.mubr.bf16.mxu0 0
  %2094 = vmatmul.mubr.bf16.gmra.mrb[0].mxu0 %v137
  %v2095 = vpop.f32.mrb[0].mxu0
  %v2096 = vadd.f32 0.0, %v2095
  %v2097 = vpop.f32.mrb[0].mxu0
  %v2098 = vadd.f32 0.0, %v2097
  %v2099 = vpop.f32.mrb[0].mxu0
  %v2100 = vadd.f32 0.0, %v2099
  %v2101 = vpop.f32.mrb[0].mxu0
  %v2102 = vadd.f32 0.0, %v2101
  %2103 = vmatprep.mubr.bf16.mxu0 0
  %2104 = vmatmul.mubr.bf16.gmra.mrb[0].mxu0 %v140
  %v2105 = vpop.f32.mrb[0].mxu0
  %v2106 = vadd.f32 0.0, %v2105
  %v2107 = vpop.f32.mrb[0].mxu0
  %v2108 = vadd.f32 0.0, %v2107
  %v2109 = vpop.f32.mrb[0].mxu0
  %v2110 = vadd.f32 0.0, %v2109
  %v2111 = vpop.f32.mrb[0].mxu0
  %v2112 = vadd.f32 0.0, %v2111
  %2113 = vmatprep.mubr.bf16.mxu0 0
  %2114 = vmatmul.mubr.bf16.gmra.mrb[0].mxu0 %v143
  %v2115 = vpop.f32.mrb[0].mxu0
  %v2116 = vadd.f32 0.0, %v2115
  %v2117 = vpop.f32.mrb[0].mxu0
  %v2118 = vadd.f32 0.0, %v2117
  %v2119 = vpop.f32.mrb[0].mxu0
  %v2120 = vadd.f32 0.0, %v2119
  %v2121 = vpop.f32.mrb[0].mxu0
  %v2122 = vadd.f32 0.0, %v2121
  %2123 = vmatprep.mubr.bf16.mxu0 0
  %2124 = vmatmul.mubr.bf16.gmra.mrb[0].mxu0 %v515
  %v2125 = vpop.f32.mrb[0].mxu0
  %v2126 = vadd.f32 0.0, %v2125
  %v2127 = vpop.f32.mrb[0].mxu0
  %v2128 = vadd.f32 0.0, %v2127
  %v2129 = vpop.f32.mrb[0].mxu0
  %v2130 = vadd.f32 0.0, %v2129
  %v2131 = vpop.f32.mrb[0].mxu0
  %v2132 = vadd.f32 0.0, %v2131
  %2133 = vmatprep.mubr.bf16.mxu0 0
  %2134 = vmatmul.mubr.bf16.gmra.mrb[0].mxu0 %v518
  %v2135 = vpop.f32.mrb[0].mxu0
  %v2136 = vadd.f32 0.0, %v2135
  %v2137 = vpop.f32.mrb[0].mxu0
  %v2138 = vadd.f32 0.0, %v2137
  %v2139 = vpop.f32.mrb[0].mxu0
  %v2140 = vadd.f32 0.0, %v2139
  %v2141 = vpop.f32.mrb[0].mxu0
  %v2142 = vadd.f32 0.0, %v2141
  %2143 = vmatprep.mubr.bf16.mxu0 0
  %2144 = vmatmul.mubr.bf16.gmra.mrb[0].mxu0 %v521
  %v2145 = vpop.f32.mrb[0].mxu0
  %v2146 = vadd.f32 0.0, %v2145
  %v2147 = vpop.f32.mrb[0].mxu0
  %v2148 = vadd.f32 0.0, %v2147
  %v2149 = vpop.f32.mrb[0].mxu0
  %v2150 = vadd.f32 0.0, %v2149
  %v2151 = vpop.f32.mrb[0].mxu0
  %v2152 = vadd.f32 0.0, %v2151
  %2153 = vmatprep.mubr.bf16.mxu0 0
  %2154 = vmatmul.mubr.bf16.gmra.mrb[0].mxu0 %v754
  %v2155 = vpop.f32.mrb[0].mxu0
  %v2156 = vadd.f32 0.0, %v2155
  %v2157 = vpop.f32.mrb[0].mxu0
  %v2158 = vadd.f32 0.0, %v2157
  %v2159 = vpop.f32.mrb[0].mxu0
  %v2160 = vadd.f32 0.0, %v2159
  %v2161 = vpop.f32.mrb[0].mxu0
  %v2162 = vadd.f32 0.0, %v2161
  %2163 = vmatprep.mubr.bf16.mxu0 0
  %2164 = vmatmul.mubr.bf16.gmra.mrb[0].mxu0 %v757
  %v2165 = vpop.f32.mrb[0].mxu0
  %v2166 = vadd.f32 0.0, %v2165
  %v2167 = vpop.f32.mrb[0].mxu0
  %v2168 = vadd.f32 0.0, %v2167
  %v2169 = vpop.f32.mrb[0].mxu0
  %v2170 = vadd.f32 0.0, %v2169
  %v2171 = vpop.f32.mrb[0].mxu0
  %v2172 = vadd.f32 0.0, %v2171
  %2173 = vmatprep.mubr.bf16.mxu0 0
  %2174 = vmatmul.mubr.bf16.gmra.mrb[0].mxu0 %v760
  %v2175 = vpop.f32.mrb[0].mxu0
  %v2176 = vadd.f32 0.0, %v2175
  %v2177 = vpop.f32.mrb[0].mxu0
  %v2178 = vadd.f32 0.0, %v2177
  %v2179 = vpop.f32.mrb[0].mxu0
  %v2180 = vadd.f32 0.0, %v2179
  %v2181 = vpop.f32.mrb[0].mxu0
  %v2182 = vadd.f32 0.0, %v2181
  %2183 = vmatprep.mubr.bf16.mxu0 0
  %2184 = vmatmul.mubr.bf16.gmra.mrb[0].mxu0 %v993
  %v2185 = vpop.f32.mrb[0].mxu0
  %v2186 = vadd.f32 0.0, %v2185
  %v2187 = vpop.f32.mrb[0].mxu0
  %v2188 = vadd.f32 0.0, %v2187
  %v2189 = vpop.f32.mrb[0].mxu0
  %v2190 = vadd.f32 0.0, %v2189
  %v2191 = vpop.f32.mrb[0].mxu0
  %v2192 = vadd.f32 0.0, %v2191
  %2193 = vmatprep.mubr.bf16.mxu0 0
  %2194 = vmatmul.mubr.bf16.gmra.mrb[0].mxu0 %v996
  %v2195 = vpop.f32.mrb[0].mxu0
  %v2196 = vadd.f32 0.0, %v2195
  %v2197 = vpop.f32.mrb[0].mxu0
  %v2198 = vadd.f32 0.0, %v2197
  %v2199 = vpop.f32.mrb[0].mxu0
  %v2200 = vadd.f32 0.0, %v2199
  %v2201 = vpop.f32.mrb[0].mxu0
  %v2202 = vadd.f32 0.0, %v2201
  %2203 = vmatprep.mubr.bf16.mxu0 0
  %2204 = vmatmul.mubr.bf16.gmra.mrb[0].mxu0 %v999
  %v2205 = vpop.f32.mrb[0].mxu0
  %v2206 = vadd.f32 0.0, %v2205
  %v2207 = vpop.f32.mrb[0].mxu0
  %v2208 = vadd.f32 0.0, %v2207
  %v2209 = vpop.f32.mrb[0].mxu0
  %v2210 = vadd.f32 0.0, %v2209
  %v2211 = vpop.f32.mrb[0].mxu0
  %v2212 = vadd.f32 0.0, %v2211
  %2213 = vdwg.mxu0
  %v2214 = vadd.f32 %v1984, %v2096
  %v2215 = vadd.f32 %v1985, %v2098
  %v2216 = vadd.f32 %v1986, %v2100
  %v2217 = vadd.f32 %v1987, %v2102
  %v2218 = vadd.f32 %v1988, %v2106
  %v2219 = vadd.f32 %v1989, %v2108
  %v2220 = vadd.f32 %v1990, %v2110
  %v2221 = vadd.f32 %v1991, %v2112
  %v2222 = vadd.f32 %v1992, %v2116
  %v2223 = vadd.f32 %v1993, %v2118
  %v2224 = vadd.f32 %v1994, %v2120
  %v2225 = vadd.f32 %v1995, %v2122
  %v2226 = vadd.f32 %v1996, %v2126
  %v2227 = vadd.f32 %v1997, %v2128
  %v2228 = vadd.f32 %v1998, %v2130
  %v2229 = vadd.f32 %v1999, %v2132
  %v2230 = vadd.f32 %v2000, %v2136
  %v2231 = vadd.f32 %v2001, %v2138
  %v2232 = vadd.f32 %v2002, %v2140
  %v2233 = vadd.f32 %v2003, %v2142
  %v2234 = vadd.f32 %v2004, %v2146
  %v2235 = vadd.f32 %v2005, %v2148
  %v2236 = vadd.f32 %v2006, %v2150
  %v2237 = vadd.f32 %v2007, %v2152
  %v2238 = vadd.f32 %v2008, %v2156
  %v2239 = vadd.f32 %v2009, %v2158
  %v2240 = vadd.f32 %v2010, %v2160
  %v2241 = vadd.f32 %v2011, %v2162
  %v2242 = vadd.f32 %v2012, %v2166
  %v2243 = vadd.f32 %v2013, %v2168
  %v2244 = vadd.f32 %v2014, %v2170
  %v2245 = vadd.f32 %v2015, %v2172
  %v2246 = vadd.f32 %v2016, %v2176
  %v2247 = vadd.f32 %v2017, %v2178
  %v2248 = vadd.f32 %v2018, %v2180
  %v2249 = vadd.f32 %v2019, %v2182
  %v2250 = vadd.f32 %v2020, %v2186
  %v2251 = vadd.f32 %v2021, %v2188
  %v2252 = vadd.f32 %v2022, %v2190
  %v2253 = vadd.f32 %v2023, %v2192
  %v2254 = vadd.f32 %v2024, %v2196
  %v2255 = vadd.f32 %v2025, %v2198
  %v2256 = vadd.f32 %v2026, %v2200
  %v2257 = vadd.f32 %v2027, %v2202
  %v2258 = vadd.f32 %v2028, %v2206
  %v2259 = vadd.f32 %v2029, %v2208
  %v2260 = vadd.f32 %v2030, %v2210
  %v2261 = vadd.f32 %v2031, %v2212
  %v2262 = vmax.f32 %v1160, %v2214
  %v2263 = vmax.f32 %v1161, %v2215
  %v2264 = vmax.f32 %v1162, %v2216
  %v2265 = vmax.f32 %v1163, %v2217
  %v2266 = vmax.f32 %v1164, %v2218
  %v2267 = vmax.f32 %v1165, %v2219
  %v2268 = vmax.f32 %v1166, %v2220
  %v2269 = vmax.f32 %v1167, %v2221
  %v2270 = vmax.f32 %v1168, %v2222
  %v2271 = vmax.f32 %v1169, %v2223
  %v2272 = vmax.f32 %v1170, %v2224
  %v2273 = vmax.f32 %v1171, %v2225
  %v2274 = vmax.f32 %v1172, %v2226
  %v2275 = vmax.f32 %v1173, %v2227
  %v2276 = vmax.f32 %v1174, %v2228
  %v2277 = vmax.f32 %v1175, %v2229
  %v2278 = vmax.f32 %v1176, %v2230
  %v2279 = vmax.f32 %v1177, %v2231
  %v2280 = vmax.f32 %v1178, %v2232
  %v2281 = vmax.f32 %v1179, %v2233
  %v2282 = vmax.f32 %v1180, %v2234
  %v2283 = vmax.f32 %v1181, %v2235
  %v2284 = vmax.f32 %v1182, %v2236
  %v2285 = vmax.f32 %v1183, %v2237
  %v2286 = vmax.f32 %v1184, %v2238
  %v2287 = vmax.f32 %v1185, %v2239
  %v2288 = vmax.f32 %v1186, %v2240
  %v2289 = vmax.f32 %v1187, %v2241
  %v2290 = vmax.f32 %v1188, %v2242
  %v2291 = vmax.f32 %v1189, %v2243
  %v2292 = vmax.f32 %v1190, %v2244
  %v2293 = vmax.f32 %v1191, %v2245
  %v2294 = vmax.f32 %v1192, %v2246
  %v2295 = vmax.f32 %v1193, %v2247
  %v2296 = vmax.f32 %v1194, %v2248
  %v2297 = vmax.f32 %v1195, %v2249
  %v2298 = vmax.f32 %v1196, %v2250
  %v2299 = vmax.f32 %v1197, %v2251
  %v2300 = vmax.f32 %v1198, %v2252
  %v2301 = vmax.f32 %v1199, %v2253
  %v2302 = vmax.f32 %v1200, %v2254
  %v2303 = vmax.f32 %v1201, %v2255
  %v2304 = vmax.f32 %v1202, %v2256
  %v2305 = vmax.f32 %v1203, %v2257
  %v2306 = vmax.f32 %v1204, %v2258
  %v2307 = vmax.f32 %v1205, %v2259
  %v2308 = vmax.f32 %v1206, %v2260
  %v2309 = vmax.f32 %v1207, %v2261
  %v2310 = vld [vmem:[%s2] sm:$0x3]
  %v2311 = vmax.f32 %v2262, %v2274
  %v2312 = vmax.f32 %v2263, %v2275
  %v2313 = vmax.f32 %v2264, %v2276
  %v2314 = vmax.f32 %v2265, %v2277
  %v2315 = vmax.f32 %v2266, %v2278
  %v2316 = vmax.f32 %v2267, %v2279
  %v2317 = vmax.f32 %v2268, %v2280
  %v2318 = vmax.f32 %v2269, %v2281
  %v2319 = vmax.f32 %v2270, %v2282
  %v2320 = vmax.f32 %v2271, %v2283
  %v2321 = vmax.f32 %v2272, %v2284
  %v2322 = vmax.f32 %v2273, %v2285
  %v2324 = vlaneseq
  %v2325 = vshrl.u32 %v2324, 7
  %v2326 = vsub.s32 0, %v2325
  %v2327 = vrot.slane %v2310, %v2326
  %v2328 = vlaneseq
  %v2329 = vshrl.u32 %v2328, 7
  %v2330 = vsub.s32 1, %v2329
  %v2331 = vrot.slane %v2310, %v2330
  %v2334 = vadd.f32 %v2311, %v2327
  %v2335 = vadd.f32 %v2312, %v2331
  %v2336 = vadd.f32 %v2313, %v2327
  %v2337 = vadd.f32 %v2314, %v2331
  %v2338 = vadd.f32 %v2315, %v2327
  %v2339 = vadd.f32 %v2316, %v2331
  %v2340 = vadd.f32 %v2317, %v2327
  %v2341 = vadd.f32 %v2318, %v2331
  %v2342 = vadd.f32 %v2319, %v2327
  %v2343 = vadd.f32 %v2320, %v2331
  %v2344 = vadd.f32 %v2321, %v2327
  %v2345 = vadd.f32 %v2322, %v2331
  %v2346 = vmax.f32 %v2334, 0.0
  %v2347 = vmax.f32 %v2335, 0.0
  %v2348 = vmax.f32 %v2336, 0.0
  %v2349 = vmax.f32 %v2337, 0.0
  %v2350 = vmax.f32 %v2338, 0.0
  %v2351 = vmax.f32 %v2339, 0.0
  %v2352 = vmax.f32 %v2340, 0.0
  %v2353 = vmax.f32 %v2341, 0.0
  %v2354 = vmax.f32 %v2342, 0.0
  %v2355 = vmax.f32 %v2343, 0.0
  %v2356 = vmax.f32 %v2344, 0.0
  %v2357 = vmax.f32 %v2345, 0.0
  %v2358 = vmax.f32 %v2286, %v2298
  %v2359 = vmax.f32 %v2287, %v2299
  %v2360 = vmax.f32 %v2288, %v2300
  %v2361 = vmax.f32 %v2289, %v2301
  %v2362 = vmax.f32 %v2290, %v2302
  %v2363 = vmax.f32 %v2291, %v2303
  %v2364 = vmax.f32 %v2292, %v2304
  %v2365 = vmax.f32 %v2293, %v2305
  %v2366 = vmax.f32 %v2294, %v2306
  %v2367 = vmax.f32 %v2295, %v2307
  %v2368 = vmax.f32 %v2296, %v2308
  %v2369 = vmax.f32 %v2297, %v2309
  %v2370 = vadd.f32 %v2358, %v2327
  %v2371 = vadd.f32 %v2359, %v2331
  %v2372 = vadd.f32 %v2360, %v2327
  %v2373 = vadd.f32 %v2361, %v2331
  %v2374 = vadd.f32 %v2362, %v2327
  %v2375 = vadd.f32 %v2363, %v2331
  %v2376 = vadd.f32 %v2364, %v2327
  %v2377 = vadd.f32 %v2365, %v2331
  %v2378 = vadd.f32 %v2366, %v2327
  %v2379 = vadd.f32 %v2367, %v2331
  %v2380 = vadd.f32 %v2368, %v2327
  %v2381 = vadd.f32 %v2369, %v2331
  %v2382 = vmax.f32 %v2370, 0.0
  %v2383 = vmax.f32 %v2371, 0.0
  %v2384 = vmax.f32 %v2372, 0.0
  %v2385 = vmax.f32 %v2373, 0.0
  %v2386 = vmax.f32 %v2374, 0.0
  %v2387 = vmax.f32 %v2375, 0.0
  %v2388 = vmax.f32 %v2376, 0.0
  %v2389 = vmax.f32 %v2377, 0.0
  %v2390 = vmax.f32 %v2378, 0.0
  %v2391 = vmax.f32 %v2379, 0.0
  %v2392 = vmax.f32 %v2380, 0.0
  %v2393 = vmax.f32 %v2381, 0.0
  %v2394 = vpack.c.bf16 %v2382, %v2346
  %v2395 = vpack.c.bf16 %v2383, %v2347
  %v2396 = vpack.c.bf16 %v2384, %v2348
  %v2397 = vpack.c.bf16 %v2385, %v2349
  %v2398 = vpack.c.bf16 %v2386, %v2350
  %v2399 = vpack.c.bf16 %v2387, %v2351
  %v2400 = vpack.c.bf16 %v2388, %v2352
  %v2401 = vpack.c.bf16 %v2389, %v2353
  %v2402 = vpack.c.bf16 %v2348, %v2382
  %v2403 = vpack.c.bf16 %v2349, %v2383
  %v2404 = vpack.c.bf16 %v2350, %v2384
  %v2405 = vpack.c.bf16 %v2351, %v2385
  %v2406 = vpack.c.bf16 %v2352, %v2386
  %v2407 = vpack.c.bf16 %v2353, %v2387
  %v2408 = vpack.c.bf16 %v2354, %v2388
  %v2409 = vpack.c.bf16 %v2355, %v2389
  %v2410 = vpack.c.bf16 %v2390, %v2354
  %v2411 = vpack.c.bf16 %v2391, %v2355
  %v2412 = vpack.c.bf16 %v2356, %v2390
  %v2413 = vpack.c.bf16 %v2357, %v2391
  %v2414 = vpack.c.bf16 %v2392, %v2356
  %v2415 = vpack.c.bf16 %v2393, %v2357
  %v2416 = vld [vmem:[%s3] sm:$0xf]
  %v2417 = vld [vmem:[%s3 + $0x4] sm:$0xf]
  %v2418 = vld [vmem:[%s3 + $0x8] sm:$0xf]
  %v2419 = vld [vmem:[%s3 + $0xc] sm:$0xf]
  %v2420 = vld [vmem:[%s3 + $0x10] sm:$0xf]
  %v2421 = vld [vmem:[%s3 + $0x14] sm:$0xf]
  %v2422 = vld [vmem:[%s3 + $0x18] sm:$0xf]
  %v2423 = vld [vmem:[%s3 + $0x1c] sm:$0xf]
  %v2424 = vld [vmem:[%s3 + $0x20] sm:$0xf]
  %v2425 = vld [vmem:[%s3 + $0x24] sm:$0xf]
  %v2426 = vld [vmem:[%s3 + $0x28] sm:$0xf]
  %v2427 = vld [vmem:[%s3 + $0x2c] sm:$0xf]
  %v2428 = vld [vmem:[%s3 + $0x30] sm:$0xf]
  %v2429 = vld [vmem:[%s3 + $0x34] sm:$0xf]
  %v2430 = vld [vmem:[%s3 + $0x38] sm:$0xf]
  %v2431 = vld [vmem:[%s3 + $0x3c] sm:$0xf]
  %v2432 = vld [vmem:[%s3 + $0x40] sm:$0xf]
  %v2433 = vld [vmem:[%s3 + $0x44] sm:$0xf]
  %v2434 = vld [vmem:[%s3 + $0x48] sm:$0xf]
  %v2435 = vld [vmem:[%s3 + $0x4c] sm:$0xf]
  %v2436 = vld [vmem:[%s3 + $0x50] sm:$0xf]
  %v2437 = vld [vmem:[%s3 + $0x54] sm:$0xf]
  %v2438 = vld [vmem:[%s3 + $0x58] sm:$0xf]
  %v2439 = vld [vmem:[%s3 + $0x5c] sm:$0xf]
  %s2440 = scalar_lea.vmem %s3, 192
  %v2441 = vld [vmem:[%s2440] sm:$0xf]
  %v2442 = vld [vmem:[%s2440 + $0x4] sm:$0xf]
  %v2443 = vld [vmem:[%s2440 + $0x8] sm:$0xf]
  %v2444 = vld [vmem:[%s2440 + $0xc] sm:$0xf]
  %v2445 = vld [vmem:[%s2440 + $0x10] sm:$0xf]
  %v2446 = vld [vmem:[%s2440 + $0x14] sm:$0xf]
  %v2447 = vld [vmem:[%s2440 + $0x18] sm:$0xf]
  %v2448 = vld [vmem:[%s2440 + $0x1c] sm:$0xf]
  %v2449 = vld [vmem:[%s2440 + $0x20] sm:$0xf]
  %v2450 = vld [vmem:[%s2440 + $0x24] sm:$0xf]
  %v2451 = vld [vmem:[%s2440 + $0x28] sm:$0xf]
  %v2452 = vld [vmem:[%s2440 + $0x2c] sm:$0xf]
  %v2453 = vld [vmem:[%s2440 + $0x30] sm:$0xf]
  %v2454 = vld [vmem:[%s2440 + $0x34] sm:$0xf]
  %v2455 = vld [vmem:[%s2440 + $0x38] sm:$0xf]
  %v2456 = vld [vmem:[%s2440 + $0x3c] sm:$0xf]
  %v2457 = vld [vmem:[%s2440 + $0x40] sm:$0xf]
  %v2458 = vld [vmem:[%s2440 + $0x44] sm:$0xf]
  %v2459 = vld [vmem:[%s2440 + $0x48] sm:$0xf]
  %v2460 = vld [vmem:[%s2440 + $0x4c] sm:$0xf]
  %v2461 = vld [vmem:[%s2440 + $0x50] sm:$0xf]
  %v2462 = vld [vmem:[%s2440 + $0x54] sm:$0xf]
  %v2463 = vld [vmem:[%s2440 + $0x58] sm:$0xf]
  %v2464 = vld [vmem:[%s2440 + $0x5c] sm:$0xf]
  %v2489 = vunpack.c.l.b16 %v2441
  %v2490 = vunpack.c.l.b16 %v2442
  %v2491 = vunpack.c.l.b16 %v2443
  %v2492 = vunpack.c.l.b16 %v2444
  %v2493 = vunpack.c.l.b16 %v2445
  %v2494 = vunpack.c.l.b16 %v2446
  %v2495 = vunpack.c.l.b16 %v2447
  %v2496 = vunpack.c.l.b16 %v2448
  %v2497 = vunpack.c.l.b16 %v2449
  %v2498 = vunpack.c.l.b16 %v2450
  %v2499 = vunpack.c.l.b16 %v2451
  %v2500 = vunpack.c.l.b16 %v2452
  %v2501 = vunpack.c.l.b16 %v2453
  %v2502 = vunpack.c.l.b16 %v2454
  %v2503 = vunpack.c.l.b16 %v2455
  %v2504 = vunpack.c.l.b16 %v2456
  %v2505 = vunpack.c.l.b16 %v2457
  %v2506 = vunpack.c.l.b16 %v2458
  %v2507 = vunpack.c.l.b16 %v2459
  %v2508 = vunpack.c.l.b16 %v2460
  %v2509 = vunpack.c.l.b16 %v2461
  %v2510 = vunpack.c.l.b16 %v2462
  %v2511 = vunpack.c.l.b16 %v2463
  %v2512 = vunpack.c.l.b16 %v2464
  %v2513 = vpack.c.b16 %v2490, %v2489
  %v2514 = vpack.c.b16 %v2492, %v2491
  %v2515 = vpack.c.b16 %v2494, %v2493
  %v2516 = vpack.c.b16 %v2496, %v2495
  %v2517 = vpack.c.b16 %v2498, %v2497
  %v2518 = vpack.c.b16 %v2500, %v2499
  %v2519 = vpack.c.b16 %v2502, %v2501
  %v2520 = vpack.c.b16 %v2504, %v2503
  %v2521 = vpack.c.b16 %v2506, %v2505
  %v2522 = vpack.c.b16 %v2508, %v2507
  %v2523 = vpack.c.b16 %v2510, %v2509
  %v2524 = vpack.c.b16 %v2512, %v2511
  %vm2537 = vcmask 523264
  %v2539 = vsel %vm2537, %v2403, 0
  %v2542 = vsel %vm2537, %v2405, 0
  %v2545 = vsel %vm2537, %v2407, 0
  %v2548 = vsel %vm2537, %v2409, 0
  %2550 = vmatprep.subr.bf16.mxu0 0
  %2551 = vmatpush1.bf16.msra.mxu0 %v2513
  %2552 = vmatprep.subr.bf16.mxu0 0
  %2553 = vmatpush1.bf16.msra.mxu0 %v2514
  %2554 = vmatprep.subr.bf16.mxu0 0
  %2555 = vmatpush1.bf16.msra.mxu0 %v2515
  %2556 = vmatprep.subr.bf16.mxu0 0
  %2557 = vmatpush1.bf16.msra.mxu0 %v2516
  %2558 = vmatprep.subr.bf16.mxu0 0
  %2559 = vmatpush1.bf16.msra.mxu0 %v2517
  %2560 = vmatprep.subr.bf16.mxu0 0
  %2561 = vmatpush1.bf16.msra.mxu0 %v2518
  %2562 = vmatprep.subr.bf16.mxu0 0
  %2563 = vmatpush1.bf16.msra.mxu0 %v2519
  %2564 = vmatprep.subr.bf16.mxu0 0
  %2565 = vmatpush1.bf16.msra.mxu0 %v2520
  %2566 = vmatprep.subr.bf16.mxu0 0
  %2567 = vmatpush1.bf16.msra.mxu0 %v2521
  %2568 = vmatprep.subr.bf16.mxu0 0
  %2569 = vmatpush1.bf16.msra.mxu0 %v2522
  %2570 = vmatprep.subr.bf16.mxu0 0
  %2571 = vmatpush1.bf16.msra.mxu0 %v2523
  %2572 = vmatprep.subr.bf16.mxu0 0
  %2573 = vmatpush1.bf16.msra.mxu0 %v2524
  %2574 = vmatprep.subr.bf16.mxu0 0
  %2575 = vmatpush1.bf16.msra.mxu0 0
  %2576 = vmatprep.subr.bf16.mxu0 0
  %2577 = vmatpush1.bf16.msra.mxu0 0
  %2578 = vmatprep.subr.bf16.mxu0 0
  %2579 = vmatpush1.bf16.msra.mxu0 0
  %2580 = vmatprep.subr.bf16.mxu0 0
  %2581 = vmatpush1.bf16.msra.mxu0 0
  %2582 = vmatprep.mubr.bf16.mxu0 %v2539
  %2583 = vmatmul.mubr.bf16.gmra.mrb[0].mxu0 %v2402
  %v2584 = vpop.f32.mrb[0].mxu0
  %v2585 = vadd.f32 0.0, %v2584
  %v2586 = vpop.f32.mrb[0].mxu0
  %v2587 = vpop.f32.mrb[0].mxu0
  %v2588 = vadd.f32 0.0, %v2587
  %v2589 = vpop.f32.mrb[0].mxu0
  %2590 = vmatprep.mubr.bf16.mxu0 %v2542
  %2591 = vmatmul.mubr.bf16.gmra.mrb[0].mxu0 %v2404
  %v2592 = vpop.f32.mrb[0].mxu0
  %v2593 = vadd.f32 0.0, %v2592
  %v2594 = vpop.f32.mrb[0].mxu0
  %v2595 = vpop.f32.mrb[0].mxu0
  %v2596 = vadd.f32 0.0, %v2595
  %v2597 = vpop.f32.mrb[0].mxu0
  %2598 = vmatprep.mubr.bf16.mxu0 %v2545
  %2599 = vmatmul.mubr.bf16.gmra.mrb[0].mxu0 %v2406
  %v2600 = vpop.f32.mrb[0].mxu0
  %v2601 = vadd.f32 0.0, %v2600
  %v2602 = vpop.f32.mrb[0].mxu0
  %v2603 = vpop.f32.mrb[0].mxu0
  %v2604 = vadd.f32 0.0, %v2603
  %v2605 = vpop.f32.mrb[0].mxu0
  %2606 = vmatprep.mubr.bf16.mxu0 %v2548
  %2607 = vmatmul.mubr.bf16.gmra.mrb[0].mxu0 %v2408
  %v2608 = vpop.f32.mrb[0].mxu0
  %v2609 = vadd.f32 0.0, %v2608
  %v2610 = vpop.f32.mrb[0].mxu0
  %v2611 = vpop.f32.mrb[0].mxu0
  %v2612 = vadd.f32 0.0, %v2611
  %v2613 = vpop.f32.mrb[0].mxu0
  %2614 = vdwg.mxu0
  %v2639 = vunpack.c.l.b16 %v2416
  %v2640 = vunpack.c.l.b16 %v2417
  %v2641 = vunpack.c.l.b16 %v2418
  %v2642 = vunpack.c.l.b16 %v2419
  %v2643 = vunpack.c.l.b16 %v2420
  %v2644 = vunpack.c.l.b16 %v2421
  %v2645 = vunpack.c.l.b16 %v2422
  %v2646 = vunpack.c.l.b16 %v2423
  %v2647 = vunpack.c.l.b16 %v2424
  %v2648 = vunpack.c.l.b16 %v2425
  %v2649 = vunpack.c.l.b16 %v2426
  %v2650 = vunpack.c.l.b16 %v2427
  %v2651 = vunpack.c.l.b16 %v2428
  %v2652 = vunpack.c.l.b16 %v2429
  %v2653 = vunpack.c.l.b16 %v2430
  %v2654 = vunpack.c.l.b16 %v2431
  %v2655 = vunpack.c.l.b16 %v2432
  %v2656 = vunpack.c.l.b16 %v2433
  %v2657 = vunpack.c.l.b16 %v2434
  %v2658 = vunpack.c.l.b16 %v2435
  %v2659 = vunpack.c.l.b16 %v2436
  %v2660 = vunpack.c.l.b16 %v2437
  %v2661 = vunpack.c.l.b16 %v2438
  %v2662 = vunpack.c.l.b16 %v2439
  %v2663 = vpack.c.b16 %v2640, %v2639
  %v2664 = vpack.c.b16 %v2642, %v2641
  %v2665 = vpack.c.b16 %v2644, %v2643
  %v2666 = vpack.c.b16 %v2646, %v2645
  %v2667 = vpack.c.b16 %v2648, %v2647
  %v2668 = vpack.c.b16 %v2650, %v2649
  %v2669 = vpack.c.b16 %v2652, %v2651
  %v2670 = vpack.c.b16 %v2654, %v2653
  %v2671 = vpack.c.b16 %v2656, %v2655
  %v2672 = vpack.c.b16 %v2658, %v2657
  %v2673 = vpack.c.b16 %v2660, %v2659
  %v2674 = vpack.c.b16 %v2662, %v2661
  %v2688 = vsel %vm2537, %v2395, 0
  %v2691 = vsel %vm2537, %v2397, 0
  %v2694 = vsel %vm2537, %v2399, 0
  %v2697 = vsel %vm2537, %v2401, 0
  %2699 = vmatprep.subr.bf16.mxu0 0
  %2700 = vmatpush1.bf16.msra.mxu0 %v2663
  %2701 = vmatprep.subr.bf16.mxu0 0
  %2702 = vmatpush1.bf16.msra.mxu0 %v2664
  %2703 = vmatprep.subr.bf16.mxu0 0
  %2704 = vmatpush1.bf16.msra.mxu0 %v2665
  %2705 = vmatprep.subr.bf16.mxu0 0
  %2706 = vmatpush1.bf16.msra.mxu0 %v2666
  %2707 = vmatprep.subr.bf16.mxu0 0
  %2708 = vmatpush1.bf16.msra.mxu0 %v2667
  %2709 = vmatprep.subr.bf16.mxu0 0
  %2710 = vmatpush1.bf16.msra.mxu0 %v2668
  %2711 = vmatprep.subr.bf16.mxu0 0
  %2712 = vmatpush1.bf16.msra.mxu0 %v2669
  %2713 = vmatprep.subr.bf16.mxu0 0
  %2714 = vmatpush1.bf16.msra.mxu0 %v2670
  %2715 = vmatprep.subr.bf16.mxu0 0
  %2716 = vmatpush1.bf16.msra.mxu0 %v2671
  %2717 = vmatprep.subr.bf16.mxu0 0
  %2718 = vmatpush1.bf16.msra.mxu0 %v2672
  %2719 = vmatprep.subr.bf16.mxu0 0
  %2720 = vmatpush1.bf16.msra.mxu0 %v2673
  %2721 = vmatprep.subr.bf16.mxu0 0
  %2722 = vmatpush1.bf16.msra.mxu0 %v2674
  %2723 = vmatprep.subr.bf16.mxu0 0
  %2724 = vmatpush1.bf16.msra.mxu0 0
  %2725 = vmatprep.subr.bf16.mxu0 0
  %2726 = vmatpush1.bf16.msra.mxu0 0
  %2727 = vmatprep.subr.bf16.mxu0 0
  %2728 = vmatpush1.bf16.msra.mxu0 0
  %2729 = vmatprep.subr.bf16.mxu0 0
  %2730 = vmatpush1.bf16.msra.mxu0 0
  %2731 = vmatprep.mubr.bf16.mxu0 %v2688
  %2732 = vmatmul.mubr.bf16.gmra.mrb[0].mxu0 %v2394
  %v2733 = vpop.f32.mrb[0].mxu0
  %v2734 = vadd.f32 %v2585, %v2733
  %v2735 = vpop.f32.mrb[0].mxu0
  %v2736 = vpop.f32.mrb[0].mxu0
  %v2737 = vadd.f32 %v2588, %v2736
  %v2738 = vpop.f32.mrb[0].mxu0
  %2739 = vmatprep.mubr.bf16.mxu0 %v2691
  %2740 = vmatmul.mubr.bf16.gmra.mrb[0].mxu0 %v2396
  %v2741 = vpop.f32.mrb[0].mxu0
  %v2742 = vadd.f32 %v2593, %v2741
  %v2743 = vpop.f32.mrb[0].mxu0
  %v2744 = vpop.f32.mrb[0].mxu0
  %v2745 = vadd.f32 %v2596, %v2744
  %v2746 = vpop.f32.mrb[0].mxu0
  %2747 = vmatprep.mubr.bf16.mxu0 %v2694
  %2748 = vmatmul.mubr.bf16.gmra.mrb[0].mxu0 %v2398
  %v2749 = vpop.f32.mrb[0].mxu0
  %v2750 = vadd.f32 %v2601, %v2749
  %v2751 = vpop.f32.mrb[0].mxu0
  %v2752 = vpop.f32.mrb[0].mxu0
  %v2753 = vadd.f32 %v2604, %v2752
  %v2754 = vpop.f32.mrb[0].mxu0
  %2755 = vmatprep.mubr.bf16.mxu0 %v2697
  %2756 = vmatmul.mubr.bf16.gmra.mrb[0].mxu0 %v2400
  %v2757 = vpop.f32.mrb[0].mxu0
  %v2758 = vadd.f32 %v2609, %v2757
  %v2759 = vpop.f32.mrb[0].mxu0
  %v2760 = vpop.f32.mrb[0].mxu0
  %v2761 = vadd.f32 %v2612, %v2760
  %v2762 = vpop.f32.mrb[0].mxu0
  %2763 = vdwg.mxu0
  %s2764 = scalar_lea.vmem %s3, 384
  %v2765 = vld [vmem:[%s2764] sm:$0xf]
  %v2766 = vld [vmem:[%s2764 + $0x4] sm:$0xf]
  %v2767 = vld [vmem:[%s2764 + $0x8] sm:$0xf]
  %v2768 = vld [vmem:[%s2764 + $0xc] sm:$0xf]
  %v2769 = vld [vmem:[%s2764 + $0x10] sm:$0xf]
  %v2770 = vld [vmem:[%s2764 + $0x14] sm:$0xf]
  %v2771 = vld [vmem:[%s2764 + $0x18] sm:$0xf]
  %v2772 = vld [vmem:[%s2764 + $0x1c] sm:$0xf]
  %v2773 = vld [vmem:[%s2764 + $0x20] sm:$0xf]
  %v2774 = vld [vmem:[%s2764 + $0x24] sm:$0xf]
  %v2775 = vld [vmem:[%s2764 + $0x28] sm:$0xf]
  %v2776 = vld [vmem:[%s2764 + $0x2c] sm:$0xf]
  %v2777 = vld [vmem:[%s2764 + $0x30] sm:$0xf]
  %v2778 = vld [vmem:[%s2764 + $0x34] sm:$0xf]
  %v2779 = vld [vmem:[%s2764 + $0x38] sm:$0xf]
  %v2780 = vld [vmem:[%s2764 + $0x3c] sm:$0xf]
  %v2781 = vld [vmem:[%s2764 + $0x40] sm:$0xf]
  %v2782 = vld [vmem:[%s2764 + $0x44] sm:$0xf]
  %v2783 = vld [vmem:[%s2764 + $0x48] sm:$0xf]
  %v2784 = vld [vmem:[%s2764 + $0x4c] sm:$0xf]
  %v2785 = vld [vmem:[%s2764 + $0x50] sm:$0xf]
  %v2786 = vld [vmem:[%s2764 + $0x54] sm:$0xf]
  %v2787 = vld [vmem:[%s2764 + $0x58] sm:$0xf]
  %v2788 = vld [vmem:[%s2764 + $0x5c] sm:$0xf]
  %v2813 = vunpack.c.l.b16 %v2765
  %v2814 = vunpack.c.l.b16 %v2766
  %v2815 = vunpack.c.l.b16 %v2767
  %v2816 = vunpack.c.l.b16 %v2768
  %v2817 = vunpack.c.l.b16 %v2769
  %v2818 = vunpack.c.l.b16 %v2770
  %v2819 = vunpack.c.l.b16 %v2771
  %v2820 = vunpack.c.l.b16 %v2772
  %v2821 = vunpack.c.l.b16 %v2773
  %v2822 = vunpack.c.l.b16 %v2774
  %v2823 = vunpack.c.l.b16 %v2775
  %v2824 = vunpack.c.l.b16 %v2776
  %v2825 = vunpack.c.l.b16 %v2777
  %v2826 = vunpack.c.l.b16 %v2778
  %v2827 = vunpack.c.l.b16 %v2779
  %v2828 = vunpack.c.l.b16 %v2780
  %v2829 = vunpack.c.l.b16 %v2781
  %v2830 = vunpack.c.l.b16 %v2782
  %v2831 = vunpack.c.l.b16 %v2783
  %v2832 = vunpack.c.l.b16 %v2784
  %v2833 = vunpack.c.l.b16 %v2785
  %v2834 = vunpack.c.l.b16 %v2786
  %v2835 = vunpack.c.l.b16 %v2787
  %v2836 = vunpack.c.l.b16 %v2788
  %v2837 = vpack.c.b16 %v2814, %v2813
  %v2838 = vpack.c.b16 %v2816, %v2815
  %v2839 = vpack.c.b16 %v2818, %v2817
  %v2840 = vpack.c.b16 %v2820, %v2819
  %v2841 = vpack.c.b16 %v2822, %v2821
  %v2842 = vpack.c.b16 %v2824, %v2823
  %v2843 = vpack.c.b16 %v2826, %v2825
  %v2844 = vpack.c.b16 %v2828, %v2827
  %v2845 = vpack.c.b16 %v2830, %v2829
  %v2846 = vpack.c.b16 %v2832, %v2831
  %v2847 = vpack.c.b16 %v2834, %v2833
  %v2848 = vpack.c.b16 %v2836, %v2835
  %v2862 = vsel %vm2537, %v2411, 0
  %2864 = vmatprep.subr.bf16.mxu0 0
  %2865 = vmatpush1.bf16.msra.mxu0 %v2837
  %2866 = vmatprep.subr.bf16.mxu0 0
  %2867 = vmatpush1.bf16.msra.mxu0 %v2838
  %2868 = vmatprep.subr.bf16.mxu0 0
  %2869 = vmatpush1.bf16.msra.mxu0 %v2839
  %2870 = vmatprep.subr.bf16.mxu0 0
  %2871 = vmatpush1.bf16.msra.mxu0 %v2840
  %2872 = vmatprep.subr.bf16.mxu0 0
  %2873 = vmatpush1.bf16.msra.mxu0 %v2841
  %2874 = vmatprep.subr.bf16.mxu0 0
  %2875 = vmatpush1.bf16.msra.mxu0 %v2842
  %2876 = vmatprep.subr.bf16.mxu0 0
  %2877 = vmatpush1.bf16.msra.mxu0 %v2843
  %2878 = vmatprep.subr.bf16.mxu0 0
  %2879 = vmatpush1.bf16.msra.mxu0 %v2844
  %2880 = vmatprep.subr.bf16.mxu0 0
  %2881 = vmatpush1.bf16.msra.mxu0 %v2845
  %2882 = vmatprep.subr.bf16.mxu0 0
  %2883 = vmatpush1.bf16.msra.mxu0 %v2846
  %2884 = vmatprep.subr.bf16.mxu0 0
  %2885 = vmatpush1.bf16.msra.mxu0 %v2847
  %2886 = vmatprep.subr.bf16.mxu0 0
  %2887 = vmatpush1.bf16.msra.mxu0 %v2848
  %2888 = vmatprep.subr.bf16.mxu0 0
  %2889 = vmatpush1.bf16.msra.mxu0 0
  %2890 = vmatprep.subr.bf16.mxu0 0
  %2891 = vmatpush1.bf16.msra.mxu0 0
  %2892 = vmatprep.subr.bf16.mxu0 0
  %2893 = vmatpush1.bf16.msra.mxu0 0
  %2894 = vmatprep.subr.bf16.mxu0 0
  %2895 = vmatpush1.bf16.msra.mxu0 0
  %2896 = vmatprep.mubr.bf16.mxu0 %v2691
  %2897 = vmatmul.mubr.bf16.gmra.mrb[0].mxu0 %v2396
  %v2898 = vpop.f32.mrb[0].mxu0
  %v2899 = vadd.f32 0.0, %v2898
  %v2900 = vpop.f32.mrb[0].mxu0
  %v2901 = vpop.f32.mrb[0].mxu0
  %v2902 = vadd.f32 0.0, %v2901
  %v2903 = vpop.f32.mrb[0].mxu0
  %2904 = vmatprep.mubr.bf16.mxu0 %v2694
  %2905 = vmatmul.mubr.bf16.gmra.mrb[0].mxu0 %v2398
  %v2906 = vpop.f32.mrb[0].mxu0
  %v2907 = vadd.f32 0.0, %v2906
  %v2908 = vpop.f32.mrb[0].mxu0
  %v2909 = vpop.f32.mrb[0].mxu0
  %v2910 = vadd.f32 0.0, %v2909
  %v2911 = vpop.f32.mrb[0].mxu0
  %2912 = vmatprep.mubr.bf16.mxu0 %v2697
  %2913 = vmatmul.mubr.bf16.gmra.mrb[0].mxu0 %v2400
  %v2914 = vpop.f32.mrb[0].mxu0
  %v2915 = vadd.f32 0.0, %v2914
  %v2916 = vpop.f32.mrb[0].mxu0
  %v2917 = vpop.f32.mrb[0].mxu0
  %v2918 = vadd.f32 0.0, %v2917
  %v2919 = vpop.f32.mrb[0].mxu0
  %2920 = vmatprep.mubr.bf16.mxu0 %v2862
  %2921 = vmatmul.mubr.bf16.gmra.mrb[0].mxu0 %v2410
  %v2922 = vpop.f32.mrb[0].mxu0
  %v2923 = vadd.f32 0.0, %v2922
  %v2924 = vpop.f32.mrb[0].mxu0
  %v2925 = vpop.f32.mrb[0].mxu0
  %v2926 = vadd.f32 0.0, %v2925
  %v2927 = vpop.f32.mrb[0].mxu0
  %2928 = vdwg.mxu0
  %v2929 = vadd.f32 %v2734, %v2899
  %v2930 = vadd.f32 %v2737, %v2902
  %v2931 = vadd.f32 %v2742, %v2907
  %v2932 = vadd.f32 %v2745, %v2910
  %v2933 = vadd.f32 %v2750, %v2915
  %v2934 = vadd.f32 %v2753, %v2918
  %v2935 = vadd.f32 %v2758, %v2923
  %v2936 = vadd.f32 %v2761, %v2926
  %s2937 = scalar_lea.vmem %s3, 576
  %v2938 = vld [vmem:[%s2937] sm:$0xf]
  %v2939 = vld [vmem:[%s2937 + $0x4] sm:$0xf]
  %v2940 = vld [vmem:[%s2937 + $0x8] sm:$0xf]
  %v2941 = vld [vmem:[%s2937 + $0xc] sm:$0xf]
  %v2942 = vld [vmem:[%s2937 + $0x10] sm:$0xf]
  %v2943 = vld [vmem:[%s2937 + $0x14] sm:$0xf]
  %v2944 = vld [vmem:[%s2937 + $0x18] sm:$0xf]
  %v2945 = vld [vmem:[%s2937 + $0x1c] sm:$0xf]
  %v2946 = vld [vmem:[%s2937 + $0x20] sm:$0xf]
  %v2947 = vld [vmem:[%s2937 + $0x24] sm:$0xf]
  %v2948 = vld [vmem:[%s2937 + $0x28] sm:$0xf]
  %v2949 = vld [vmem:[%s2937 + $0x2c] sm:$0xf]
  %v2950 = vld [vmem:[%s2937 + $0x30] sm:$0xf]
  %v2951 = vld [vmem:[%s2937 + $0x34] sm:$0xf]
  %v2952 = vld [vmem:[%s2937 + $0x38] sm:$0xf]
  %v2953 = vld [vmem:[%s2937 + $0x3c] sm:$0xf]
  %v2954 = vld [vmem:[%s2937 + $0x40] sm:$0xf]
  %v2955 = vld [vmem:[%s2937 + $0x44] sm:$0xf]
  %v2956 = vld [vmem:[%s2937 + $0x48] sm:$0xf]
  %v2957 = vld [vmem:[%s2937 + $0x4c] sm:$0xf]
  %v2958 = vld [vmem:[%s2937 + $0x50] sm:$0xf]
  %v2959 = vld [vmem:[%s2937 + $0x54] sm:$0xf]
  %v2960 = vld [vmem:[%s2937 + $0x58] sm:$0xf]
  %v2961 = vld [vmem:[%s2937 + $0x5c] sm:$0xf]
  %v2986 = vunpack.c.l.b16 %v2938
  %v2987 = vunpack.c.l.b16 %v2939
  %v2988 = vunpack.c.l.b16 %v2940
  %v2989 = vunpack.c.l.b16 %v2941
  %v2990 = vunpack.c.l.b16 %v2942
  %v2991 = vunpack.c.l.b16 %v2943
  %v2992 = vunpack.c.l.b16 %v2944
  %v2993 = vunpack.c.l.b16 %v2945
  %v2994 = vunpack.c.l.b16 %v2946
  %v2995 = vunpack.c.l.b16 %v2947
  %v2996 = vunpack.c.l.b16 %v2948
  %v2997 = vunpack.c.l.b16 %v2949
  %v2998 = vunpack.c.l.b16 %v2950
  %v2999 = vunpack.c.l.b16 %v2951
  %v3000 = vunpack.c.l.b16 %v2952
  %v3001 = vunpack.c.l.b16 %v2953
  %v3002 = vunpack.c.l.b16 %v2954
  %v3003 = vunpack.c.l.b16 %v2955
  %v3004 = vunpack.c.l.b16 %v2956
  %v3005 = vunpack.c.l.b16 %v2957
  %v3006 = vunpack.c.l.b16 %v2958
  %v3007 = vunpack.c.l.b16 %v2959
  %v3008 = vunpack.c.l.b16 %v2960
  %v3009 = vunpack.c.l.b16 %v2961
  %v3010 = vpack.c.b16 %v2987, %v2986
  %v3011 = vpack.c.b16 %v2989, %v2988
  %v3012 = vpack.c.b16 %v2991, %v2990
  %v3013 = vpack.c.b16 %v2993, %v2992
  %v3014 = vpack.c.b16 %v2995, %v2994
  %v3015 = vpack.c.b16 %v2997, %v2996
  %v3016 = vpack.c.b16 %v2999, %v2998
  %v3017 = vpack.c.b16 %v3001, %v3000
  %v3018 = vpack.c.b16 %v3003, %v3002
  %v3019 = vpack.c.b16 %v3005, %v3004
  %v3020 = vpack.c.b16 %v3007, %v3006
  %v3021 = vpack.c.b16 %v3009, %v3008
  %v3035 = vsel %vm2537, %v2413, 0
  %3037 = vmatprep.subr.bf16.mxu0 0
  %3038 = vmatpush1.bf16.msra.mxu0 %v3010
  %3039 = vmatprep.subr.bf16.mxu0 0
  %3040 = vmatpush1.bf16.msra.mxu0 %v3011
  %3041 = vmatprep.subr.bf16.mxu0 0
  %3042 = vmatpush1.bf16.msra.mxu0 %v3012
  %3043 = vmatprep.subr.bf16.mxu0 0
  %3044 = vmatpush1.bf16.msra.mxu0 %v3013
  %3045 = vmatprep.subr.bf16.mxu0 0
  %3046 = vmatpush1.bf16.msra.mxu0 %v3014
  %3047 = vmatprep.subr.bf16.mxu0 0
  %3048 = vmatpush1.bf16.msra.mxu0 %v3015
  %3049 = vmatprep.subr.bf16.mxu0 0
  %3050 = vmatpush1.bf16.msra.mxu0 %v3016
  %3051 = vmatprep.subr.bf16.mxu0 0
  %3052 = vmatpush1.bf16.msra.mxu0 %v3017
  %3053 = vmatprep.subr.bf16.mxu0 0
  %3054 = vmatpush1.bf16.msra.mxu0 %v3018
  %3055 = vmatprep.subr.bf16.mxu0 0
  %3056 = vmatpush1.bf16.msra.mxu0 %v3019
  %3057 = vmatprep.subr.bf16.mxu0 0
  %3058 = vmatpush1.bf16.msra.mxu0 %v3020
  %3059 = vmatprep.subr.bf16.mxu0 0
  %3060 = vmatpush1.bf16.msra.mxu0 %v3021
  %3061 = vmatprep.subr.bf16.mxu0 0
  %3062 = vmatpush1.bf16.msra.mxu0 0
  %3063 = vmatprep.subr.bf16.mxu0 0
  %3064 = vmatpush1.bf16.msra.mxu0 0
  %3065 = vmatprep.subr.bf16.mxu0 0
  %3066 = vmatpush1.bf16.msra.mxu0 0
  %3067 = vmatprep.subr.bf16.mxu0 0
  %3068 = vmatpush1.bf16.msra.mxu0 0
  %3069 = vmatprep.mubr.bf16.mxu0 %v2542
  %3070 = vmatmul.mubr.bf16.gmra.mrb[0].mxu0 %v2404
  %v3071 = vpop.f32.mrb[0].mxu0
  %v3072 = vadd.f32 0.0, %v3071
  %v3073 = vpop.f32.mrb[0].mxu0
  %v3074 = vpop.f32.mrb[0].mxu0
  %v3075 = vadd.f32 0.0, %v3074
  %v3076 = vpop.f32.mrb[0].mxu0
  %3077 = vmatprep.mubr.bf16.mxu0 %v2545
  %3078 = vmatmul.mubr.bf16.gmra.mrb[0].mxu0 %v2406
  %v3079 = vpop.f32.mrb[0].mxu0
  %v3080 = vadd.f32 0.0, %v3079
  %v3081 = vpop.f32.mrb[0].mxu0
  %v3082 = vpop.f32.mrb[0].mxu0
  %v3083 = vadd.f32 0.0, %v3082
  %v3084 = vpop.f32.mrb[0].mxu0
  %3085 = vmatprep.mubr.bf16.mxu0 %v2548
  %3086 = vmatmul.mubr.bf16.gmra.mrb[0].mxu0 %v2408
  %v3087 = vpop.f32.mrb[0].mxu0
  %v3088 = vadd.f32 0.0, %v3087
  %v3089 = vpop.f32.mrb[0].mxu0
  %v3090 = vpop.f32.mrb[0].mxu0
  %v3091 = vadd.f32 0.0, %v3090
  %v3092 = vpop.f32.mrb[0].mxu0
  %3093 = vmatprep.mubr.bf16.mxu0 %v3035
  %3094 = vmatmul.mubr.bf16.gmra.mrb[0].mxu0 %v2412
  %v3095 = vpop.f32.mrb[0].mxu0
  %v3096 = vadd.f32 0.0, %v3095
  %v3097 = vpop.f32.mrb[0].mxu0
  %v3098 = vpop.f32.mrb[0].mxu0
  %v3099 = vadd.f32 0.0, %v3098
  %v3100 = vpop.f32.mrb[0].mxu0
  %3101 = vdwg.mxu0
  %v3102 = vadd.f32 %v2929, %v3072
  %v3103 = vadd.f32 %v2930, %v3075
  %v3104 = vadd.f32 %v2931, %v3080
  %v3105 = vadd.f32 %v2932, %v3083
  %v3106 = vadd.f32 %v2933, %v3088
  %v3107 = vadd.f32 %v2934, %v3091
  %v3108 = vadd.f32 %v2935, %v3096
  %v3109 = vadd.f32 %v2936, %v3099
  %s3110 = scalar_lea.vmem %s3, 768
  %v3111 = vld [vmem:[%s3110] sm:$0xf]
  %v3112 = vld [vmem:[%s3110 + $0x4] sm:$0xf]
  %v3113 = vld [vmem:[%s3110 + $0x8] sm:$0xf]
  %v3114 = vld [vmem:[%s3110 + $0xc] sm:$0xf]
  %v3115 = vld [vmem:[%s3110 + $0x10] sm:$0xf]
  %v3116 = vld [vmem:[%s3110 + $0x14] sm:$0xf]
  %v3117 = vld [vmem:[%s3110 + $0x18] sm:$0xf]
  %v3118 = vld [vmem:[%s3110 + $0x1c] sm:$0xf]
  %v3119 = vld [vmem:[%s3110 + $0x20] sm:$0xf]
  %v3120 = vld [vmem:[%s3110 + $0x24] sm:$0xf]
  %v3121 = vld [vmem:[%s3110 + $0x28] sm:$0xf]
  %v3122 = vld [vmem:[%s3110 + $0x2c] sm:$0xf]
  %v3123 = vld [vmem:[%s3110 + $0x30] sm:$0xf]
  %v3124 = vld [vmem:[%s3110 + $0x34] sm:$0xf]
  %v3125 = vld [vmem:[%s3110 + $0x38] sm:$0xf]
  %v3126 = vld [vmem:[%s3110 + $0x3c] sm:$0xf]
  %v3127 = vld [vmem:[%s3110 + $0x40] sm:$0xf]
  %v3128 = vld [vmem:[%s3110 + $0x44] sm:$0xf]
  %v3129 = vld [vmem:[%s3110 + $0x48] sm:$0xf]
  %v3130 = vld [vmem:[%s3110 + $0x4c] sm:$0xf]
  %v3131 = vld [vmem:[%s3110 + $0x50] sm:$0xf]
  %v3132 = vld [vmem:[%s3110 + $0x54] sm:$0xf]
  %v3133 = vld [vmem:[%s3110 + $0x58] sm:$0xf]
  %v3134 = vld [vmem:[%s3110 + $0x5c] sm:$0xf]
  %v3159 = vunpack.c.l.b16 %v3111
  %v3160 = vunpack.c.l.b16 %v3112
  %v3161 = vunpack.c.l.b16 %v3113
  %v3162 = vunpack.c.l.b16 %v3114
  %v3163 = vunpack.c.l.b16 %v3115
  %v3164 = vunpack.c.l.b16 %v3116
  %v3165 = vunpack.c.l.b16 %v3117
  %v3166 = vunpack.c.l.b16 %v3118
  %v3167 = vunpack.c.l.b16 %v3119
  %v3168 = vunpack.c.l.b16 %v3120
  %v3169 = vunpack.c.l.b16 %v3121
  %v3170 = vunpack.c.l.b16 %v3122
  %v3171 = vunpack.c.l.b16 %v3123
  %v3172 = vunpack.c.l.b16 %v3124
  %v3173 = vunpack.c.l.b16 %v3125
  %v3174 = vunpack.c.l.b16 %v3126
  %v3175 = vunpack.c.l.b16 %v3127
  %v3176 = vunpack.c.l.b16 %v3128
  %v3177 = vunpack.c.l.b16 %v3129
  %v3178 = vunpack.c.l.b16 %v3130
  %v3179 = vunpack.c.l.b16 %v3131
  %v3180 = vunpack.c.l.b16 %v3132
  %v3181 = vunpack.c.l.b16 %v3133
  %v3182 = vunpack.c.l.b16 %v3134
  %v3183 = vpack.c.b16 %v3160, %v3159
  %v3184 = vpack.c.b16 %v3162, %v3161
  %v3185 = vpack.c.b16 %v3164, %v3163
  %v3186 = vpack.c.b16 %v3166, %v3165
  %v3187 = vpack.c.b16 %v3168, %v3167
  %v3188 = vpack.c.b16 %v3170, %v3169
  %v3189 = vpack.c.b16 %v3172, %v3171
  %v3190 = vpack.c.b16 %v3174, %v3173
  %v3191 = vpack.c.b16 %v3176, %v3175
  %v3192 = vpack.c.b16 %v3178, %v3177
  %v3193 = vpack.c.b16 %v3180, %v3179
  %v3194 = vpack.c.b16 %v3182, %v3181
  %v3208 = vsel %vm2537, %v2415, 0
  %3210 = vmatprep.subr.bf16.mxu0 0
  %3211 = vmatpush1.bf16.msra.mxu0 %v3183
  %3212 = vmatprep.subr.bf16.mxu0 0
  %3213 = vmatpush1.bf16.msra.mxu0 %v3184
  %3214 = vmatprep.subr.bf16.mxu0 0
  %3215 = vmatpush1.bf16.msra.mxu0 %v3185
  %3216 = vmatprep.subr.bf16.mxu0 0
  %3217 = vmatpush1.bf16.msra.mxu0 %v3186
  %3218 = vmatprep.subr.bf16.mxu0 0
  %3219 = vmatpush1.bf16.msra.mxu0 %v3187
  %3220 = vmatprep.subr.bf16.mxu0 0
  %3221 = vmatpush1.bf16.msra.mxu0 %v3188
  %3222 = vmatprep.subr.bf16.mxu0 0
  %3223 = vmatpush1.bf16.msra.mxu0 %v3189
  %3224 = vmatprep.subr.bf16.mxu0 0
  %3225 = vmatpush1.bf16.msra.mxu0 %v3190
  %3226 = vmatprep.subr.bf16.mxu0 0
  %3227 = vmatpush1.bf16.msra.mxu0 %v3191
  %3228 = vmatprep.subr.bf16.mxu0 0
  %3229 = vmatpush1.bf16.msra.mxu0 %v3192
  %3230 = vmatprep.subr.bf16.mxu0 0
  %3231 = vmatpush1.bf16.msra.mxu0 %v3193
  %3232 = vmatprep.subr.bf16.mxu0 0
  %3233 = vmatpush1.bf16.msra.mxu0 %v3194
  %3234 = vmatprep.subr.bf16.mxu0 0
  %3235 = vmatpush1.bf16.msra.mxu0 0
  %3236 = vmatprep.subr.bf16.mxu0 0
  %3237 = vmatpush1.bf16.msra.mxu0 0
  %3238 = vmatprep.subr.bf16.mxu0 0
  %3239 = vmatpush1.bf16.msra.mxu0 0
  %3240 = vmatprep.subr.bf16.mxu0 0
  %3241 = vmatpush1.bf16.msra.mxu0 0
  %3242 = vmatprep.mubr.bf16.mxu0 %v2694
  %3243 = vmatmul.mubr.bf16.gmra.mrb[0].mxu0 %v2398
  %v3244 = vpop.f32.mrb[0].mxu0
  %v3245 = vadd.f32 0.0, %v3244
  %v3246 = vpop.f32.mrb[0].mxu0
  %v3247 = vpop.f32.mrb[0].mxu0
  %v3248 = vadd.f32 0.0, %v3247
  %v3249 = vpop.f32.mrb[0].mxu0
  %3250 = vmatprep.mubr.bf16.mxu0 %v2697
  %3251 = vmatmul.mubr.bf16.gmra.mrb[0].mxu0 %v2400
  %v3252 = vpop.f32.mrb[0].mxu0
  %v3253 = vadd.f32 0.0, %v3252
  %v3254 = vpop.f32.mrb[0].mxu0
  %v3255 = vpop.f32.mrb[0].mxu0
  %v3256 = vadd.f32 0.0, %v3255
  %v3257 = vpop.f32.mrb[0].mxu0
  %3258 = vmatprep.mubr.bf16.mxu0 %v2862
  %3259 = vmatmul.mubr.bf16.gmra.mrb[0].mxu0 %v2410
  %v3260 = vpop.f32.mrb[0].mxu0
  %v3261 = vadd.f32 0.0, %v3260
  %v3262 = vpop.f32.mrb[0].mxu0
  %v3263 = vpop.f32.mrb[0].mxu0
  %v3264 = vadd.f32 0.0, %v3263
  %v3265 = vpop.f32.mrb[0].mxu0
  %3266 = vmatprep.mubr.bf16.mxu0 %v3208
  %3267 = vmatmul.mubr.bf16.gmra.mrb[0].mxu0 %v2414
  %v3268 = vpop.f32.mrb[0].mxu0
  %v3269 = vadd.f32 0.0, %v3268
  %v3270 = vpop.f32.mrb[0].mxu0
  %v3271 = vpop.f32.mrb[0].mxu0
  %v3272 = vadd.f32 0.0, %v3271
  %v3273 = vpop.f32.mrb[0].mxu0
  %3274 = vdwg.mxu0
  %v3275 = vadd.f32 %v3102, %v3245
  %v3276 = vadd.f32 %v3103, %v3248
  %v3277 = vadd.f32 %v3104, %v3253
  %v3278 = vadd.f32 %v3105, %v3256
  %v3279 = vadd.f32 %v3106, %v3261
  %v3280 = vadd.f32 %v3107, %v3264
  %v3281 = vadd.f32 %v3108, %v3269
  %v3282 = vadd.f32 %v3109, %v3272
  %s3283 = scalar_lea.vmem %s3, 96
  %v3284 = vld [vmem:[%s3283] sm:$0xf]
  %v3285 = vld [vmem:[%s3283 + $0x4] sm:$0xf]
  %v3286 = vld [vmem:[%s3283 + $0x8] sm:$0xf]
  %v3287 = vld [vmem:[%s3283 + $0xc] sm:$0xf]
  %v3288 = vld [vmem:[%s3283 + $0x10] sm:$0xf]
  %v3289 = vld [vmem:[%s3283 + $0x14] sm:$0xf]
  %v3290 = vld [vmem:[%s3283 + $0x18] sm:$0xf]
  %v3291 = vld [vmem:[%s3283 + $0x1c] sm:$0xf]
  %v3292 = vld [vmem:[%s3283 + $0x20] sm:$0xf]
  %v3293 = vld [vmem:[%s3283 + $0x24] sm:$0xf]
  %v3294 = vld [vmem:[%s3283 + $0x28] sm:$0xf]
  %v3295 = vld [vmem:[%s3283 + $0x2c] sm:$0xf]
  %v3296 = vld [vmem:[%s3283 + $0x30] sm:$0xf]
  %v3297 = vld [vmem:[%s3283 + $0x34] sm:$0xf]
  %v3298 = vld [vmem:[%s3283 + $0x38] sm:$0xf]
  %v3299 = vld [vmem:[%s3283 + $0x3c] sm:$0xf]
  %v3300 = vld [vmem:[%s3283 + $0x40] sm:$0xf]
  %v3301 = vld [vmem:[%s3283 + $0x44] sm:$0xf]
  %v3302 = vld [vmem:[%s3283 + $0x48] sm:$0xf]
  %v3303 = vld [vmem:[%s3283 + $0x4c] sm:$0xf]
  %v3304 = vld [vmem:[%s3283 + $0x50] sm:$0xf]
  %v3305 = vld [vmem:[%s3283 + $0x54] sm:$0xf]
  %v3306 = vld [vmem:[%s3283 + $0x58] sm:$0xf]
  %v3307 = vld [vmem:[%s3283 + $0x5c] sm:$0xf]
  %s3308 = scalar_lea.vmem %s3, 288
  %v3309 = vld [vmem:[%s3308] sm:$0xf]
  %v3310 = vld [vmem:[%s3308 + $0x4] sm:$0xf]
  %v3311 = vld [vmem:[%s3308 + $0x8] sm:$0xf]
  %v3312 = vld [vmem:[%s3308 + $0xc] sm:$0xf]
  %v3313 = vld [vmem:[%s3308 + $0x10] sm:$0xf]
  %v3314 = vld [vmem:[%s3308 + $0x14] sm:$0xf]
  %v3315 = vld [vmem:[%s3308 + $0x18] sm:$0xf]
  %v3316 = vld [vmem:[%s3308 + $0x1c] sm:$0xf]
  %v3317 = vld [vmem:[%s3308 + $0x20] sm:$0xf]
  %v3318 = vld [vmem:[%s3308 + $0x24] sm:$0xf]
  %v3319 = vld [vmem:[%s3308 + $0x28] sm:$0xf]
  %v3320 = vld [vmem:[%s3308 + $0x2c] sm:$0xf]
  %v3321 = vld [vmem:[%s3308 + $0x30] sm:$0xf]
  %v3322 = vld [vmem:[%s3308 + $0x34] sm:$0xf]
  %v3323 = vld [vmem:[%s3308 + $0x38] sm:$0xf]
  %v3324 = vld [vmem:[%s3308 + $0x3c] sm:$0xf]
  %v3325 = vld [vmem:[%s3308 + $0x40] sm:$0xf]
  %v3326 = vld [vmem:[%s3308 + $0x44] sm:$0xf]
  %v3327 = vld [vmem:[%s3308 + $0x48] sm:$0xf]
  %v3328 = vld [vmem:[%s3308 + $0x4c] sm:$0xf]
  %v3329 = vld [vmem:[%s3308 + $0x50] sm:$0xf]
  %v3330 = vld [vmem:[%s3308 + $0x54] sm:$0xf]
  %v3331 = vld [vmem:[%s3308 + $0x58] sm:$0xf]
  %v3332 = vld [vmem:[%s3308 + $0x5c] sm:$0xf]
  %v3357 = vunpack.c.l.b16 %v3309
  %v3358 = vunpack.c.l.b16 %v3310
  %v3359 = vunpack.c.l.b16 %v3311
  %v3360 = vunpack.c.l.b16 %v3312
  %v3361 = vunpack.c.l.b16 %v3313
  %v3362 = vunpack.c.l.b16 %v3314
  %v3363 = vunpack.c.l.b16 %v3315
  %v3364 = vunpack.c.l.b16 %v3316
  %v3365 = vunpack.c.l.b16 %v3317
  %v3366 = vunpack.c.l.b16 %v3318
  %v3367 = vunpack.c.l.b16 %v3319
  %v3368 = vunpack.c.l.b16 %v3320
  %v3369 = vunpack.c.l.b16 %v3321
  %v3370 = vunpack.c.l.b16 %v3322
  %v3371 = vunpack.c.l.b16 %v3323
  %v3372 = vunpack.c.l.b16 %v3324
  %v3373 = vunpack.c.l.b16 %v3325
  %v3374 = vunpack.c.l.b16 %v3326
  %v3375 = vunpack.c.l.b16 %v3327
  %v3376 = vunpack.c.l.b16 %v3328
  %v3377 = vunpack.c.l.b16 %v3329
  %v3378 = vunpack.c.l.b16 %v3330
  %v3379 = vunpack.c.l.b16 %v3331
  %v3380 = vunpack.c.l.b16 %v3332
  %v3381 = vpack.c.b16 %v3358, %v3357
  %v3382 = vpack.c.b16 %v3360, %v3359
  %v3383 = vpack.c.b16 %v3362, %v3361
  %v3384 = vpack.c.b16 %v3364, %v3363
  %v3385 = vpack.c.b16 %v3366, %v3365
  %v3386 = vpack.c.b16 %v3368, %v3367
  %v3387 = vpack.c.b16 %v3370, %v3369
  %v3388 = vpack.c.b16 %v3372, %v3371
  %v3389 = vpack.c.b16 %v3374, %v3373
  %v3390 = vpack.c.b16 %v3376, %v3375
  %v3391 = vpack.c.b16 %v3378, %v3377
  %v3392 = vpack.c.b16 %v3380, %v3379
  %3405 = vmatprep.subr.bf16.mxu0 0
  %3406 = vmatpush1.bf16.msra.mxu0 %v3381
  %3407 = vmatprep.subr.bf16.mxu0 0
  %3408 = vmatpush1.bf16.msra.mxu0 %v3382
  %3409 = vmatprep.subr.bf16.mxu0 0
  %3410 = vmatpush1.bf16.msra.mxu0 %v3383
  %3411 = vmatprep.subr.bf16.mxu0 0
  %3412 = vmatpush1.bf16.msra.mxu0 %v3384
  %3413 = vmatprep.subr.bf16.mxu0 0
  %3414 = vmatpush1.bf16.msra.mxu0 %v3385
  %3415 = vmatprep.subr.bf16.mxu0 0
  %3416 = vmatpush1.bf16.msra.mxu0 %v3386
  %3417 = vmatprep.subr.bf16.mxu0 0
  %3418 = vmatpush1.bf16.msra.mxu0 %v3387
  %3419 = vmatprep.subr.bf16.mxu0 0
  %3420 = vmatpush1.bf16.msra.mxu0 %v3388
  %3421 = vmatprep.subr.bf16.mxu0 0
  %3422 = vmatpush1.bf16.msra.mxu0 %v3389
  %3423 = vmatprep.subr.bf16.mxu0 0
  %3424 = vmatpush1.bf16.msra.mxu0 %v3390
  %3425 = vmatprep.subr.bf16.mxu0 0
  %3426 = vmatpush1.bf16.msra.mxu0 %v3391
  %3427 = vmatprep.subr.bf16.mxu0 0
  %3428 = vmatpush1.bf16.msra.mxu0 %v3392
  %3429 = vmatprep.subr.bf16.mxu0 0
  %3430 = vmatpush1.bf16.msra.mxu0 0
  %3431 = vmatprep.subr.bf16.mxu0 0
  %3432 = vmatpush1.bf16.msra.mxu0 0
  %3433 = vmatprep.subr.bf16.mxu0 0
  %3434 = vmatpush1.bf16.msra.mxu0 0
  %3435 = vmatprep.subr.bf16.mxu0 0
  %3436 = vmatpush1.bf16.msra.mxu0 0
  %3437 = vmatprep.mubr.bf16.mxu0 %v2539
  %3438 = vmatmul.mubr.bf16.gmra.mrb[0].mxu0 %v2402
  %v3439 = vpop.f32.mrb[0].mxu0
  %v3440 = vadd.f32 0.0, %v3439
  %v3441 = vpop.f32.mrb[0].mxu0
  %v3442 = vpop.f32.mrb[0].mxu0
  %v3443 = vadd.f32 0.0, %v3442
  %v3444 = vpop.f32.mrb[0].mxu0
  %3445 = vmatprep.mubr.bf16.mxu0 %v2542
  %3446 = vmatmul.mubr.bf16.gmra.mrb[0].mxu0 %v2404
  %v3447 = vpop.f32.mrb[0].mxu0
  %v3448 = vadd.f32 0.0, %v3447
  %v3449 = vpop.f32.mrb[0].mxu0
  %v3450 = vpop.f32.mrb[0].mxu0
  %v3451 = vadd.f32 0.0, %v3450
  %v3452 = vpop.f32.mrb[0].mxu0
  %3453 = vmatprep.mubr.bf16.mxu0 %v2545
  %3454 = vmatmul.mubr.bf16.gmra.mrb[0].mxu0 %v2406
  %v3455 = vpop.f32.mrb[0].mxu0
  %v3456 = vadd.f32 0.0, %v3455
  %v3457 = vpop.f32.mrb[0].mxu0
  %v3458 = vpop.f32.mrb[0].mxu0
  %v3459 = vadd.f32 0.0, %v3458
  %v3460 = vpop.f32.mrb[0].mxu0
  %3461 = vmatprep.mubr.bf16.mxu0 %v2548
  %3462 = vmatmul.mubr.bf16.gmra.mrb[0].mxu0 %v2408
  %v3463 = vpop.f32.mrb[0].mxu0
  %v3464 = vadd.f32 0.0, %v3463
  %v3465 = vpop.f32.mrb[0].mxu0
  %v3466 = vpop.f32.mrb[0].mxu0
  %v3467 = vadd.f32 0.0, %v3466
  %v3468 = vpop.f32.mrb[0].mxu0
  %3469 = vdwg.mxu0
  %v3494 = vunpack.c.l.b16 %v3284
  %v3495 = vunpack.c.l.b16 %v3285
  %v3496 = vunpack.c.l.b16 %v3286
  %v3497 = vunpack.c.l.b16 %v3287
  %v3498 = vunpack.c.l.b16 %v3288
  %v3499 = vunpack.c.l.b16 %v3289
  %v3500 = vunpack.c.l.b16 %v3290
  %v3501 = vunpack.c.l.b16 %v3291
  %v3502 = vunpack.c.l.b16 %v3292
  %v3503 = vunpack.c.l.b16 %v3293
  %v3504 = vunpack.c.l.b16 %v3294
  %v3505 = vunpack.c.l.b16 %v3295
  %v3506 = vunpack.c.l.b16 %v3296
  %v3507 = vunpack.c.l.b16 %v3297
  %v3508 = vunpack.c.l.b16 %v3298
  %v3509 = vunpack.c.l.b16 %v3299
  %v3510 = vunpack.c.l.b16 %v3300
  %v3511 = vunpack.c.l.b16 %v3301
  %v3512 = vunpack.c.l.b16 %v3302
  %v3513 = vunpack.c.l.b16 %v3303
  %v3514 = vunpack.c.l.b16 %v3304
  %v3515 = vunpack.c.l.b16 %v3305
  %v3516 = vunpack.c.l.b16 %v3306
  %v3517 = vunpack.c.l.b16 %v3307
  %v3518 = vpack.c.b16 %v3495, %v3494
  %v3519 = vpack.c.b16 %v3497, %v3496
  %v3520 = vpack.c.b16 %v3499, %v3498
  %v3521 = vpack.c.b16 %v3501, %v3500
  %v3522 = vpack.c.b16 %v3503, %v3502
  %v3523 = vpack.c.b16 %v3505, %v3504
  %v3524 = vpack.c.b16 %v3507, %v3506
  %v3525 = vpack.c.b16 %v3509, %v3508
  %v3526 = vpack.c.b16 %v3511, %v3510
  %v3527 = vpack.c.b16 %v3513, %v3512
  %v3528 = vpack.c.b16 %v3515, %v3514
  %v3529 = vpack.c.b16 %v3517, %v3516
  %3542 = vmatprep.subr.bf16.mxu0 0
  %3543 = vmatpush1.bf16.msra.mxu0 %v3518
  %3544 = vmatprep.subr.bf16.mxu0 0
  %3545 = vmatpush1.bf16.msra.mxu0 %v3519
  %3546 = vmatprep.subr.bf16.mxu0 0
  %3547 = vmatpush1.bf16.msra.mxu0 %v3520
  %3548 = vmatprep.subr.bf16.mxu0 0
  %3549 = vmatpush1.bf16.msra.mxu0 %v3521
  %3550 = vmatprep.subr.bf16.mxu0 0
  %3551 = vmatpush1.bf16.msra.mxu0 %v3522
  %3552 = vmatprep.subr.bf16.mxu0 0
  %3553 = vmatpush1.bf16.msra.mxu0 %v3523
  %3554 = vmatprep.subr.bf16.mxu0 0
  %3555 = vmatpush1.bf16.msra.mxu0 %v3524
  %3556 = vmatprep.subr.bf16.mxu0 0
  %3557 = vmatpush1.bf16.msra.mxu0 %v3525
  %3558 = vmatprep.subr.bf16.mxu0 0
  %3559 = vmatpush1.bf16.msra.mxu0 %v3526
  %3560 = vmatprep.subr.bf16.mxu0 0
  %3561 = vmatpush1.bf16.msra.mxu0 %v3527
  %3562 = vmatprep.subr.bf16.mxu0 0
  %3563 = vmatpush1.bf16.msra.mxu0 %v3528
  %3564 = vmatprep.subr.bf16.mxu0 0
  %3565 = vmatpush1.bf16.msra.mxu0 %v3529
  %3566 = vmatprep.subr.bf16.mxu0 0
  %3567 = vmatpush1.bf16.msra.mxu0 0
  %3568 = vmatprep.subr.bf16.mxu0 0
  %3569 = vmatpush1.bf16.msra.mxu0 0
  %3570 = vmatprep.subr.bf16.mxu0 0
  %3571 = vmatpush1.bf16.msra.mxu0 0
  %3572 = vmatprep.subr.bf16.mxu0 0
  %3573 = vmatpush1.bf16.msra.mxu0 0
  %3574 = vmatprep.mubr.bf16.mxu0 %v2688
  %3575 = vmatmul.mubr.bf16.gmra.mrb[0].mxu0 %v2394
  %v3576 = vpop.f32.mrb[0].mxu0
  %v3577 = vadd.f32 %v3440, %v3576
  %v3578 = vpop.f32.mrb[0].mxu0
  %v3579 = vpop.f32.mrb[0].mxu0
  %v3580 = vadd.f32 %v3443, %v3579
  %v3581 = vpop.f32.mrb[0].mxu0
  %3582 = vmatprep.mubr.bf16.mxu0 %v2691
  %3583 = vmatmul.mubr.bf16.gmra.mrb[0].mxu0 %v2396
  %v3584 = vpop.f32.mrb[0].mxu0
  %v3585 = vadd.f32 %v3448, %v3584
  %v3586 = vpop.f32.mrb[0].mxu0
  %v3587 = vpop.f32.mrb[0].mxu0
  %v3588 = vadd.f32 %v3451, %v3587
  %v3589 = vpop.f32.mrb[0].mxu0
  %3590 = vmatprep.mubr.bf16.mxu0 %v2694
  %3591 = vmatmul.mubr.bf16.gmra.mrb[0].mxu0 %v2398
  %v3592 = vpop.f32.mrb[0].mxu0
  %v3593 = vadd.f32 %v3456, %v3592
  %v3594 = vpop.f32.mrb[0].mxu0
  %v3595 = vpop.f32.mrb[0].mxu0
  %v3596 = vadd.f32 %v3459, %v3595
  %v3597 = vpop.f32.mrb[0].mxu0
  %3598 = vmatprep.mubr.bf16.mxu0 %v2697
  %3599 = vmatmul.mubr.bf16.gmra.mrb[0].mxu0 %v2400
  %v3600 = vpop.f32.mrb[0].mxu0
  %v3601 = vadd.f32 %v3464, %v3600
  %v3602 = vpop.f32.mrb[0].mxu0
  %v3603 = vpop.f32.mrb[0].mxu0
  %v3604 = vadd.f32 %v3467, %v3603
  %v3605 = vpop.f32.mrb[0].mxu0
  %3606 = vdwg.mxu0
  %s3607 = scalar_lea.vmem %s3, 480
  %v3608 = vld [vmem:[%s3607] sm:$0xf]
  %v3609 = vld [vmem:[%s3607 + $0x4] sm:$0xf]
  %v3610 = vld [vmem:[%s3607 + $0x8] sm:$0xf]
  %v3611 = vld [vmem:[%s3607 + $0xc] sm:$0xf]
  %v3612 = vld [vmem:[%s3607 + $0x10] sm:$0xf]
  %v3613 = vld [vmem:[%s3607 + $0x14] sm:$0xf]
  %v3614 = vld [vmem:[%s3607 + $0x18] sm:$0xf]
  %v3615 = vld [vmem:[%s3607 + $0x1c] sm:$0xf]
  %v3616 = vld [vmem:[%s3607 + $0x20] sm:$0xf]
  %v3617 = vld [vmem:[%s3607 + $0x24] sm:$0xf]
  %v3618 = vld [vmem:[%s3607 + $0x28] sm:$0xf]
  %v3619 = vld [vmem:[%s3607 + $0x2c] sm:$0xf]
  %v3620 = vld [vmem:[%s3607 + $0x30] sm:$0xf]
  %v3621 = vld [vmem:[%s3607 + $0x34] sm:$0xf]
  %v3622 = vld [vmem:[%s3607 + $0x38] sm:$0xf]
  %v3623 = vld [vmem:[%s3607 + $0x3c] sm:$0xf]
  %v3624 = vld [vmem:[%s3607 + $0x40] sm:$0xf]
  %v3625 = vld [vmem:[%s3607 + $0x44] sm:$0xf]
  %v3626 = vld [vmem:[%s3607 + $0x48] sm:$0xf]
  %v3627 = vld [vmem:[%s3607 + $0x4c] sm:$0xf]
  %v3628 = vld [vmem:[%s3607 + $0x50] sm:$0xf]
  %v3629 = vld [vmem:[%s3607 + $0x54] sm:$0xf]
  %v3630 = vld [vmem:[%s3607 + $0x58] sm:$0xf]
  %v3631 = vld [vmem:[%s3607 + $0x5c] sm:$0xf]
  %v3656 = vunpack.c.l.b16 %v3608
  %v3657 = vunpack.c.l.b16 %v3609
  %v3658 = vunpack.c.l.b16 %v3610
  %v3659 = vunpack.c.l.b16 %v3611
  %v3660 = vunpack.c.l.b16 %v3612
  %v3661 = vunpack.c.l.b16 %v3613
  %v3662 = vunpack.c.l.b16 %v3614
  %v3663 = vunpack.c.l.b16 %v3615
  %v3664 = vunpack.c.l.b16 %v3616
  %v3665 = vunpack.c.l.b16 %v3617
  %v3666 = vunpack.c.l.b16 %v3618
  %v3667 = vunpack.c.l.b16 %v3619
  %v3668 = vunpack.c.l.b16 %v3620
  %v3669 = vunpack.c.l.b16 %v3621
  %v3670 = vunpack.c.l.b16 %v3622
  %v3671 = vunpack.c.l.b16 %v3623
  %v3672 = vunpack.c.l.b16 %v3624
  %v3673 = vunpack.c.l.b16 %v3625
  %v3674 = vunpack.c.l.b16 %v3626
  %v3675 = vunpack.c.l.b16 %v3627
  %v3676 = vunpack.c.l.b16 %v3628
  %v3677 = vunpack.c.l.b16 %v3629
  %v3678 = vunpack.c.l.b16 %v3630
  %v3679 = vunpack.c.l.b16 %v3631
  %v3680 = vpack.c.b16 %v3657, %v3656
  %v3681 = vpack.c.b16 %v3659, %v3658
  %v3682 = vpack.c.b16 %v3661, %v3660
  %v3683 = vpack.c.b16 %v3663, %v3662
  %v3684 = vpack.c.b16 %v3665, %v3664
  %v3685 = vpack.c.b16 %v3667, %v3666
  %v3686 = vpack.c.b16 %v3669, %v3668
  %v3687 = vpack.c.b16 %v3671, %v3670
  %v3688 = vpack.c.b16 %v3673, %v3672
  %v3689 = vpack.c.b16 %v3675, %v3674
  %v3690 = vpack.c.b16 %v3677, %v3676
  %v3691 = vpack.c.b16 %v3679, %v3678
  %3704 = vmatprep.subr.bf16.mxu0 0
  %3705 = vmatpush1.bf16.msra.mxu0 %v3680
  %3706 = vmatprep.subr.bf16.mxu0 0
  %3707 = vmatpush1.bf16.msra.mxu0 %v3681
  %3708 = vmatprep.subr.bf16.mxu0 0
  %3709 = vmatpush1.bf16.msra.mxu0 %v3682
  %3710 = vmatprep.subr.bf16.mxu0 0
  %3711 = vmatpush1.bf16.msra.mxu0 %v3683
  %3712 = vmatprep.subr.bf16.mxu0 0
  %3713 = vmatpush1.bf16.msra.mxu0 %v3684
  %3714 = vmatprep.subr.bf16.mxu0 0
  %3715 = vmatpush1.bf16.msra.mxu0 %v3685
  %3716 = vmatprep.subr.bf16.mxu0 0
  %3717 = vmatpush1.bf16.msra.mxu0 %v3686
  %3718 = vmatprep.subr.bf16.mxu0 0
  %3719 = vmatpush1.bf16.msra.mxu0 %v3687
  %3720 = vmatprep.subr.bf16.mxu0 0
  %3721 = vmatpush1.bf16.msra.mxu0 %v3688
  %3722 = vmatprep.subr.bf16.mxu0 0
  %3723 = vmatpush1.bf16.msra.mxu0 %v3689
  %3724 = vmatprep.subr.bf16.mxu0 0
  %3725 = vmatpush1.bf16.msra.mxu0 %v3690
  %3726 = vmatprep.subr.bf16.mxu0 0
  %3727 = vmatpush1.bf16.msra.mxu0 %v3691
  %3728 = vmatprep.subr.bf16.mxu0 0
  %3729 = vmatpush1.bf16.msra.mxu0 0
  %3730 = vmatprep.subr.bf16.mxu0 0
  %3731 = vmatpush1.bf16.msra.mxu0 0
  %3732 = vmatprep.subr.bf16.mxu0 0
  %3733 = vmatpush1.bf16.msra.mxu0 0
  %3734 = vmatprep.subr.bf16.mxu0 0
  %3735 = vmatpush1.bf16.msra.mxu0 0
  %3736 = vmatprep.mubr.bf16.mxu0 %v2691
  %3737 = vmatmul.mubr.bf16.gmra.mrb[0].mxu0 %v2396
  %v3738 = vpop.f32.mrb[0].mxu0
  %v3739 = vadd.f32 0.0, %v3738
  %v3740 = vpop.f32.mrb[0].mxu0
  %v3741 = vpop.f32.mrb[0].mxu0
  %v3742 = vadd.f32 0.0, %v3741
  %v3743 = vpop.f32.mrb[0].mxu0
  %3744 = vmatprep.mubr.bf16.mxu0 %v2694
  %3745 = vmatmul.mubr.bf16.gmra.mrb[0].mxu0 %v2398
  %v3746 = vpop.f32.mrb[0].mxu0
  %v3747 = vadd.f32 0.0, %v3746
  %v3748 = vpop.f32.mrb[0].mxu0
  %v3749 = vpop.f32.mrb[0].mxu0
  %v3750 = vadd.f32 0.0, %v3749
  %v3751 = vpop.f32.mrb[0].mxu0
  %3752 = vmatprep.mubr.bf16.mxu0 %v2697
  %3753 = vmatmul.mubr.bf16.gmra.mrb[0].mxu0 %v2400
  %v3754 = vpop.f32.mrb[0].mxu0
  %v3755 = vadd.f32 0.0, %v3754
  %v3756 = vpop.f32.mrb[0].mxu0
  %v3757 = vpop.f32.mrb[0].mxu0
  %v3758 = vadd.f32 0.0, %v3757
  %v3759 = vpop.f32.mrb[0].mxu0
  %3760 = vmatprep.mubr.bf16.mxu0 %v2862
  %3761 = vmatmul.mubr.bf16.gmra.mrb[0].mxu0 %v2410
  %v3762 = vpop.f32.mrb[0].mxu0
  %v3763 = vadd.f32 0.0, %v3762
  %v3764 = vpop.f32.mrb[0].mxu0
  %v3765 = vpop.f32.mrb[0].mxu0
  %v3766 = vadd.f32 0.0, %v3765
  %v3767 = vpop.f32.mrb[0].mxu0
  %3768 = vdwg.mxu0
  %v3769 = vadd.f32 %v3577, %v3739
  %v3770 = vadd.f32 %v3580, %v3742
  %v3771 = vadd.f32 %v3585, %v3747
  %v3772 = vadd.f32 %v3588, %v3750
  %v3773 = vadd.f32 %v3593, %v3755
  %v3774 = vadd.f32 %v3596, %v3758
  %v3775 = vadd.f32 %v3601, %v3763
  %v3776 = vadd.f32 %v3604, %v3766
  %s3777 = scalar_lea.vmem %s3, 672
  %v3778 = vld [vmem:[%s3777] sm:$0xf]
  %v3779 = vld [vmem:[%s3777 + $0x4] sm:$0xf]
  %v3780 = vld [vmem:[%s3777 + $0x8] sm:$0xf]
  %v3781 = vld [vmem:[%s3777 + $0xc] sm:$0xf]
  %v3782 = vld [vmem:[%s3777 + $0x10] sm:$0xf]
  %v3783 = vld [vmem:[%s3777 + $0x14] sm:$0xf]
  %v3784 = vld [vmem:[%s3777 + $0x18] sm:$0xf]
  %v3785 = vld [vmem:[%s3777 + $0x1c] sm:$0xf]
  %v3786 = vld [vmem:[%s3777 + $0x20] sm:$0xf]
  %v3787 = vld [vmem:[%s3777 + $0x24] sm:$0xf]
  %v3788 = vld [vmem:[%s3777 + $0x28] sm:$0xf]
  %v3789 = vld [vmem:[%s3777 + $0x2c] sm:$0xf]
  %v3790 = vld [vmem:[%s3777 + $0x30] sm:$0xf]
  %v3791 = vld [vmem:[%s3777 + $0x34] sm:$0xf]
  %v3792 = vld [vmem:[%s3777 + $0x38] sm:$0xf]
  %v3793 = vld [vmem:[%s3777 + $0x3c] sm:$0xf]
  %v3794 = vld [vmem:[%s3777 + $0x40] sm:$0xf]
  %v3795 = vld [vmem:[%s3777 + $0x44] sm:$0xf]
  %v3796 = vld [vmem:[%s3777 + $0x48] sm:$0xf]
  %v3797 = vld [vmem:[%s3777 + $0x4c] sm:$0xf]
  %v3798 = vld [vmem:[%s3777 + $0x50] sm:$0xf]
  %v3799 = vld [vmem:[%s3777 + $0x54] sm:$0xf]
  %v3800 = vld [vmem:[%s3777 + $0x58] sm:$0xf]
  %v3801 = vld [vmem:[%s3777 + $0x5c] sm:$0xf]
  %v3826 = vunpack.c.l.b16 %v3778
  %v3827 = vunpack.c.l.b16 %v3779
  %v3828 = vunpack.c.l.b16 %v3780
  %v3829 = vunpack.c.l.b16 %v3781
  %v3830 = vunpack.c.l.b16 %v3782
  %v3831 = vunpack.c.l.b16 %v3783
  %v3832 = vunpack.c.l.b16 %v3784
  %v3833 = vunpack.c.l.b16 %v3785
  %v3834 = vunpack.c.l.b16 %v3786
  %v3835 = vunpack.c.l.b16 %v3787
  %v3836 = vunpack.c.l.b16 %v3788
  %v3837 = vunpack.c.l.b16 %v3789
  %v3838 = vunpack.c.l.b16 %v3790
  %v3839 = vunpack.c.l.b16 %v3791
  %v3840 = vunpack.c.l.b16 %v3792
  %v3841 = vunpack.c.l.b16 %v3793
  %v3842 = vunpack.c.l.b16 %v3794
  %v3843 = vunpack.c.l.b16 %v3795
  %v3844 = vunpack.c.l.b16 %v3796
  %v3845 = vunpack.c.l.b16 %v3797
  %v3846 = vunpack.c.l.b16 %v3798
  %v3847 = vunpack.c.l.b16 %v3799
  %v3848 = vunpack.c.l.b16 %v3800
  %v3849 = vunpack.c.l.b16 %v3801
  %v3850 = vpack.c.b16 %v3827, %v3826
  %v3851 = vpack.c.b16 %v3829, %v3828
  %v3852 = vpack.c.b16 %v3831, %v3830
  %v3853 = vpack.c.b16 %v3833, %v3832
  %v3854 = vpack.c.b16 %v3835, %v3834
  %v3855 = vpack.c.b16 %v3837, %v3836
  %v3856 = vpack.c.b16 %v3839, %v3838
  %v3857 = vpack.c.b16 %v3841, %v3840
  %v3858 = vpack.c.b16 %v3843, %v3842
  %v3859 = vpack.c.b16 %v3845, %v3844
  %v3860 = vpack.c.b16 %v3847, %v3846
  %v3861 = vpack.c.b16 %v3849, %v3848
  %3874 = vmatprep.subr.bf16.mxu0 0
  %3875 = vmatpush1.bf16.msra.mxu0 %v3850
  %3876 = vmatprep.subr.bf16.mxu0 0
  %3877 = vmatpush1.bf16.msra.mxu0 %v3851
  %3878 = vmatprep.subr.bf16.mxu0 0
  %3879 = vmatpush1.bf16.msra.mxu0 %v3852
  %3880 = vmatprep.subr.bf16.mxu0 0
  %3881 = vmatpush1.bf16.msra.mxu0 %v3853
  %3882 = vmatprep.subr.bf16.mxu0 0
  %3883 = vmatpush1.bf16.msra.mxu0 %v3854
  %3884 = vmatprep.subr.bf16.mxu0 0
  %3885 = vmatpush1.bf16.msra.mxu0 %v3855
  %3886 = vmatprep.subr.bf16.mxu0 0
  %3887 = vmatpush1.bf16.msra.mxu0 %v3856
  %3888 = vmatprep.subr.bf16.mxu0 0
  %3889 = vmatpush1.bf16.msra.mxu0 %v3857
  %3890 = vmatprep.subr.bf16.mxu0 0
  %3891 = vmatpush1.bf16.msra.mxu0 %v3858
  %3892 = vmatprep.subr.bf16.mxu0 0
  %3893 = vmatpush1.bf16.msra.mxu0 %v3859
  %3894 = vmatprep.subr.bf16.mxu0 0
  %3895 = vmatpush1.bf16.msra.mxu0 %v3860
  %3896 = vmatprep.subr.bf16.mxu0 0
  %3897 = vmatpush1.bf16.msra.mxu0 %v3861
  %3898 = vmatprep.subr.bf16.mxu0 0
  %3899 = vmatpush1.bf16.msra.mxu0 0
  %3900 = vmatprep.subr.bf16.mxu0 0
  %3901 = vmatpush1.bf16.msra.mxu0 0
  %3902 = vmatprep.subr.bf16.mxu0 0
  %3903 = vmatpush1.bf16.msra.mxu0 0
  %3904 = vmatprep.subr.bf16.mxu0 0
  %3905 = vmatpush1.bf16.msra.mxu0 0
  %3906 = vmatprep.mubr.bf16.mxu0 %v2542
  %3907 = vmatmul.mubr.bf16.gmra.mrb[0].mxu0 %v2404
  %v3908 = vpop.f32.mrb[0].mxu0
  %v3909 = vadd.f32 0.0, %v3908
  %v3910 = vpop.f32.mrb[0].mxu0
  %v3911 = vpop.f32.mrb[0].mxu0
  %v3912 = vadd.f32 0.0, %v3911
  %v3913 = vpop.f32.mrb[0].mxu0
  %3914 = vmatprep.mubr.bf16.mxu0 %v2545
  %3915 = vmatmul.mubr.bf16.gmra.mrb[0].mxu0 %v2406
  %v3916 = vpop.f32.mrb[0].mxu0
  %v3917 = vadd.f32 0.0, %v3916
  %v3918 = vpop.f32.mrb[0].mxu0
  %v3919 = vpop.f32.mrb[0].mxu0
  %v3920 = vadd.f32 0.0, %v3919
  %v3921 = vpop.f32.mrb[0].mxu0
  %3922 = vmatprep.mubr.bf16.mxu0 %v2548
  %3923 = vmatmul.mubr.bf16.gmra.mrb[0].mxu0 %v2408
  %v3924 = vpop.f32.mrb[0].mxu0
  %v3925 = vadd.f32 0.0, %v3924
  %v3926 = vpop.f32.mrb[0].mxu0
  %v3927 = vpop.f32.mrb[0].mxu0
  %v3928 = vadd.f32 0.0, %v3927
  %v3929 = vpop.f32.mrb[0].mxu0
  %3930 = vmatprep.mubr.bf16.mxu0 %v3035
  %3931 = vmatmul.mubr.bf16.gmra.mrb[0].mxu0 %v2412
  %v3932 = vpop.f32.mrb[0].mxu0
  %v3933 = vadd.f32 0.0, %v3932
  %v3934 = vpop.f32.mrb[0].mxu0
  %v3935 = vpop.f32.mrb[0].mxu0
  %v3936 = vadd.f32 0.0, %v3935
  %v3937 = vpop.f32.mrb[0].mxu0
  %3938 = vdwg.mxu0
  %v3939 = vadd.f32 %v3769, %v3909
  %v3940 = vadd.f32 %v3770, %v3912
  %v3941 = vadd.f32 %v3771, %v3917
  %v3942 = vadd.f32 %v3772, %v3920
  %v3943 = vadd.f32 %v3773, %v3925
  %v3944 = vadd.f32 %v3774, %v3928
  %v3945 = vadd.f32 %v3775, %v3933
  %v3946 = vadd.f32 %v3776, %v3936
  %s3947 = scalar_lea.vmem %s3, 864
  %v3948 = vld [vmem:[%s3947] sm:$0xf]
  %v3949 = vld [vmem:[%s3947 + $0x4] sm:$0xf]
  %v3950 = vld [vmem:[%s3947 + $0x8] sm:$0xf]
  %v3951 = vld [vmem:[%s3947 + $0xc] sm:$0xf]
  %v3952 = vld [vmem:[%s3947 + $0x10] sm:$0xf]
  %v3953 = vld [vmem:[%s3947 + $0x14] sm:$0xf]
  %v3954 = vld [vmem:[%s3947 + $0x18] sm:$0xf]
  %v3955 = vld [vmem:[%s3947 + $0x1c] sm:$0xf]
  %v3956 = vld [vmem:[%s3947 + $0x20] sm:$0xf]
  %v3957 = vld [vmem:[%s3947 + $0x24] sm:$0xf]
  %v3958 = vld [vmem:[%s3947 + $0x28] sm:$0xf]
  %v3959 = vld [vmem:[%s3947 + $0x2c] sm:$0xf]
  %v3960 = vld [vmem:[%s3947 + $0x30] sm:$0xf]
  %v3961 = vld [vmem:[%s3947 + $0x34] sm:$0xf]
  %v3962 = vld [vmem:[%s3947 + $0x38] sm:$0xf]
  %v3963 = vld [vmem:[%s3947 + $0x3c] sm:$0xf]
  %v3964 = vld [vmem:[%s3947 + $0x40] sm:$0xf]
  %v3965 = vld [vmem:[%s3947 + $0x44] sm:$0xf]
  %v3966 = vld [vmem:[%s3947 + $0x48] sm:$0xf]
  %v3967 = vld [vmem:[%s3947 + $0x4c] sm:$0xf]
  %v3968 = vld [vmem:[%s3947 + $0x50] sm:$0xf]
  %v3969 = vld [vmem:[%s3947 + $0x54] sm:$0xf]
  %v3970 = vld [vmem:[%s3947 + $0x58] sm:$0xf]
  %v3971 = vld [vmem:[%s3947 + $0x5c] sm:$0xf]
  %v3996 = vunpack.c.l.b16 %v3948
  %v3997 = vunpack.c.l.b16 %v3949
  %v3998 = vunpack.c.l.b16 %v3950
  %v3999 = vunpack.c.l.b16 %v3951
  %v4000 = vunpack.c.l.b16 %v3952
  %v4001 = vunpack.c.l.b16 %v3953
  %v4002 = vunpack.c.l.b16 %v3954
  %v4003 = vunpack.c.l.b16 %v3955
  %v4004 = vunpack.c.l.b16 %v3956
  %v4005 = vunpack.c.l.b16 %v3957
  %v4006 = vunpack.c.l.b16 %v3958
  %v4007 = vunpack.c.l.b16 %v3959
  %v4008 = vunpack.c.l.b16 %v3960
  %v4009 = vunpack.c.l.b16 %v3961
  %v4010 = vunpack.c.l.b16 %v3962
  %v4011 = vunpack.c.l.b16 %v3963
  %v4012 = vunpack.c.l.b16 %v3964
  %v4013 = vunpack.c.l.b16 %v3965
  %v4014 = vunpack.c.l.b16 %v3966
  %v4015 = vunpack.c.l.b16 %v3967
  %v4016 = vunpack.c.l.b16 %v3968
  %v4017 = vunpack.c.l.b16 %v3969
  %v4018 = vunpack.c.l.b16 %v3970
  %v4019 = vunpack.c.l.b16 %v3971
  %v4020 = vpack.c.b16 %v3997, %v3996
  %v4021 = vpack.c.b16 %v3999, %v3998
  %v4022 = vpack.c.b16 %v4001, %v4000
  %v4023 = vpack.c.b16 %v4003, %v4002
  %v4024 = vpack.c.b16 %v4005, %v4004
  %v4025 = vpack.c.b16 %v4007, %v4006
  %v4026 = vpack.c.b16 %v4009, %v4008
  %v4027 = vpack.c.b16 %v4011, %v4010
  %v4028 = vpack.c.b16 %v4013, %v4012
  %v4029 = vpack.c.b16 %v4015, %v4014
  %v4030 = vpack.c.b16 %v4017, %v4016
  %v4031 = vpack.c.b16 %v4019, %v4018
  %4044 = vmatprep.subr.bf16.mxu0 0
  %4045 = vmatpush1.bf16.msra.mxu0 %v4020
  %4046 = vmatprep.subr.bf16.mxu0 0
  %4047 = vmatpush1.bf16.msra.mxu0 %v4021
  %4048 = vmatprep.subr.bf16.mxu0 0
  %4049 = vmatpush1.bf16.msra.mxu0 %v4022
  %4050 = vmatprep.subr.bf16.mxu0 0
  %4051 = vmatpush1.bf16.msra.mxu0 %v4023
  %4052 = vmatprep.subr.bf16.mxu0 0
  %4053 = vmatpush1.bf16.msra.mxu0 %v4024
  %4054 = vmatprep.subr.bf16.mxu0 0
  %4055 = vmatpush1.bf16.msra.mxu0 %v4025
  %4056 = vmatprep.subr.bf16.mxu0 0
  %4057 = vmatpush1.bf16.msra.mxu0 %v4026
  %4058 = vmatprep.subr.bf16.mxu0 0
  %4059 = vmatpush1.bf16.msra.mxu0 %v4027
  %4060 = vmatprep.subr.bf16.mxu0 0
  %4061 = vmatpush1.bf16.msra.mxu0 %v4028
  %4062 = vmatprep.subr.bf16.mxu0 0
  %4063 = vmatpush1.bf16.msra.mxu0 %v4029
  %4064 = vmatprep.subr.bf16.mxu0 0
  %4065 = vmatpush1.bf16.msra.mxu0 %v4030
  %4066 = vmatprep.subr.bf16.mxu0 0
  %4067 = vmatpush1.bf16.msra.mxu0 %v4031
  %4068 = vmatprep.subr.bf16.mxu0 0
  %4069 = vmatpush1.bf16.msra.mxu0 0
  %4070 = vmatprep.subr.bf16.mxu0 0
  %4071 = vmatpush1.bf16.msra.mxu0 0
  %4072 = vmatprep.subr.bf16.mxu0 0
  %4073 = vmatpush1.bf16.msra.mxu0 0
  %4074 = vmatprep.subr.bf16.mxu0 0
  %4075 = vmatpush1.bf16.msra.mxu0 0
  %4076 = vmatprep.mubr.bf16.mxu0 %v2694
  %4077 = vmatmul.mubr.bf16.gmra.mrb[0].mxu0 %v2398
  %v4078 = vpop.f32.mrb[0].mxu0
  %v4079 = vadd.f32 0.0, %v4078
  %v4080 = vpop.f32.mrb[0].mxu0
  %v4081 = vpop.f32.mrb[0].mxu0
  %v4082 = vadd.f32 0.0, %v4081
  %v4083 = vpop.f32.mrb[0].mxu0
  %4084 = vmatprep.mubr.bf16.mxu0 %v2697
  %4085 = vmatmul.mubr.bf16.gmra.mrb[0].mxu0 %v2400
  %v4086 = vpop.f32.mrb[0].mxu0
  %v4087 = vadd.f32 0.0, %v4086
  %v4088 = vpop.f32.mrb[0].mxu0
  %v4089 = vpop.f32.mrb[0].mxu0
  %v4090 = vadd.f32 0.0, %v4089
  %v4091 = vpop.f32.mrb[0].mxu0
  %4092 = vmatprep.mubr.bf16.mxu0 %v2862
  %4093 = vmatmul.mubr.bf16.gmra.mrb[0].mxu0 %v2410
  %v4094 = vpop.f32.mrb[0].mxu0
  %v4095 = vadd.f32 0.0, %v4094
  %v4096 = vpop.f32.mrb[0].mxu0
  %v4097 = vpop.f32.mrb[0].mxu0
  %v4098 = vadd.f32 0.0, %v4097
  %v4099 = vpop.f32.mrb[0].mxu0
  %4100 = vmatprep.mubr.bf16.mxu0 %v3208
  %4101 = vmatmul.mubr.bf16.gmra.mrb[0].mxu0 %v2414
  %v4102 = vpop.f32.mrb[0].mxu0
  %v4103 = vadd.f32 0.0, %v4102
  %v4104 = vpop.f32.mrb[0].mxu0
  %v4105 = vpop.f32.mrb[0].mxu0
  %v4106 = vadd.f32 0.0, %v4105
  %v4107 = vpop.f32.mrb[0].mxu0
  %4108 = vdwg.mxu0
  %v4109 = vadd.f32 %v3939, %v4079
  %v4110 = vadd.f32 %v3940, %v4082
  %v4111 = vadd.f32 %v3941, %v4087
  %v4112 = vadd.f32 %v3942, %v4090
  %v4113 = vadd.f32 %v3943, %v4095
  %v4114 = vadd.f32 %v3944, %v4098
  %v4115 = vadd.f32 %v3945, %v4103
  %v4116 = vadd.f32 %v3946, %v4106
  %v4117 = vmax.f32 %v3275, %v4109
  %v4118 = vmax.f32 %v3276, %v4110
  %v4119 = vmax.f32 %v3277, %v4111
  %v4120 = vmax.f32 %v3278, %v4112
  %v4121 = vmax.f32 %v3279, %v4113
  %v4122 = vmax.f32 %v3280, %v4114
  %v4123 = vmax.f32 %v3281, %v4115
  %v4124 = vmax.f32 %v3282, %v4116
  %v4125 = vld [vmem:[%s4] sm:$0x1]
  %v4126 = vmax.f32 %v4117, %v4118
  %v4128 = vlaneseq
  %v4129 = vshrl.u32 %v4128, 7
  %v4130 = vsub.s32 0, %v4129
  %v4131 = vrot.slane %v4125, %v4130
  %v4133 = vadd.f32 %v4126, %v4131
  %v4134 = vmax.f32 %v4133, 0.0
  %4135 = vst [vmem:[%s8] sm:$0xff] %v4134
  %v4136 = vpack.c.bf16 %v4134, %v4134
  %v4137 = vld [vmem:[%s5] sm:$0xf]
  %v4138 = vld [vmem:[%s5 + $0x4] sm:$0xf]
  %v4139 = vld [vmem:[%s5 + $0x8] sm:$0xf]
  %v4140 = vld [vmem:[%s5 + $0xc] sm:$0xf]
  %v4141 = vld [vmem:[%s5 + $0x10] sm:$0xf]
  %v4142 = vld [vmem:[%s5 + $0x14] sm:$0xf]
  %v4143 = vld [vmem:[%s5 + $0x18] sm:$0xf]
  %v4144 = vld [vmem:[%s5 + $0x1c] sm:$0xf]
  %v4145 = vld [vmem:[%s5 + $0x20] sm:$0xf]
  %v4146 = vld [vmem:[%s5 + $0x24] sm:$0xf]
  %v4147 = vld [vmem:[%s5 + $0x28] sm:$0xf]
  %v4148 = vld [vmem:[%s5 + $0x2c] sm:$0xf]
  %v4149 = vld [vmem:[%s5 + $0x30] sm:$0xf]
  %v4150 = vld [vmem:[%s5 + $0x34] sm:$0xf]
  %v4151 = vld [vmem:[%s5 + $0x38] sm:$0xf]
  %v4152 = vld [vmem:[%s5 + $0x3c] sm:$0xf]
  %v4153 = vmax.f32 %v4119, %v4120
  %v4154 = vadd.f32 %v4153, %v4131
  %v4155 = vmax.f32 %v4154, 0.0
  %s4156 = scalar_lea.vmem %s8, 8
  %4157 = vst [vmem:[%s4156] sm:$0xff] %v4155
  %v4158 = vpack.c.bf16 %v4155, %v4155
  %s4159 = scalar_lea.vmem %s5, 64
  %v4160 = vld [vmem:[%s4159] sm:$0xf]
  %v4161 = vld [vmem:[%s4159 + $0x4] sm:$0xf]
  %v4162 = vld [vmem:[%s4159 + $0x8] sm:$0xf]
  %v4163 = vld [vmem:[%s4159 + $0xc] sm:$0xf]
  %v4164 = vld [vmem:[%s4159 + $0x10] sm:$0xf]
  %v4165 = vld [vmem:[%s4159 + $0x14] sm:$0xf]
  %v4166 = vld [vmem:[%s4159 + $0x18] sm:$0xf]
  %v4167 = vld [vmem:[%s4159 + $0x1c] sm:$0xf]
  %v4168 = vld [vmem:[%s4159 + $0x20] sm:$0xf]
  %v4169 = vld [vmem:[%s4159 + $0x24] sm:$0xf]
  %v4170 = vld [vmem:[%s4159 + $0x28] sm:$0xf]
  %v4171 = vld [vmem:[%s4159 + $0x2c] sm:$0xf]
  %v4172 = vld [vmem:[%s4159 + $0x30] sm:$0xf]
  %v4173 = vld [vmem:[%s4159 + $0x34] sm:$0xf]
  %v4174 = vld [vmem:[%s4159 + $0x38] sm:$0xf]
  %v4175 = vld [vmem:[%s4159 + $0x3c] sm:$0xf]
  %v4192 = vunpack.c.l.b16 %v4160
  %v4193 = vunpack.c.l.b16 %v4161
  %v4194 = vunpack.c.l.b16 %v4162
  %v4195 = vunpack.c.l.b16 %v4163
  %v4196 = vunpack.c.l.b16 %v4164
  %v4197 = vunpack.c.l.b16 %v4165
  %v4198 = vunpack.c.l.b16 %v4166
  %v4199 = vunpack.c.l.b16 %v4167
  %v4200 = vunpack.c.l.b16 %v4168
  %v4201 = vunpack.c.l.b16 %v4169
  %v4202 = vunpack.c.l.b16 %v4170
  %v4203 = vunpack.c.l.b16 %v4171
  %v4204 = vunpack.c.l.b16 %v4172
  %v4205 = vunpack.c.l.b16 %v4173
  %v4206 = vunpack.c.l.b16 %v4174
  %v4207 = vunpack.c.l.b16 %v4175
  %v4208 = vpack.c.b16 %v4193, %v4192
  %v4209 = vpack.c.b16 %v4195, %v4194
  %v4210 = vpack.c.b16 %v4197, %v4196
  %v4211 = vpack.c.b16 %v4199, %v4198
  %v4212 = vpack.c.b16 %v4201, %v4200
  %v4213 = vpack.c.b16 %v4203, %v4202
  %v4214 = vpack.c.b16 %v4205, %v4204
  %v4215 = vpack.c.b16 %v4207, %v4206
  %4224 = vmatprep.subr.bf16.mxu0 0
  %4225 = vmatpush1.bf16.msra.mxu0 %v4208
  %4226 = vmatprep.subr.bf16.mxu0 0
  %4227 = vmatpush1.bf16.msra.mxu0 %v4209
  %4228 = vmatprep.subr.bf16.mxu0 0
  %4229 = vmatpush1.bf16.msra.mxu0 %v4210
  %4230 = vmatprep.subr.bf16.mxu0 0
  %4231 = vmatpush1.bf16.msra.mxu0 %v4211
  %4232 = vmatprep.subr.bf16.mxu0 0
  %4233 = vmatpush1.bf16.msra.mxu0 %v4212
  %4234 = vmatprep.subr.bf16.mxu0 0
  %4235 = vmatpush1.bf16.msra.mxu0 %v4213
  %4236 = vmatprep.subr.bf16.mxu0 0
  %4237 = vmatpush1.bf16.msra.mxu0 %v4214
  %4238 = vmatprep.subr.bf16.mxu0 0
  %4239 = vmatpush1.bf16.msra.mxu0 %v4215
  %4240 = vmatprep.subr.bf16.mxu0 0
  %4241 = vmatpush1.bf16.msra.mxu0 0
  %4242 = vmatprep.subr.bf16.mxu0 0
  %4243 = vmatpush1.bf16.msra.mxu0 0
  %4244 = vmatprep.subr.bf16.mxu0 0
  %4245 = vmatpush1.bf16.msra.mxu0 0
  %4246 = vmatprep.subr.bf16.mxu0 0
  %4247 = vmatpush1.bf16.msra.mxu0 0
  %4248 = vmatprep.subr.bf16.mxu0 0
  %4249 = vmatpush1.bf16.msra.mxu0 0
  %4250 = vmatprep.subr.bf16.mxu0 0
  %4251 = vmatpush1.bf16.msra.mxu0 0
  %4252 = vmatprep.subr.bf16.mxu0 0
  %4253 = vmatpush1.bf16.msra.mxu0 0
  %4254 = vmatprep.subr.bf16.mxu0 0
  %4255 = vmatpush1.bf16.msra.mxu0 0
  %4256 = vmatprep.mubr.bf16.mxu0 0
  %4257 = vmatmul.mubr.bf16.gmra.mrb[0].mxu0 %v4158
  %v4258 = vpop.f32.mrb[0].mxu0
  %v4259 = vadd.f32 0.0, %v4258
  %v4260 = vpop.f32.mrb[0].mxu0
  %v4261 = vpop.f32.mrb[0].mxu0
  %v4262 = vpop.f32.mrb[0].mxu0
  %4263 = vdwg.mxu0
  %v4280 = vunpack.c.l.b16 %v4137
  %v4281 = vunpack.c.l.b16 %v4138
  %v4282 = vunpack.c.l.b16 %v4139
  %v4283 = vunpack.c.l.b16 %v4140
  %v4284 = vunpack.c.l.b16 %v4141
  %v4285 = vunpack.c.l.b16 %v4142
  %v4286 = vunpack.c.l.b16 %v4143
  %v4287 = vunpack.c.l.b16 %v4144
  %v4288 = vunpack.c.l.b16 %v4145
  %v4289 = vunpack.c.l.b16 %v4146
  %v4290 = vunpack.c.l.b16 %v4147
  %v4291 = vunpack.c.l.b16 %v4148
  %v4292 = vunpack.c.l.b16 %v4149
  %v4293 = vunpack.c.l.b16 %v4150
  %v4294 = vunpack.c.l.b16 %v4151
  %v4295 = vunpack.c.l.b16 %v4152
  %v4296 = vpack.c.b16 %v4281, %v4280
  %v4297 = vpack.c.b16 %v4283, %v4282
  %v4298 = vpack.c.b16 %v4285, %v4284
  %v4299 = vpack.c.b16 %v4287, %v4286
  %v4300 = vpack.c.b16 %v4289, %v4288
  %v4301 = vpack.c.b16 %v4291, %v4290
  %v4302 = vpack.c.b16 %v4293, %v4292
  %v4303 = vpack.c.b16 %v4295, %v4294
  %4312 = vmatprep.subr.bf16.mxu0 0
  %4313 = vmatpush1.bf16.msra.mxu0 %v4296
  %4314 = vmatprep.subr.bf16.mxu0 0
  %4315 = vmatpush1.bf16.msra.mxu0 %v4297
  %4316 = vmatprep.subr.bf16.mxu0 0
  %4317 = vmatpush1.bf16.msra.mxu0 %v4298
  %4318 = vmatprep.subr.bf16.mxu0 0
  %4319 = vmatpush1.bf16.msra.mxu0 %v4299
  %4320 = vmatprep.subr.bf16.mxu0 0
  %4321 = vmatpush1.bf16.msra.mxu0 %v4300
  %4322 = vmatprep.subr.bf16.mxu0 0
  %4323 = vmatpush1.bf16.msra.mxu0 %v4301
  %4324 = vmatprep.subr.bf16.mxu0 0
  %4325 = vmatpush1.bf16.msra.mxu0 %v4302
  %4326 = vmatprep.subr.bf16.mxu0 0
  %4327 = vmatpush1.bf16.msra.mxu0 %v4303
  %4328 = vmatprep.subr.bf16.mxu0 0
  %4329 = vmatpush1.bf16.msra.mxu0 0
  %4330 = vmatprep.subr.bf16.mxu0 0
  %4331 = vmatpush1.bf16.msra.mxu0 0
  %4332 = vmatprep.subr.bf16.mxu0 0
  %4333 = vmatpush1.bf16.msra.mxu0 0
  %4334 = vmatprep.subr.bf16.mxu0 0
  %4335 = vmatpush1.bf16.msra.mxu0 0
  %4336 = vmatprep.subr.bf16.mxu0 0
  %4337 = vmatpush1.bf16.msra.mxu0 0
  %4338 = vmatprep.subr.bf16.mxu0 0
  %4339 = vmatpush1.bf16.msra.mxu0 0
  %4340 = vmatprep.subr.bf16.mxu0 0
  %4341 = vmatpush1.bf16.msra.mxu0 0
  %4342 = vmatprep.subr.bf16.mxu0 0
  %4343 = vmatpush1.bf16.msra.mxu0 0
  %4344 = vmatprep.mubr.bf16.mxu0 0
  %4345 = vmatmul.mubr.bf16.gmra.mrb[0].mxu0 %v4136
  %v4346 = vpop.f32.mrb[0].mxu0
  %v4347 = vadd.f32 %v4259, %v4346
  %v4348 = vpop.f32.mrb[0].mxu0
  %v4349 = vpop.f32.mrb[0].mxu0
  %v4350 = vpop.f32.mrb[0].mxu0
  %4351 = vdwg.mxu0
  %v4352 = vmax.f32 %v4121, %v4122
  %v4353 = vadd.f32 %v4352, %v4131
  %v4354 = vmax.f32 %v4353, 0.0
  %s4355 = scalar_lea.vmem %s8, 16
  %4356 = vst [vmem:[%s4355] sm:$0xff] %v4354
  %v4357 = vpack.c.bf16 %v4354, %v4354
  %s4358 = scalar_lea.vmem %s5, 128
  %v4359 = vld [vmem:[%s4358] sm:$0xf]
  %v4360 = vld [vmem:[%s4358 + $0x4] sm:$0xf]
  %v4361 = vld [vmem:[%s4358 + $0x8] sm:$0xf]
  %v4362 = vld [vmem:[%s4358 + $0xc] sm:$0xf]
  %v4363 = vld [vmem:[%s4358 + $0x10] sm:$0xf]
  %v4364 = vld [vmem:[%s4358 + $0x14] sm:$0xf]
  %v4365 = vld [vmem:[%s4358 + $0x18] sm:$0xf]
  %v4366 = vld [vmem:[%s4358 + $0x1c] sm:$0xf]
  %v4367 = vld [vmem:[%s4358 + $0x20] sm:$0xf]
  %v4368 = vld [vmem:[%s4358 + $0x24] sm:$0xf]
  %v4369 = vld [vmem:[%s4358 + $0x28] sm:$0xf]
  %v4370 = vld [vmem:[%s4358 + $0x2c] sm:$0xf]
  %v4371 = vld [vmem:[%s4358 + $0x30] sm:$0xf]
  %v4372 = vld [vmem:[%s4358 + $0x34] sm:$0xf]
  %v4373 = vld [vmem:[%s4358 + $0x38] sm:$0xf]
  %v4374 = vld [vmem:[%s4358 + $0x3c] sm:$0xf]
  %v4391 = vunpack.c.l.b16 %v4359
  %v4392 = vunpack.c.l.b16 %v4360
  %v4393 = vunpack.c.l.b16 %v4361
  %v4394 = vunpack.c.l.b16 %v4362
  %v4395 = vunpack.c.l.b16 %v4363
  %v4396 = vunpack.c.l.b16 %v4364
  %v4397 = vunpack.c.l.b16 %v4365
  %v4398 = vunpack.c.l.b16 %v4366
  %v4399 = vunpack.c.l.b16 %v4367
  %v4400 = vunpack.c.l.b16 %v4368
  %v4401 = vunpack.c.l.b16 %v4369
  %v4402 = vunpack.c.l.b16 %v4370
  %v4403 = vunpack.c.l.b16 %v4371
  %v4404 = vunpack.c.l.b16 %v4372
  %v4405 = vunpack.c.l.b16 %v4373
  %v4406 = vunpack.c.l.b16 %v4374
  %v4407 = vpack.c.b16 %v4392, %v4391
  %v4408 = vpack.c.b16 %v4394, %v4393
  %v4409 = vpack.c.b16 %v4396, %v4395
  %v4410 = vpack.c.b16 %v4398, %v4397
  %v4411 = vpack.c.b16 %v4400, %v4399
  %v4412 = vpack.c.b16 %v4402, %v4401
  %v4413 = vpack.c.b16 %v4404, %v4403
  %v4414 = vpack.c.b16 %v4406, %v4405
  %4423 = vmatprep.subr.bf16.mxu0 0
  %4424 = vmatpush1.bf16.msra.mxu0 %v4407
  %4425 = vmatprep.subr.bf16.mxu0 0
  %4426 = vmatpush1.bf16.msra.mxu0 %v4408
  %4427 = vmatprep.subr.bf16.mxu0 0
  %4428 = vmatpush1.bf16.msra.mxu0 %v4409
  %4429 = vmatprep.subr.bf16.mxu0 0
  %4430 = vmatpush1.bf16.msra.mxu0 %v4410
  %4431 = vmatprep.subr.bf16.mxu0 0
  %4432 = vmatpush1.bf16.msra.mxu0 %v4411
  %4433 = vmatprep.subr.bf16.mxu0 0
  %4434 = vmatpush1.bf16.msra.mxu0 %v4412
  %4435 = vmatprep.subr.bf16.mxu0 0
  %4436 = vmatpush1.bf16.msra.mxu0 %v4413
  %4437 = vmatprep.subr.bf16.mxu0 0
  %4438 = vmatpush1.bf16.msra.mxu0 %v4414
  %4439 = vmatprep.subr.bf16.mxu0 0
  %4440 = vmatpush1.bf16.msra.mxu0 0
  %4441 = vmatprep.subr.bf16.mxu0 0
  %4442 = vmatpush1.bf16.msra.mxu0 0
  %4443 = vmatprep.subr.bf16.mxu0 0
  %4444 = vmatpush1.bf16.msra.mxu0 0
  %4445 = vmatprep.subr.bf16.mxu0 0
  %4446 = vmatpush1.bf16.msra.mxu0 0
  %4447 = vmatprep.subr.bf16.mxu0 0
  %4448 = vmatpush1.bf16.msra.mxu0 0
  %4449 = vmatprep.subr.bf16.mxu0 0
  %4450 = vmatpush1.bf16.msra.mxu0 0
  %4451 = vmatprep.subr.bf16.mxu0 0
  %4452 = vmatpush1.bf16.msra.mxu0 0
  %4453 = vmatprep.subr.bf16.mxu0 0
  %4454 = vmatpush1.bf16.msra.mxu0 0
  %4455 = vmatprep.mubr.bf16.mxu0 0
  %4456 = vmatmul.mubr.bf16.gmra.mrb[0].mxu0 %v4357
  %v4457 = vpop.f32.mrb[0].mxu0
  %v4458 = vadd.f32 0.0, %v4457
  %v4459 = vpop.f32.mrb[0].mxu0
  %v4460 = vpop.f32.mrb[0].mxu0
  %v4461 = vpop.f32.mrb[0].mxu0
  %4462 = vdwg.mxu0
  %v4463 = vadd.f32 %v4347, %v4458
  %v4464 = vmax.f32 %v4123, %v4124
  %v4465 = vadd.f32 %v4464, %v4131
  %v4466 = vmax.f32 %v4465, 0.0
  %s4467 = scalar_lea.vmem %s8, 24
  %4468 = vst [vmem:[%s4467] sm:$0xff] %v4466
  %v4469 = vpack.c.bf16 %v4466, %v4466
  %s4470 = scalar_lea.vmem %s5, 192
  %v4471 = vld [vmem:[%s4470] sm:$0xf]
  %v4472 = vld [vmem:[%s4470 + $0x4] sm:$0xf]
  %v4473 = vld [vmem:[%s4470 + $0x8] sm:$0xf]
  %v4474 = vld [vmem:[%s4470 + $0xc] sm:$0xf]
  %v4475 = vld [vmem:[%s4470 + $0x10] sm:$0xf]
  %v4476 = vld [vmem:[%s4470 + $0x14] sm:$0xf]
  %v4477 = vld [vmem:[%s4470 + $0x18] sm:$0xf]
  %v4478 = vld [vmem:[%s4470 + $0x1c] sm:$0xf]
  %v4479 = vld [vmem:[%s4470 + $0x20] sm:$0xf]
  %v4480 = vld [vmem:[%s4470 + $0x24] sm:$0xf]
  %v4481 = vld [vmem:[%s4470 + $0x28] sm:$0xf]
  %v4482 = vld [vmem:[%s4470 + $0x2c] sm:$0xf]
  %v4483 = vld [vmem:[%s4470 + $0x30] sm:$0xf]
  %v4484 = vld [vmem:[%s4470 + $0x34] sm:$0xf]
  %v4485 = vld [vmem:[%s4470 + $0x38] sm:$0xf]
  %v4486 = vld [vmem:[%s4470 + $0x3c] sm:$0xf]
  %v4503 = vunpack.c.l.b16 %v4471
  %v4504 = vunpack.c.l.b16 %v4472
  %v4505 = vunpack.c.l.b16 %v4473
  %v4506 = vunpack.c.l.b16 %v4474
  %v4507 = vunpack.c.l.b16 %v4475
  %v4508 = vunpack.c.l.b16 %v4476
  %v4509 = vunpack.c.l.b16 %v4477
  %v4510 = vunpack.c.l.b16 %v4478
  %v4511 = vunpack.c.l.b16 %v4479
  %v4512 = vunpack.c.l.b16 %v4480
  %v4513 = vunpack.c.l.b16 %v4481
  %v4514 = vunpack.c.l.b16 %v4482
  %v4515 = vunpack.c.l.b16 %v4483
  %v4516 = vunpack.c.l.b16 %v4484
  %v4517 = vunpack.c.l.b16 %v4485
  %v4518 = vunpack.c.l.b16 %v4486
  %v4519 = vpack.c.b16 %v4504, %v4503
  %v4520 = vpack.c.b16 %v4506, %v4505
  %v4521 = vpack.c.b16 %v4508, %v4507
  %v4522 = vpack.c.b16 %v4510, %v4509
  %v4523 = vpack.c.b16 %v4512, %v4511
  %v4524 = vpack.c.b16 %v4514, %v4513
  %v4525 = vpack.c.b16 %v4516, %v4515
  %v4526 = vpack.c.b16 %v4518, %v4517
  %4535 = vmatprep.subr.bf16.mxu0 0
  %4536 = vmatpush1.bf16.msra.mxu0 %v4519
  %4537 = vmatprep.subr.bf16.mxu0 0
  %4538 = vmatpush1.bf16.msra.mxu0 %v4520
  %4539 = vmatprep.subr.bf16.mxu0 0
  %4540 = vmatpush1.bf16.msra.mxu0 %v4521
  %4541 = vmatprep.subr.bf16.mxu0 0
  %4542 = vmatpush1.bf16.msra.mxu0 %v4522
  %4543 = vmatprep.subr.bf16.mxu0 0
  %4544 = vmatpush1.bf16.msra.mxu0 %v4523
  %4545 = vmatprep.subr.bf16.mxu0 0
  %4546 = vmatpush1.bf16.msra.mxu0 %v4524
  %4547 = vmatprep.subr.bf16.mxu0 0
  %4548 = vmatpush1.bf16.msra.mxu0 %v4525
  %4549 = vmatprep.subr.bf16.mxu0 0
  %4550 = vmatpush1.bf16.msra.mxu0 %v4526
  %4551 = vmatprep.subr.bf16.mxu0 0
  %4552 = vmatpush1.bf16.msra.mxu0 0
  %4553 = vmatprep.subr.bf16.mxu0 0
  %4554 = vmatpush1.bf16.msra.mxu0 0
  %4555 = vmatprep.subr.bf16.mxu0 0
  %4556 = vmatpush1.bf16.msra.mxu0 0
  %4557 = vmatprep.subr.bf16.mxu0 0
  %4558 = vmatpush1.bf16.msra.mxu0 0
  %4559 = vmatprep.subr.bf16.mxu0 0
  %4560 = vmatpush1.bf16.msra.mxu0 0
  %4561 = vmatprep.subr.bf16.mxu0 0
  %4562 = vmatpush1.bf16.msra.mxu0 0
  %4563 = vmatprep.subr.bf16.mxu0 0
  %4564 = vmatpush1.bf16.msra.mxu0 0
  %4565 = vmatprep.subr.bf16.mxu0 0
  %4566 = vmatpush1.bf16.msra.mxu0 0
  %4567 = vmatprep.mubr.bf16.mxu0 0
  %4568 = vmatmul.mubr.bf16.gmra.mrb[0].mxu0 %v4469
  %v4569 = vpop.f32.mrb[0].mxu0
  %v4570 = vadd.f32 0.0, %v4569
  %v4571 = vpop.f32.mrb[0].mxu0
  %v4572 = vpop.f32.mrb[0].mxu0
  %v4573 = vpop.f32.mrb[0].mxu0
  %4574 = vdwg.mxu0
  %v4575 = vadd.f32 %v4463, %v4570
  %v4576 = vld [vmem:[%s6] sm:$0x1]
  %v4578 = vlaneseq
  %v4579 = vshrl.u32 %v4578, 7
  %v4580 = vsub.s32 0, %v4579
  %v4581 = vrot.slane %v4576, %v4580
  %v4583 = vadd.f32 %v4575, %v4581
  %vm4584 = vcmask 80896
  %4585 = vst.msk [vmem:[%s7] sm:$0xff] %vm4584, %v4583
  // Predicated region
  $region30: #{cnn_forward.1} parent=0 // pred_check
    _
  $region31: #{cnn_forward.1} parent=0 // pred_check_branch
    %4587 = sbr.rel (0) target = $region33
  $region32: #{cnn_forward.1} parent=0 // pred_region
    _
  $region33: #{cnn_forward.1} parent=0 // pred_fallthru
    _
  // Predicated region
  $region34: #{cnn_forward.1} parent=0 // pred_check
    _
  $region35: #{cnn_forward.1} parent=0 // pred_check_branch
    %4589 = sbr.rel (0) target = $region37
  $region36: #{cnn_forward.1} parent=0 // pred_region
    _
  $region37: #{cnn_forward.1} parent=0 // pred_fallthru
    _
  // Predicated region
  $region38: #{cnn_forward.1} parent=0 // pred_check
    _
  $region39: #{cnn_forward.1} parent=0 // pred_check_branch
    %4591 = sbr.rel (0) target = $region41
  $region40: #{cnn_forward.1} parent=0 // pred_region
    _
  $region41: #{cnn_forward.1} parent=0 // pred_fallthru
    _
  // Predicated region
  $region42: #{cnn_forward.1} parent=0 // pred_check
    _
  $region43: #{cnn_forward.1} parent=0 // pred_check_branch
    %4593 = sbr.rel (0) target = $region45
  $region44: #{cnn_forward.1} parent=0 // pred_region
    _
  $region45: #{cnn_forward.1} parent=0 // pred_fallthru
    _

</llo_original>
